<compile_context>
chip_gen: v7x
topology: tpu7x:2x2x1
jax: 0.10.0
libtpu: 0.0.40
codegen_flags: <defaults>
</compile_context>

<pallas_src>
import functools

import jax
import jax.numpy as jnp
from jax import lax
from jax.experimental import pallas as pl
from jax.experimental.pallas import tpu as pltpu

# Safe on every generation (v7x default scoped VMEM is 32 MiB of 64 MiB phys).
VMEM_LIMIT_BYTES = 32 * 1024 * 1024


def _pick_tile(dim, cap, align):
    """Largest tile <= cap that divides dim and is align-aligned, else full dim."""
    if dim <= cap:
        return dim
    t = (cap // align) * align
    while t >= align:
        if dim % t == 0:
            return t
        t -= align
    return dim


# ---------------------------------------------------------------------------
# Kernel 1: tiled matmul (qkv_proj and o_proj).
# f32 accumulator scratch, init at k==0, writeback at last k.  512-class tiles.
# ---------------------------------------------------------------------------
def _matmul_kernel(x_ref, w_ref, o_ref, acc_ref):
    @pl.when(pl.program_id(2) == 0)
    def _init():
        acc_ref[...] = jnp.zeros_like(acc_ref)

    acc_ref[...] += jnp.dot(
        x_ref[...], w_ref[...], preferred_element_type=jnp.float32
    )

    @pl.when(pl.program_id(2) == pl.num_programs(2) - 1)
    def _done():
        o_ref[...] = acc_ref[...].astype(o_ref.dtype)


def pallas_matmul(x, w, *, tm_cap=512, tn_cap=512, tk_cap=512):
    M, K = x.shape
    K2, N = w.shape
    assert K == K2
    tm = _pick_tile(M, tm_cap, 8)
    tn = _pick_tile(N, tn_cap, 128)
    tk = _pick_tile(K, tk_cap, 128)
    grid = (M // tm, N // tn, K // tk)
    cost = pl.CostEstimate(
        flops=int(2 * M * N * K),
        transcendentals=0,
        bytes_accessed=int((M * K + K * N + M * N) * x.dtype.itemsize),
    )
    return pl.pallas_call(
        _matmul_kernel,
        out_shape=jax.ShapeDtypeStruct((M, N), x.dtype),
        grid=grid,
        in_specs=[
            pl.BlockSpec((tm, tk), lambda i, j, k: (i, k)),
            pl.BlockSpec((tk, tn), lambda i, j, k: (k, j)),
        ],
        out_specs=pl.BlockSpec((tm, tn), lambda i, j, k: (i, j)),
        scratch_shapes=[pltpu.VMEM((tm, tn), jnp.float32)],
        compiler_params=pltpu.CompilerParams(
            dimension_semantics=("parallel", "parallel", "arbitrary"),
            vmem_limit_bytes=VMEM_LIMIT_BYTES,
        ),
        cost_estimate=cost,
    )(x, w)


# ---------------------------------------------------------------------------
# Kernel 2: fused neox-style RoPE for q AND k in a single pass.
#   grid = (T // tr,), one row-tile per step: cos/sin are read ONCE per row
#   tile (not once per head), q and k are roped in the same launch, and the
#   softmax scale is folded into q.  rotate_half via pltpu.roll (XLU) with the
#   sign folded into the sin table, so there are no sub-lane slices / concats.
# ---------------------------------------------------------------------------
def _rope_qk_kernel(q_ref, k_ref, cos_ref, sin_ref, qo_ref, ko_ref, *,
                    nq, nkv, head_dim, scale):
    half = head_dim // 2
    cos = cos_ref[...]                       # (tr, D) f32
    sin = sin_ref[...]                       # (tr, D) f32, sign pre-folded

    def rope_one(x):                         # x: (tr, D) input dtype
        xf = x.astype(jnp.float32)           # elementwise math in f32 (v5e safe)
        rot = pltpu.roll(xf, half, 1)        # [x2, x1] via XLU
        return xf * cos + rot * sin

    for h in range(nq):
        sl = slice(h * head_dim, (h + 1) * head_dim)
        out = rope_one(q_ref[:, sl])
        if scale != 1.0:
            out = out * scale
        qo_ref[:, sl] = out.astype(qo_ref.dtype)

    for h in range(nkv):
        sl = slice(h * head_dim, (h + 1) * head_dim)
        ko_ref[:, sl] = rope_one(k_ref[:, sl]).astype(ko_ref.dtype)


def pallas_rope_qk(q, k, cos_full, sin_signed, nq, nkv, head_dim, *,
                   scale=1.0, tr_cap=512):
    T, Wq = q.shape
    _, Wk = k.shape
    assert Wq == nq * head_dim and Wk == nkv * head_dim
    assert head_dim % 128 == 0 and head_dim % 2 == 0
    # Bound the row tile so (q + k) in + out blocks stay a few MiB even for
    # real Mixtral widths (nq=32, nkv=8).
    bytes_per_row = 2 * (Wq + Wk) * q.dtype.itemsize + 2 * head_dim * 4
    cap = max(8, min(tr_cap, ((8 << 20) // bytes_per_row) // 8 * 8))
    tr = _pick_tile(T, cap, 8)
    grid = (T // tr,)
    kernel = functools.partial(_rope_qk_kernel, nq=nq, nkv=nkv,
                               head_dim=head_dim, scale=float(scale))
    return pl.pallas_call(
        kernel,
        out_shape=(jax.ShapeDtypeStruct((T, Wq), q.dtype),
                   jax.ShapeDtypeStruct((T, Wk), k.dtype)),
        grid=grid,
        in_specs=[
            pl.BlockSpec((tr, Wq), lambda t: (t, 0)),
            pl.BlockSpec((tr, Wk), lambda t: (t, 0)),
            pl.BlockSpec((tr, head_dim), lambda t: (t, 0)),
            pl.BlockSpec((tr, head_dim), lambda t: (t, 0)),
        ],
        out_specs=[
            pl.BlockSpec((tr, Wq), lambda t: (t, 0)),
            pl.BlockSpec((tr, Wk), lambda t: (t, 0)),
        ],
        compiler_params=pltpu.CompilerParams(
            dimension_semantics=("parallel",),
            vmem_limit_bytes=VMEM_LIMIT_BYTES,
        ),
    )(q, k, cos_full, sin_signed)


# ---------------------------------------------------------------------------
# Kernel 3: causal flash attention, GQA-batched.
#   grid = (num_kv_heads, q_tile, kv_tile); kv axis last + "arbitrary".
#   The K/V tile of one kv head is loaded once and reused by all `group`
#   query heads of that group (looped in-kernel over static 128-lane slices).
#   Causally-dead kv tiles: compute is skipped AND the K/V DMA is elided by
#   clamping the index_map to the previously fetched block.
#   Only the diagonal tile builds the causal mask (tq == tk guarantees all
#   other computed tiles are fully unmasked).
#   m/l running stats are kept lane-dense ((tq, group*D), same layout as acc)
#   so every scratch store is a full-lane vst and the finalize is elementwise.
# ---------------------------------------------------------------------------
def _flash_kernel(q_ref, k_ref, v_ref, o_ref, m_sc, l_sc, acc_sc, *,
                  tq, tk, group, head_dim):
    qi = pl.program_id(1)
    ki = pl.program_id(2)

    @pl.when(ki == 0)
    def _init():
        m_sc[...] = jnp.full_like(m_sc, -jnp.inf)
        l_sc[...] = jnp.zeros_like(l_sc)
        acc_sc[...] = jnp.zeros_like(acc_sc)

    def update(masked):
        k = k_ref[...]                       # (tk, D) — shared by the group
        v = v_ref[...]                       # (tk, D)
        if masked:
            row = qi * tq + lax.broadcasted_iota(jnp.int32, (tq, tk), 0)
            col = ki * tk + lax.broadcasted_iota(jnp.int32, (tq, tk), 1)
            causal = col <= row
        for g in range(group):
            sl = slice(g * head_dim, (g + 1) * head_dim)
            q_g = q_ref[:, sl]               # (tq, D), already roped+scaled
            s = lax.dot_general(q_g, k, (((1,), (1,)), ((), ())),
                                preferred_element_type=jnp.float32)  # (tq, tk)
            if masked:
                s = jnp.where(causal, s, jnp.float32(-1e30))

            m_prev = m_sc[:, sl]                                  # (tq, D)
            m_prev_c = jnp.max(m_prev, axis=-1, keepdims=True)    # (tq, 1) XLU
            s_max = jnp.max(s, axis=-1, keepdims=True)            # (tq, 1)
            m_new_c = jnp.maximum(m_prev_c, s_max)                # (tq, 1)
            alpha = jnp.exp(m_prev - m_new_c)                     # (tq, D)
            p = jnp.exp(s - m_new_c)                              # (tq, tk)
            l_sc[:, sl] = alpha * l_sc[:, sl] + jnp.sum(p, axis=-1,
                                                        keepdims=True)
            acc_sc[:, sl] = alpha * acc_sc[:, sl] + jnp.dot(
                p.astype(v.dtype), v, preferred_element_type=jnp.float32)
            m_sc[:, sl] = jnp.maximum(m_prev, s_max)              # (tq, D)

    # Interior (fully unmasked) tiles: no iota/compare/select needed.
    @pl.when(ki < qi)
    def _interior():
        update(masked=False)

    # Diagonal tile — the only partially-causal one (requires tq == tk).
    @pl.when(ki == qi)
    def _diag():
        update(masked=True)

    # ki > qi: fully masked — compute skipped AND DMA elided by the index_map.

    @pl.when(ki == pl.num_programs(2) - 1)
    def _finalize():
        inv_l = pl.reciprocal(l_sc[...], approx=True)   # EUP, off the VALU
        o_ref[...] = (acc_sc[...] * inv_l).astype(o_ref.dtype)


def pallas_flash_attention(q, k, v, num_heads, num_kv_heads, head_dim, *,
                           t_cap=512):
    # q: [T, nq*D]  k/v: [T, nkv*D]  -> out: [T, nq*D]
    T, _ = q.shape
    assert num_heads % num_kv_heads == 0
    assert head_dim % 128 == 0
    group = num_heads // num_kv_heads
    # tq == tk is required: it guarantees the only partially-causal tile is the
    # diagonal one and that every computed row has >= 1 unmasked score.
    tq = tk = _pick_tile(T, t_cap, 8)
    assert tq == tk
    gw = group * head_dim
    grid = (num_kv_heads, T // tq, T // tk)
    kernel = functools.partial(_flash_kernel, tq=tq, tk=tk, group=group,
                               head_dim=head_dim)
    cost = pl.CostEstimate(
        flops=int(2 * num_heads * T * T * head_dim),        # 2 matmuls, ~causal half
        transcendentals=int(num_heads * T * T // 2),
        bytes_accessed=int((2 * q.size
                            + (k.size + v.size) * max(1, T // (2 * tq)))
                           * q.dtype.itemsize),
    )
    return pl.pallas_call(
        kernel,
        out_shape=jax.ShapeDtypeStruct((T, num_heads * head_dim), q.dtype),
        grid=grid,
        in_specs=[
            # q columns for kv head kh = its `group` query heads, contiguous.
            pl.BlockSpec((tq, gw), lambda kh, qi, ki: (qi, kh)),
            # Clamp causally-dead tiles to the previous block -> DMA elided.
            pl.BlockSpec((tk, head_dim),
                         lambda kh, qi, ki: (jnp.minimum(ki, qi), kh)),
            pl.BlockSpec((tk, head_dim),
                         lambda kh, qi, ki: (jnp.minimum(ki, qi), kh)),
        ],
        out_specs=pl.BlockSpec((tq, gw), lambda kh, qi, ki: (qi, kh)),
        scratch_shapes=[
            pltpu.VMEM((tq, gw), jnp.float32),   # running max m (lane-dense)
            pltpu.VMEM((tq, gw), jnp.float32),   # running sum l (lane-dense)
            pltpu.VMEM((tq, gw), jnp.float32),   # f32 accumulator
        ],
        compiler_params=pltpu.CompilerParams(
            dimension_semantics=("parallel", "parallel", "arbitrary"),
            vmem_limit_bytes=VMEM_LIMIT_BYTES,
        ),
        cost_estimate=cost,
    )(q, k, v)


# ---------------------------------------------------------------------------
# MixtralAttention forward (Pallas-backed)
# ---------------------------------------------------------------------------
def mixtral_attention_forward(
    positions, hidden_states, w_qkv, w_o,
    *, num_heads, num_kv_heads, head_dim, rope_theta
):
    T, _ = hidden_states.shape
    q_size = num_heads * head_dim
    kv_size = num_kv_heads * head_dim
    scale = head_dim ** -0.5

    # qkv projection (tiled Pallas matmul, output in input dtype)
    qkv = pallas_matmul(hidden_states, w_qkv)            # [T, q + 2kv]
    q = qkv[:, :q_size]
    k = qkv[:, q_size:q_size + kv_size]
    v = qkv[:, q_size + kv_size:]

    # rotary tables, pre-expanded to full head_dim (lane width) with the
    # rotate-half sign folded into the sin table.
    inv_freq = 1.0 / (
        rope_theta ** (jnp.arange(0, head_dim, 2, dtype=jnp.float32) / head_dim)
    )
    freqs = positions.astype(jnp.float32)[:, None] * inv_freq[None, :]  # [T, D/2]
    cos = jnp.cos(freqs)
    sin = jnp.sin(freqs)
    cos_full = jnp.concatenate([cos, cos], axis=-1)       # [T, D]
    sin_signed = jnp.concatenate([-sin, sin], axis=-1)    # [T, D]

    # Fused RoPE for q and k in one launch (softmax scale folded into q).
    qr, kr = pallas_rope_qk(q, k, cos_full, sin_signed,
                            num_heads, num_kv_heads, head_dim, scale=scale)

    # Causal GQA flash attention; output already [T, nq*D], lane-dense.
    attn = pallas_flash_attention(qr, kr, v, num_heads, num_kv_heads, head_dim)

    # output projection
    return pallas_matmul(attn, w_o)                       # [T, hidden]


# ---------------------------------------------------------------------------
# Pure-JAX reference for verification (HIGHEST precision matmuls)
# ---------------------------------------------------------------------------
def reference_forward(
    positions, hidden_states, w_qkv, w_o,
    *, num_heads, num_kv_heads, head_dim, rope_theta
):
    T, _ = hidden_states.shape
    q_size = num_heads * head_dim
    kv_size = num_kv_heads * head_dim
    scale = head_dim ** -0.5
    hi = lax.Precision.HIGHEST

    qkv = jnp.dot(hidden_states, w_qkv, precision=hi)
    q = qkv[:, :q_size].reshape(T, num_heads, head_dim)
    k = qkv[:, q_size:q_size + kv_size].reshape(T, num_kv_heads, head_dim)
    v = qkv[:, q_size + kv_size:].reshape(T, num_kv_heads, head_dim)

    inv_freq = 1.0 / (
        rope_theta ** (jnp.arange(0, head_dim, 2, dtype=jnp.float32) / head_dim)
    )
    freqs = positions.astype(jnp.float32)[:, None] * inv_freq[None, :]
    cos = jnp.cos(freqs)[:, None, :]
    sin = jnp.sin(freqs)[:, None, :]

    def rope(x):
        half = head_dim // 2
        x1, x2 = x[..., :half], x[..., half:]
        return jnp.concatenate([x1 * cos - x2 * sin, x2 * cos + x1 * sin], axis=-1)

    q = rope(q)
    k = rope(k)

    group = num_heads // num_kv_heads
    k = jnp.repeat(k, group, axis=1)   # [T, nq, D]
    v = jnp.repeat(v, group, axis=1)

    s = jnp.einsum("qhd,khd->hqk", q, k, precision=hi) * scale
    mask = jnp.tril(jnp.ones((T, T), dtype=bool))
    s = jnp.where(mask[None], s, -1e30)
    p = jax.nn.softmax(s, axis=-1)
    o = jnp.einsum("hqk,khd->qhd", p, v, precision=hi).reshape(T, q_size)
    return jnp.dot(o, w_o, precision=hi)


if __name__ == "__main__":
    # Small config consistent with the module; head_dim=128 matches real
    # Mixtral (hidden // heads) and keeps all blocks lane-aligned.  T=1024
    # exercises multi-tile flash (interior / diagonal / skipped kv tiles) and
    # the 512-class tiling on every kernel.
    hidden_size = 512
    num_heads = 4
    num_kv_heads = 2
    head_dim = hidden_size // num_heads      # 128
    rope_theta = 10000.0
    T = 1024

    q_size = num_heads * head_dim
    kv_size = num_kv_heads * head_dim

    key = jax.random.PRNGKey(0)
    k1, k2, k3 = jax.random.split(key, 3)

    hidden_states = jax.random.normal(k1, (T, hidden_size), dtype=jnp.float32)
    # qkv_proj / o_proj weights stored as [in_features, out_features]
    w_qkv = jax.random.normal(
        k2, (hidden_size, q_size + 2 * kv_size), dtype=jnp.float32) * 0.05
    w_o = jax.random.normal(k3, (q_size, hidden_size), dtype=jnp.float32) * 0.05
    positions = jnp.arange(T, dtype=jnp.int32)

    out = mixtral_attention_forward(
        positions, hidden_states, w_qkv, w_o,
        num_heads=num_heads, num_kv_heads=num_kv_heads,
        head_dim=head_dim, rope_theta=rope_theta,
    )
    out = jax.block_until_ready(out)

    ref = reference_forward(
        positions, hidden_states, w_qkv, w_o,
        num_heads=num_heads, num_kv_heads=num_kv_heads,
        head_dim=head_dim, rope_theta=rope_theta,
    )
    assert out.shape == (T, hidden_size)
    # Tolerance accounts for the approximate EUP reciprocal in the flash
    # epilogue and MXU pass-ordering differences vs the XLA reference.
    assert jnp.allclose(out, ref, atol=2e-2, rtol=2e-2), "mismatch vs reference"

    print("KERNEL_OK")
</pallas_src>

<mosaic_0001>
module attributes {stable_mosaic.version = 11 : i64} {
  func.func @_matmul_kernel(%arg0: i32, %arg1: i32, %arg2: i32, %arg3: memref<512x512xf32, #tpu.memory_space<vmem>>, %arg4: memref<512x512xf32, #tpu.memory_space<vmem>>, %arg5: memref<512x512xf32, #tpu.memory_space<vmem>>, %arg6: memref<512x512xf32, #tpu.memory_space<vmem>>) attributes {dimension_semantics = [#tpu.dimension_semantics<parallel>, #tpu.dimension_semantics<parallel>, #tpu.dimension_semantics<arbitrary>], iteration_bounds = array<i64: 2, 2, 1>, scalar_prefetch = 0 : i64, scratch_operands = 1 : i64, tpu.core_type = #tpu.core_type<tc>, window_params = [{transform_indices = @transform_0, window_bounds = array<i64: 512, 512>}, {transform_indices = @transform_1, window_bounds = array<i64: 512, 512>}, {transform_indices = @transform_2, window_bounds = array<i64: 512, 512>}]} {
    %c0_i32 = arith.constant 0 : i32
    %0 = arith.cmpi eq, %arg2, %c0_i32 : i32
    %1 = arith.extui %0 : i1 to i32
    %c0_i32_0 = arith.constant 0 : i32
    %2 = arith.cmpi ne, %1, %c0_i32_0 : i32
    scf.if %2 {
      %cst_10 = arith.constant 0.000000e+00 : f32
      %12 = vector.broadcast %cst_10 : f32 to vector<512x512xf32>
      %c0_11 = arith.constant 0 : index
      %c0_12 = arith.constant 0 : index
      %13 = vector.load %arg6[%c0_11, %c0_12] : memref<512x512xf32, #tpu.memory_space<vmem>>, vector<512x512xf32>
      tpu.vector_store %arg6[%c0_11, %c0_12], %12 {strides = array<i32>} : memref<512x512xf32, #tpu.memory_space<vmem>>, vector<512x512xf32>,
    } else {
    }
    %c0 = arith.constant 0 : index
    %c0_1 = arith.constant 0 : index
    %3 = vector.load %arg6[%c0, %c0_1] : memref<512x512xf32, #tpu.memory_space<vmem>>, vector<512x512xf32>
    %c0_2 = arith.constant 0 : index
    %c0_3 = arith.constant 0 : index
    %4 = vector.load %arg3[%c0_2, %c0_3] : memref<512x512xf32, #tpu.memory_space<vmem>>, vector<512x512xf32>
    %c0_4 = arith.constant 0 : index
    %c0_5 = arith.constant 0 : index
    %5 = vector.load %arg4[%c0_4, %c0_5] : memref<512x512xf32, #tpu.memory_space<vmem>>, vector<512x512xf32>
    %cst = arith.constant dense<0.000000e+00> : vector<512x512xf32>
    %6 = tpu.matmul %4, %5, %cst {dimension_numbers = #tpu.dot_dimension_numbers<[1], [0], [0], [1], [0, 0, 1, 1], [], []>} : vector<512x512xf32>, vector<512x512xf32>, vector<512x512xf32> -> vector<512x512xf32>
    %7 = arith.addf %3, %6 : vector<512x512xf32>
    %c0_6 = arith.constant 0 : index
    %c0_7 = arith.constant 0 : index
    %8 = vector.load %arg6[%c0_6, %c0_7] : memref<512x512xf32, #tpu.memory_space<vmem>>, vector<512x512xf32>
    tpu.vector_store %arg6[%c0_6, %c0_7], %7 {strides = array<i32>} : memref<512x512xf32, #tpu.memory_space<vmem>>, vector<512x512xf32>,
    %c0_i32_8 = arith.constant 0 : i32
    %9 = arith.cmpi eq, %arg2, %c0_i32_8 : i32
    %10 = arith.extui %9 : i1 to i32
    %c0_i32_9 = arith.constant 0 : i32
    %11 = arith.cmpi ne, %10, %c0_i32_9 : i32
    scf.if %11 {
      %c0_10 = arith.constant 0 : index
      %c0_11 = arith.constant 0 : index
      %12 = vector.load %arg6[%c0_10, %c0_11] : memref<512x512xf32, #tpu.memory_space<vmem>>, vector<512x512xf32>
      %c0_12 = arith.constant 0 : index
      %c0_13 = arith.constant 0 : index
      %13 = vector.load %arg5[%c0_12, %c0_13] : memref<512x512xf32, #tpu.memory_space<vmem>>, vector<512x512xf32>
      tpu.vector_store %arg5[%c0_12, %c0_13], %12 {strides = array<i32>} : memref<512x512xf32, #tpu.memory_space<vmem>>, vector<512x512xf32>,
    } else {
    }
    return
  }
  func.func @transform_0(%arg0: i32, %arg1: i32, %arg2: i32) -> (i32, i32) {
    %c0_i32 = arith.constant 0 : i32
    return %arg0, %arg2 : i32, i32
  }
  func.func @transform_1(%arg0: i32, %arg1: i32, %arg2: i32) -> (i32, i32) {
    %c0_i32 = arith.constant 0 : i32
    return %arg2, %arg1 : i32, i32
  }
  func.func @transform_2(%arg0: i32, %arg1: i32, %arg2: i32) -> (i32, i32) {
    %c0_i32 = arith.constant 0 : i32
    return %arg0, %arg1 : i32, i32
  }
}

</mosaic_0001>

<llo_original>
// kernel: tpu_custom_call.1
$region0: #{tpu_custom_call.1}
  #allocation0 [shape = 'u32[]', space=smem, size = 0x4, offset = 0x4, fixed_abs, tag = 'smem constant byte address 0x4 - core index']
  #allocation1 [shape = 'u32[144,128]{1,0:T(1,128)}', space=vmem, size = 0x12000, scoped, tag = 'internal scratch']
  #allocation2 [shape = 'f32[512,512]{1,0:T(8,128)}', space=vmem, size = 0x100000, scoped, tag = 'scratch operand']
  %s0 = inlined_call_operand.hbm [shape: f32[1024,512], index: 0, kind: input, shape index: {}]
  %s1 = inlined_call_operand.hbm [shape: f32[512,1024], index: 1, kind: input, shape index: {}]
  %s2 = inlined_call_operand.hbm [shape: f32[1024,1024], index: 2, kind: output, shape index: {}]
  %s3 = sld [smem:[#allocation0]]
  $region57: #{tpu_custom_call.1} parent=0
    _
  %s5 = ssub.s32 1, %s3
  %s6 = scalar_select 0, %s5, %s3
  $region1: #{tpu_custom_call.1} parent=0
    #allocation3 [shape = 'u8[2097152]{0}', space=vmem, size = 0x200000, scoped, tag = 'input window, operand 0']
    #allocation4 [shape = 's32[2]{0}', space=sflag, size = 0x8, scoped, tag = 'scoped memory for tpu_custom_call.1']
    #allocation5 [shape = 's32[2]{0}', space=sflag, size = 0x8, scoped, tag = 'scoped memory for tpu_custom_call.1']
    #allocation6 [shape = 'u8[2097152]{0}', space=vmem, size = 0x200000, scoped, tag = 'input window, operand 1']
    #allocation7 [shape = 's32[2]{0}', space=sflag, size = 0x8, scoped, tag = 'scoped memory for tpu_custom_call.1']
    #allocation8 [shape = 'u8[2097152]{0}', space=vmem, size = 0x200000, scoped, tag = 'output window, operand 0']
    %7 = vsyncpa [#allocation4], 0
    %s8 = scalar_lea.sflag [#allocation4], 1
    %9 = vsyncpa %s8, 0
    %10 = vsyncpa [#allocation7], 0
    %s11 = scalar_lea.sflag [#allocation7], 1
    %12 = vsyncpa %s11, 0
    %13 = vsyncpa [#allocation5], 0
    %s14 = scalar_lea.sflag [#allocation5], 1
    %15 = vsyncpa %s14, 0
    loop: start=0, step=1, limit=6
    $region2: #{tpu_custom_call.1} parent=1 // loop_pre_header
      _
    $region3: #{tpu_custom_call.1} parent=1 // loop_header
      %s17 = sphi 0, %s21
      %p18 = scmp.ge.s32.totalorder %s17, 6
      %s24 = sphi 0, %s43
      %s25 = sphi 0, %s39
      %s26 = sphi 0, %s35
      %s27 = sphi 0, %s24
      %s28 = sphi 0, %s25
      %s29 = sphi 0, %s26
      %s30 = sphi 0, %s27
      %s31 = sphi 0, %s28
      %s32 = sphi 0, %s29
      %s48 = sphi 0, %s50
      %s51 = sphi 0, %s48
      %s52 = sphi 0, %s51
      %s68 = sphi 0, %s52
      %s76 = sphi 0, %s78
      %s79 = sphi 0, %s76
      %s80 = sphi 0, %s79
      %s96 = sphi 0, %s80
      %s104 = sphi 0, %s106
      %s107 = sphi 0, %s104
      %s108 = sphi 0, %s107
      %s124 = sphi 0, %s108
    $region4: #{tpu_custom_call.1} parent=1 // loop_header_branch
      %20 = sbr.rel (%p18) target = $region8
    $region5: #{tpu_custom_call.1} parent=1 // loop_body
      %s22 = ssub.s32 %s17, 1
      %s23 = ssub.s32 %s17, 2
      %s33 = sadd.s32 1, %s26
      %p34 = scmp.ge.s32.totalorder %s33, 1
      %s35 = scalar_select %p34, 0, %s33
      %s36 = sadd.s32 1, %s25
      %s37 = scalar_select %p34, %s36, %s25
      %p38 = scmp.ge.s32.totalorder %s37, 2
      %s39 = scalar_select %p38, 0, %s37
      %s40 = sadd.s32 1, %s24
      %s41 = scalar_select %p38, %s40, %s24
      %p42 = scmp.ge.s32.totalorder %s41, 2
      %s43 = scalar_select %p42, 0, %s41
      %s44 = ssub.s32 %s24, %s43
      %s45 = ssub.s32 %s26, %s35
      %s46 = sor.u32 %s44, %s45
      %p47 = scmp.eq.s32.totalorder %s46, 0
      %s49 = sadd.s32 %s48, 1
      %s50 = scalar_select %p47, %s48, %s49
      %p53 = pneg %p47
      %p54 = scmp.eq.s32.totalorder %s17, 3
      %p55 = por %p53, %p54
      %p56 = scmp.ne.s32.totalorder %s48, %s51
      %p57 = scmp.eq.s32.totalorder %s17, 0
      %p58 = por %p56, %p57
      %p59 = scmp.ne.s32.totalorder %s48, %s51
      %p60 = scmp.eq.s32.totalorder %s22, 3
      %p61 = por %p59, %p60
      %p62 = scmp.ne.s32.totalorder %s51, %s52
      %p63 = scmp.eq.s32.totalorder %s22, 0
      %p64 = por %p62, %p63
      %p65 = scmp.ne.s32.totalorder %s51, %s52
      %p66 = scmp.eq.s32.totalorder %s23, 3
      %p67 = por %p65, %p66
      %p69 = scmp.ne.s32.totalorder %s52, %s68
      %p70 = scmp.eq.s32.totalorder %s23, 0
      %p71 = por %p69, %p70
      %s72 = ssub.s32 %s26, %s35
      %s73 = ssub.s32 %s25, %s39
      %s74 = sor.u32 %s72, %s73
      %p75 = scmp.eq.s32.totalorder %s74, 0
      %s77 = sadd.s32 %s76, 1
      %s78 = scalar_select %p75, %s76, %s77
      %p81 = pneg %p75
      %p82 = scmp.eq.s32.totalorder %s17, 3
      %p83 = por %p81, %p82
      %p84 = scmp.ne.s32.totalorder %s76, %s79
      %p85 = scmp.eq.s32.totalorder %s17, 0
      %p86 = por %p84, %p85
      %p87 = scmp.ne.s32.totalorder %s76, %s79
      %p88 = scmp.eq.s32.totalorder %s22, 3
      %p89 = por %p87, %p88
      %p90 = scmp.ne.s32.totalorder %s79, %s80
      %p91 = scmp.eq.s32.totalorder %s22, 0
      %p92 = por %p90, %p91
      %p93 = scmp.ne.s32.totalorder %s79, %s80
      %p94 = scmp.eq.s32.totalorder %s23, 3
      %p95 = por %p93, %p94
      %p97 = scmp.ne.s32.totalorder %s80, %s96
      %p98 = scmp.eq.s32.totalorder %s23, 0
      %p99 = por %p97, %p98
      %s100 = ssub.s32 %s24, %s43
      %s101 = ssub.s32 %s25, %s39
      %s102 = sor.u32 %s100, %s101
      %p103 = scmp.eq.s32.totalorder %s102, 0
      %s105 = sadd.s32 %s104, 1
      %s106 = scalar_select %p103, %s104, %s105
      %p109 = pneg %p103
      %p110 = scmp.eq.s32.totalorder %s17, 3
      %p111 = por %p109, %p110
      %p112 = scmp.ne.s32.totalorder %s104, %s107
      %p113 = scmp.eq.s32.totalorder %s17, 0
      %p114 = por %p112, %p113
      %p115 = scmp.ne.s32.totalorder %s104, %s107
      %p116 = scmp.eq.s32.totalorder %s22, 3
      %p117 = por %p115, %p116
      %p118 = scmp.ne.s32.totalorder %s107, %s108
      %p119 = scmp.eq.s32.totalorder %s22, 0
      %p120 = por %p118, %p119
      %p121 = scmp.ne.s32.totalorder %s107, %s108
      %p122 = scmp.eq.s32.totalorder %s23, 3
      %p123 = por %p121, %p122
      %p125 = scmp.ne.s32.totalorder %s108, %s124
      %p126 = scmp.eq.s32.totalorder %s23, 0
      %p127 = por %p125, %p126
      %p128 = scmp.le.s32.totalorder 1, %s17
      %p129 = scmp.lt.s32.totalorder %s17, 5
      %p130 = pnand %p128, %p129
      %p131 = pneg %p130
      // Predicated region
      $region9: #{tpu_custom_call.1} parent=5 // pred_check
        _
      $region10: #{tpu_custom_call.1} parent=5 // pred_check_branch
        %133 = sbr.rel (%p130) target = $region12
      $region11: #{tpu_custom_call.1} parent=5 // pred_region
        %s134 = ssub.s32 %s17, 1
      $region12: #{tpu_custom_call.1} parent=5 // pred_fallthru
        _
      %p135 = scmp.lt.s32.totalorder %s17, 4
      // Predicated region
      $region13: #{tpu_custom_call.1} parent=5 // pred_check
        %p136 = pneg %p135
      $region14: #{tpu_custom_call.1} parent=5 // pred_check_branch
        %138 = sbr.rel (%p136) target = $region16
      $region15: #{tpu_custom_call.1} parent=5 // pred_region
        // Predicated region
        $region17: #{tpu_custom_call.1} parent=15 // pred_check
          %p139 = pneg %p58
        $region18: #{tpu_custom_call.1} parent=15 // pred_check_branch
          %141 = sbr.rel (%p139) target = $region20
        $region19: #{tpu_custom_call.1} parent=15 // pred_region
          %s142 = sand.u32 %s48, 1
          %s143 = scalar_lea.sflag [#allocation4], %s142
          %s144 = sand.u32 %s48, 1
          %s145 = smul.addr %s144, 2048
          %s146 = scalar_lea.vmem [#allocation3], %s145
          %s147 = smul.u32 64, %s24
          %s148 = smul.u32 4, %s26
          %s150 = ssub.s32 32768, 32768
          %151 = vsyncadd %s143, %s150
          %s152 = smul.addr %s147, 4
          %s153 = sadd.s32 %s148, %s152
          %s154 = smul.addr %s153, 128
          %s155 = scalar_lea.hbm %s0, %s154
          %s156 = sshll.u32 %s146, 4
          %s157 = int_to_ptr.vmem [resolvable:$true] %s156
          %162 = dma.hbm_to_vmem [thread:$0]  %s155, 32768, %s157, %s143, 512, 512, 32
        $region20: #{tpu_custom_call.1} parent=15 // pred_fallthru
          _
        // Predicated region
        $region21: #{tpu_custom_call.1} parent=15 // pred_check
          %p163 = pneg %p86
        $region22: #{tpu_custom_call.1} parent=15 // pred_check_branch
          %165 = sbr.rel (%p163) target = $region24
        $region23: #{tpu_custom_call.1} parent=15 // pred_region
          %s166 = sand.u32 %s76, 1
          %s167 = scalar_lea.sflag [#allocation7], %s166
          %s168 = sand.u32 %s76, 1
          %s169 = smul.addr %s168, 2048
          %s170 = scalar_lea.vmem [#allocation6], %s169
          %s171 = smul.u32 64, %s26
          %s172 = smul.u32 4, %s25
          %s174 = ssub.s32 32768, 32768
          %175 = vsyncadd %s167, %s174
          %s176 = smul.addr %s171, 8
          %s177 = sadd.s32 %s172, %s176
          %s178 = smul.addr %s177, 128
          %s179 = scalar_lea.hbm %s1, %s178
          %s180 = sshll.u32 %s170, 4
          %s181 = int_to_ptr.vmem [resolvable:$true] %s180
          %186 = dma.hbm_to_vmem [thread:$0]  %s179, 32768, %s181, %s167, 1024, 512, 32
        $region24: #{tpu_custom_call.1} parent=15 // pred_fallthru
          _
      $region16: #{tpu_custom_call.1} parent=5 // pred_fallthru
        _
      %p187 = scmp.le.s32.totalorder 1, %s17
      %p188 = scmp.lt.s32.totalorder %s17, 5
      %p189 = pnand %p187, %p188
      %p190 = pneg %p189
      // Predicated region
      $region25: #{tpu_custom_call.1} parent=5 // pred_check
        _
      $region26: #{tpu_custom_call.1} parent=5 // pred_check_branch
        %192 = sbr.rel (%p189) target = $region28
      $region27: #{tpu_custom_call.1} parent=5 // pred_region
        %s193 = ssub.s32 %s17, 1
        %s194 = sand.u32 %s51, 1
        %s195 = scalar_lea.sflag [#allocation4], %s194
        %s196 = sand.u32 %s51, 1
        %s197 = smul.addr %s196, 2048
        %s198 = scalar_lea.vmem [#allocation3], %s197
        // Predicated region
        $region29: #{tpu_custom_call.1} parent=27 // pred_check
          %p199 = pneg %p64
        $region30: #{tpu_custom_call.1} parent=27 // pred_check_branch
          %201 = sbr.rel (%p199) target = $region32
        $region31: #{tpu_custom_call.1} parent=27 // pred_region
          %202 = dma.done %s195, 32768
        $region32: #{tpu_custom_call.1} parent=27 // pred_fallthru
          _
        %s203 = sand.u32 %s79, 1
        %s204 = scalar_lea.sflag [#allocation7], %s203
        %s205 = sand.u32 %s79, 1
        %s206 = smul.addr %s205, 2048
        %s207 = scalar_lea.vmem [#allocation6], %s206
        // Predicated region
        $region33: #{tpu_custom_call.1} parent=27 // pred_check
          %p208 = pneg %p92
        $region34: #{tpu_custom_call.1} parent=27 // pred_check_branch
          %210 = sbr.rel (%p208) target = $region36
        $region35: #{tpu_custom_call.1} parent=27 // pred_region
          %211 = dma.done %s204, 32768
        $region36: #{tpu_custom_call.1} parent=27 // pred_fallthru
          _
        %s212 = sand.u32 %s51, 1
        %s213 = scalar_lea.sflag [#allocation4], %s212
        %s214 = sand.u32 %s51, 1
        %s215 = smul.addr %s214, 2048
        %s216 = scalar_lea.vmem [#allocation3], %s215
        %p217 = pneg %p64
        %p218 = pneg %p61
        %s219 = sand.u32 %s79, 1
        %s220 = scalar_lea.sflag [#allocation7], %s219
        %s221 = sand.u32 %s79, 1
        %s222 = smul.addr %s221, 2048
        %s223 = scalar_lea.vmem [#allocation6], %s222
        %p224 = pneg %p92
        %p225 = pneg %p89
        %p226 = pneg %p120
        %p227 = pneg %p117
        %s228 = sand.u32 %s107, 1
        %s229 = scalar_lea.sflag [#allocation5], %s228
        %s230 = sand.u32 %s107, 1
        %s231 = smul.addr %s230, 2048
        %s232 = scalar_lea.vmem [#allocation8], %s231
        %s233 = smul.u32 64, %s27
        %s234 = smul.u32 4, %s29
        %s235 = smul.u32 64, %s29
        %s236 = smul.u32 4, %s28
        %s237 = smul.u32 64, %s27
        %s238 = smul.u32 4, %s28
        %p239 = scmp.eq.s32.totalorder %s29, 0
        // Predicated region
        $region37: #{tpu_custom_call.1} parent=27 // pred_check
          %p240 = pneg %p239
        $region38: #{tpu_custom_call.1} parent=27 // pred_check_branch
          %242 = sbr.rel (%p240) target = $region40
        $region39: #{tpu_custom_call.1} parent=27 // pred_region
          %243 = vst [vmem:[#allocation2] sm:$0xff] 0.0
          %244 = vst [vmem:[#allocation2 + $0x8] sm:$0xff] 0.0
          %245 = vst [vmem:[#allocation2 + $0x10] sm:$0xff] 0.0
          %246 = vst [vmem:[#allocation2 + $0x18] sm:$0xff] 0.0
          %247 = vst [vmem:[#allocation2 + $0x20] sm:$0xff] 0.0
          %248 = vst [vmem:[#allocation2 + $0x28] sm:$0xff] 0.0
          %249 = vst [vmem:[#allocation2 + $0x30] sm:$0xff] 0.0
          %250 = vst [vmem:[#allocation2 + $0x38] sm:$0xff] 0.0
          %251 = vst [vmem:[#allocation2 + $0x40] sm:$0xff] 0.0
          %252 = vst [vmem:[#allocation2 + $0x48] sm:$0xff] 0.0
          %253 = vst [vmem:[#allocation2 + $0x50] sm:$0xff] 0.0
          %254 = vst [vmem:[#allocation2 + $0x58] sm:$0xff] 0.0
          %255 = vst [vmem:[#allocation2 + $0x60] sm:$0xff] 0.0
          %256 = vst [vmem:[#allocation2 + $0x68] sm:$0xff] 0.0
          %257 = vst [vmem:[#allocation2 + $0x70] sm:$0xff] 0.0
          %258 = vst [vmem:[#allocation2 + $0x78] sm:$0xff] 0.0
          %259 = vst [vmem:[#allocation2 + $0x80] sm:$0xff] 0.0
          %260 = vst [vmem:[#allocation2 + $0x88] sm:$0xff] 0.0
          %261 = vst [vmem:[#allocation2 + $0x90] sm:$0xff] 0.0
          %262 = vst [vmem:[#allocation2 + $0x98] sm:$0xff] 0.0
          %263 = vst [vmem:[#allocation2 + $0xa0] sm:$0xff] 0.0
          %264 = vst [vmem:[#allocation2 + $0xa8] sm:$0xff] 0.0
          %265 = vst [vmem:[#allocation2 + $0xb0] sm:$0xff] 0.0
          %266 = vst [vmem:[#allocation2 + $0xb8] sm:$0xff] 0.0
          %267 = vst [vmem:[#allocation2 + $0xc0] sm:$0xff] 0.0
          %268 = vst [vmem:[#allocation2 + $0xc8] sm:$0xff] 0.0
          %269 = vst [vmem:[#allocation2 + $0xd0] sm:$0xff] 0.0
          %270 = vst [vmem:[#allocation2 + $0xd8] sm:$0xff] 0.0
          %271 = vst [vmem:[#allocation2 + $0xe0] sm:$0xff] 0.0
          %272 = vst [vmem:[#allocation2 + $0xe8] sm:$0xff] 0.0
          %273 = vst [vmem:[#allocation2 + $0xf0] sm:$0xff] 0.0
          %274 = vst [vmem:[#allocation2 + $0xf8] sm:$0xff] 0.0
          %275 = vst [vmem:[#allocation2 + $0x100] sm:$0xff] 0.0
          %276 = vst [vmem:[#allocation2 + $0x108] sm:$0xff] 0.0
          %277 = vst [vmem:[#allocation2 + $0x110] sm:$0xff] 0.0
          %278 = vst [vmem:[#allocation2 + $0x118] sm:$0xff] 0.0
          %279 = vst [vmem:[#allocation2 + $0x120] sm:$0xff] 0.0
          %280 = vst [vmem:[#allocation2 + $0x128] sm:$0xff] 0.0
          %281 = vst [vmem:[#allocation2 + $0x130] sm:$0xff] 0.0
          %282 = vst [vmem:[#allocation2 + $0x138] sm:$0xff] 0.0
          %283 = vst [vmem:[#allocation2 + $0x140] sm:$0xff] 0.0
          %284 = vst [vmem:[#allocation2 + $0x148] sm:$0xff] 0.0
          %285 = vst [vmem:[#allocation2 + $0x150] sm:$0xff] 0.0
          %286 = vst [vmem:[#allocation2 + $0x158] sm:$0xff] 0.0
          %287 = vst [vmem:[#allocation2 + $0x160] sm:$0xff] 0.0
          %288 = vst [vmem:[#allocation2 + $0x168] sm:$0xff] 0.0
          %289 = vst [vmem:[#allocation2 + $0x170] sm:$0xff] 0.0
          %290 = vst [vmem:[#allocation2 + $0x178] sm:$0xff] 0.0
          %291 = vst [vmem:[#allocation2 + $0x180] sm:$0xff] 0.0
          %292 = vst [vmem:[#allocation2 + $0x188] sm:$0xff] 0.0
          %293 = vst [vmem:[#allocation2 + $0x190] sm:$0xff] 0.0
          %294 = vst [vmem:[#allocation2 + $0x198] sm:$0xff] 0.0
          %295 = vst [vmem:[#allocation2 + $0x1a0] sm:$0xff] 0.0
          %296 = vst [vmem:[#allocation2 + $0x1a8] sm:$0xff] 0.0
          %297 = vst [vmem:[#allocation2 + $0x1b0] sm:$0xff] 0.0
          %298 = vst [vmem:[#allocation2 + $0x1b8] sm:$0xff] 0.0
          %299 = vst [vmem:[#allocation2 + $0x1c0] sm:$0xff] 0.0
          %300 = vst [vmem:[#allocation2 + $0x1c8] sm:$0xff] 0.0
          %301 = vst [vmem:[#allocation2 + $0x1d0] sm:$0xff] 0.0
          %302 = vst [vmem:[#allocation2 + $0x1d8] sm:$0xff] 0.0
          %303 = vst [vmem:[#allocation2 + $0x1e0] sm:$0xff] 0.0
          %304 = vst [vmem:[#allocation2 + $0x1e8] sm:$0xff] 0.0
          %305 = vst [vmem:[#allocation2 + $0x1f0] sm:$0xff] 0.0
          %306 = vst [vmem:[#allocation2 + $0x1f8] sm:$0xff] 0.0
          %307 = vst [vmem:[#allocation2 + $0x200] sm:$0xff] 0.0
          %308 = vst [vmem:[#allocation2 + $0x208] sm:$0xff] 0.0
          %309 = vst [vmem:[#allocation2 + $0x210] sm:$0xff] 0.0
          %310 = vst [vmem:[#allocation2 + $0x218] sm:$0xff] 0.0
          %311 = vst [vmem:[#allocation2 + $0x220] sm:$0xff] 0.0
          %312 = vst [vmem:[#allocation2 + $0x228] sm:$0xff] 0.0
          %313 = vst [vmem:[#allocation2 + $0x230] sm:$0xff] 0.0
          %314 = vst [vmem:[#allocation2 + $0x238] sm:$0xff] 0.0
          %315 = vst [vmem:[#allocation2 + $0x240] sm:$0xff] 0.0
          %316 = vst [vmem:[#allocation2 + $0x248] sm:$0xff] 0.0
          %317 = vst [vmem:[#allocation2 + $0x250] sm:$0xff] 0.0
          %318 = vst [vmem:[#allocation2 + $0x258] sm:$0xff] 0.0
          %319 = vst [vmem:[#allocation2 + $0x260] sm:$0xff] 0.0
          %320 = vst [vmem:[#allocation2 + $0x268] sm:$0xff] 0.0
          %321 = vst [vmem:[#allocation2 + $0x270] sm:$0xff] 0.0
          %322 = vst [vmem:[#allocation2 + $0x278] sm:$0xff] 0.0
          %323 = vst [vmem:[#allocation2 + $0x280] sm:$0xff] 0.0
          %324 = vst [vmem:[#allocation2 + $0x288] sm:$0xff] 0.0
          %325 = vst [vmem:[#allocation2 + $0x290] sm:$0xff] 0.0
          %326 = vst [vmem:[#allocation2 + $0x298] sm:$0xff] 0.0
          %327 = vst [vmem:[#allocation2 + $0x2a0] sm:$0xff] 0.0
          %328 = vst [vmem:[#allocation2 + $0x2a8] sm:$0xff] 0.0
          %329 = vst [vmem:[#allocation2 + $0x2b0] sm:$0xff] 0.0
          %330 = vst [vmem:[#allocation2 + $0x2b8] sm:$0xff] 0.0
          %331 = vst [vmem:[#allocation2 + $0x2c0] sm:$0xff] 0.0
          %332 = vst [vmem:[#allocation2 + $0x2c8] sm:$0xff] 0.0
          %333 = vst [vmem:[#allocation2 + $0x2d0] sm:$0xff] 0.0
          %334 = vst [vmem:[#allocation2 + $0x2d8] sm:$0xff] 0.0
          %335 = vst [vmem:[#allocation2 + $0x2e0] sm:$0xff] 0.0
          %336 = vst [vmem:[#allocation2 + $0x2e8] sm:$0xff] 0.0
          %337 = vst [vmem:[#allocation2 + $0x2f0] sm:$0xff] 0.0
          %338 = vst [vmem:[#allocation2 + $0x2f8] sm:$0xff] 0.0
          %339 = vst [vmem:[#allocation2 + $0x300] sm:$0xff] 0.0
          %340 = vst [vmem:[#allocation2 + $0x308] sm:$0xff] 0.0
          %341 = vst [vmem:[#allocation2 + $0x310] sm:$0xff] 0.0
          %342 = vst [vmem:[#allocation2 + $0x318] sm:$0xff] 0.0
          %343 = vst [vmem:[#allocation2 + $0x320] sm:$0xff] 0.0
          %344 = vst [vmem:[#allocation2 + $0x328] sm:$0xff] 0.0
          %345 = vst [vmem:[#allocation2 + $0x330] sm:$0xff] 0.0
          %346 = vst [vmem:[#allocation2 + $0x338] sm:$0xff] 0.0
          %347 = vst [vmem:[#allocation2 + $0x340] sm:$0xff] 0.0
          %348 = vst [vmem:[#allocation2 + $0x348] sm:$0xff] 0.0
          %349 = vst [vmem:[#allocation2 + $0x350] sm:$0xff] 0.0
          %350 = vst [vmem:[#allocation2 + $0x358] sm:$0xff] 0.0
          %351 = vst [vmem:[#allocation2 + $0x360] sm:$0xff] 0.0
          %352 = vst [vmem:[#allocation2 + $0x368] sm:$0xff] 0.0
          %353 = vst [vmem:[#allocation2 + $0x370] sm:$0xff] 0.0
          %354 = vst [vmem:[#allocation2 + $0x378] sm:$0xff] 0.0
          %355 = vst [vmem:[#allocation2 + $0x380] sm:$0xff] 0.0
          %356 = vst [vmem:[#allocation2 + $0x388] sm:$0xff] 0.0
          %357 = vst [vmem:[#allocation2 + $0x390] sm:$0xff] 0.0
          %358 = vst [vmem:[#allocation2 + $0x398] sm:$0xff] 0.0
          %359 = vst [vmem:[#allocation2 + $0x3a0] sm:$0xff] 0.0
          %360 = vst [vmem:[#allocation2 + $0x3a8] sm:$0xff] 0.0
          %361 = vst [vmem:[#allocation2 + $0x3b0] sm:$0xff] 0.0
          %362 = vst [vmem:[#allocation2 + $0x3b8] sm:$0xff] 0.0
          %363 = vst [vmem:[#allocation2 + $0x3c0] sm:$0xff] 0.0
          %364 = vst [vmem:[#allocation2 + $0x3c8] sm:$0xff] 0.0
          %365 = vst [vmem:[#allocation2 + $0x3d0] sm:$0xff] 0.0
          %366 = vst [vmem:[#allocation2 + $0x3d8] sm:$0xff] 0.0
          %367 = vst [vmem:[#allocation2 + $0x3e0] sm:$0xff] 0.0
          %368 = vst [vmem:[#allocation2 + $0x3e8] sm:$0xff] 0.0
          %369 = vst [vmem:[#allocation2 + $0x3f0] sm:$0xff] 0.0
          %370 = vst [vmem:[#allocation2 + $0x3f8] sm:$0xff] 0.0
          %371 = vst [vmem:[#allocation2 + $0x400] sm:$0xff] 0.0
          %372 = vst [vmem:[#allocation2 + $0x408] sm:$0xff] 0.0
          %373 = vst [vmem:[#allocation2 + $0x410] sm:$0xff] 0.0
          %374 = vst [vmem:[#allocation2 + $0x418] sm:$0xff] 0.0
          %375 = vst [vmem:[#allocation2 + $0x420] sm:$0xff] 0.0
          %376 = vst [vmem:[#allocation2 + $0x428] sm:$0xff] 0.0
          %377 = vst [vmem:[#allocation2 + $0x430] sm:$0xff] 0.0
          %378 = vst [vmem:[#allocation2 + $0x438] sm:$0xff] 0.0
          %379 = vst [vmem:[#allocation2 + $0x440] sm:$0xff] 0.0
          %380 = vst [vmem:[#allocation2 + $0x448] sm:$0xff] 0.0
          %381 = vst [vmem:[#allocation2 + $0x450] sm:$0xff] 0.0
          %382 = vst [vmem:[#allocation2 + $0x458] sm:$0xff] 0.0
          %383 = vst [vmem:[#allocation2 + $0x460] sm:$0xff] 0.0
          %384 = vst [vmem:[#allocation2 + $0x468] sm:$0xff] 0.0
          %385 = vst [vmem:[#allocation2 + $0x470] sm:$0xff] 0.0
          %386 = vst [vmem:[#allocation2 + $0x478] sm:$0xff] 0.0
          %387 = vst [vmem:[#allocation2 + $0x480] sm:$0xff] 0.0
          %388 = vst [vmem:[#allocation2 + $0x488] sm:$0xff] 0.0
          %389 = vst [vmem:[#allocation2 + $0x490] sm:$0xff] 0.0
          %390 = vst [vmem:[#allocation2 + $0x498] sm:$0xff] 0.0
          %391 = vst [vmem:[#allocation2 + $0x4a0] sm:$0xff] 0.0
          %392 = vst [vmem:[#allocation2 + $0x4a8] sm:$0xff] 0.0
          %393 = vst [vmem:[#allocation2 + $0x4b0] sm:$0xff] 0.0
          %394 = vst [vmem:[#allocation2 + $0x4b8] sm:$0xff] 0.0
          %395 = vst [vmem:[#allocation2 + $0x4c0] sm:$0xff] 0.0
          %396 = vst [vmem:[#allocation2 + $0x4c8] sm:$0xff] 0.0
          %397 = vst [vmem:[#allocation2 + $0x4d0] sm:$0xff] 0.0
          %398 = vst [vmem:[#allocation2 + $0x4d8] sm:$0xff] 0.0
          %399 = vst [vmem:[#allocation2 + $0x4e0] sm:$0xff] 0.0
          %400 = vst [vmem:[#allocation2 + $0x4e8] sm:$0xff] 0.0
          %401 = vst [vmem:[#allocation2 + $0x4f0] sm:$0xff] 0.0
          %402 = vst [vmem:[#allocation2 + $0x4f8] sm:$0xff] 0.0
          %403 = vst [vmem:[#allocation2 + $0x500] sm:$0xff] 0.0
          %404 = vst [vmem:[#allocation2 + $0x508] sm:$0xff] 0.0
          %405 = vst [vmem:[#allocation2 + $0x510] sm:$0xff] 0.0
          %406 = vst [vmem:[#allocation2 + $0x518] sm:$0xff] 0.0
          %407 = vst [vmem:[#allocation2 + $0x520] sm:$0xff] 0.0
          %408 = vst [vmem:[#allocation2 + $0x528] sm:$0xff] 0.0
          %409 = vst [vmem:[#allocation2 + $0x530] sm:$0xff] 0.0
          %410 = vst [vmem:[#allocation2 + $0x538] sm:$0xff] 0.0
          %411 = vst [vmem:[#allocation2 + $0x540] sm:$0xff] 0.0
          %412 = vst [vmem:[#allocation2 + $0x548] sm:$0xff] 0.0
          %413 = vst [vmem:[#allocation2 + $0x550] sm:$0xff] 0.0
          %414 = vst [vmem:[#allocation2 + $0x558] sm:$0xff] 0.0
          %415 = vst [vmem:[#allocation2 + $0x560] sm:$0xff] 0.0
          %416 = vst [vmem:[#allocation2 + $0x568] sm:$0xff] 0.0
          %417 = vst [vmem:[#allocation2 + $0x570] sm:$0xff] 0.0
          %418 = vst [vmem:[#allocation2 + $0x578] sm:$0xff] 0.0
          %419 = vst [vmem:[#allocation2 + $0x580] sm:$0xff] 0.0
          %420 = vst [vmem:[#allocation2 + $0x588] sm:$0xff] 0.0
          %421 = vst [vmem:[#allocation2 + $0x590] sm:$0xff] 0.0
          %422 = vst [vmem:[#allocation2 + $0x598] sm:$0xff] 0.0
          %423 = vst [vmem:[#allocation2 + $0x5a0] sm:$0xff] 0.0
          %424 = vst [vmem:[#allocation2 + $0x5a8] sm:$0xff] 0.0
          %425 = vst [vmem:[#allocation2 + $0x5b0] sm:$0xff] 0.0
          %426 = vst [vmem:[#allocation2 + $0x5b8] sm:$0xff] 0.0
          %427 = vst [vmem:[#allocation2 + $0x5c0] sm:$0xff] 0.0
          %428 = vst [vmem:[#allocation2 + $0x5c8] sm:$0xff] 0.0
          %429 = vst [vmem:[#allocation2 + $0x5d0] sm:$0xff] 0.0
          %430 = vst [vmem:[#allocation2 + $0x5d8] sm:$0xff] 0.0
          %431 = vst [vmem:[#allocation2 + $0x5e0] sm:$0xff] 0.0
          %432 = vst [vmem:[#allocation2 + $0x5e8] sm:$0xff] 0.0
          %433 = vst [vmem:[#allocation2 + $0x5f0] sm:$0xff] 0.0
          %434 = vst [vmem:[#allocation2 + $0x5f8] sm:$0xff] 0.0
          %435 = vst [vmem:[#allocation2 + $0x600] sm:$0xff] 0.0
          %436 = vst [vmem:[#allocation2 + $0x608] sm:$0xff] 0.0
          %437 = vst [vmem:[#allocation2 + $0x610] sm:$0xff] 0.0
          %438 = vst [vmem:[#allocation2 + $0x618] sm:$0xff] 0.0
          %439 = vst [vmem:[#allocation2 + $0x620] sm:$0xff] 0.0
          %440 = vst [vmem:[#allocation2 + $0x628] sm:$0xff] 0.0
          %441 = vst [vmem:[#allocation2 + $0x630] sm:$0xff] 0.0
          %442 = vst [vmem:[#allocation2 + $0x638] sm:$0xff] 0.0
          %443 = vst [vmem:[#allocation2 + $0x640] sm:$0xff] 0.0
          %444 = vst [vmem:[#allocation2 + $0x648] sm:$0xff] 0.0
          %445 = vst [vmem:[#allocation2 + $0x650] sm:$0xff] 0.0
          %446 = vst [vmem:[#allocation2 + $0x658] sm:$0xff] 0.0
          %447 = vst [vmem:[#allocation2 + $0x660] sm:$0xff] 0.0
          %448 = vst [vmem:[#allocation2 + $0x668] sm:$0xff] 0.0
          %449 = vst [vmem:[#allocation2 + $0x670] sm:$0xff] 0.0
          %450 = vst [vmem:[#allocation2 + $0x678] sm:$0xff] 0.0
          %451 = vst [vmem:[#allocation2 + $0x680] sm:$0xff] 0.0
          %452 = vst [vmem:[#allocation2 + $0x688] sm:$0xff] 0.0
          %453 = vst [vmem:[#allocation2 + $0x690] sm:$0xff] 0.0
          %454 = vst [vmem:[#allocation2 + $0x698] sm:$0xff] 0.0
          %455 = vst [vmem:[#allocation2 + $0x6a0] sm:$0xff] 0.0
          %456 = vst [vmem:[#allocation2 + $0x6a8] sm:$0xff] 0.0
          %457 = vst [vmem:[#allocation2 + $0x6b0] sm:$0xff] 0.0
          %458 = vst [vmem:[#allocation2 + $0x6b8] sm:$0xff] 0.0
          %459 = vst [vmem:[#allocation2 + $0x6c0] sm:$0xff] 0.0
          %460 = vst [vmem:[#allocation2 + $0x6c8] sm:$0xff] 0.0
          %461 = vst [vmem:[#allocation2 + $0x6d0] sm:$0xff] 0.0
          %462 = vst [vmem:[#allocation2 + $0x6d8] sm:$0xff] 0.0
          %463 = vst [vmem:[#allocation2 + $0x6e0] sm:$0xff] 0.0
          %464 = vst [vmem:[#allocation2 + $0x6e8] sm:$0xff] 0.0
          %465 = vst [vmem:[#allocation2 + $0x6f0] sm:$0xff] 0.0
          %466 = vst [vmem:[#allocation2 + $0x6f8] sm:$0xff] 0.0
          %467 = vst [vmem:[#allocation2 + $0x700] sm:$0xff] 0.0
          %468 = vst [vmem:[#allocation2 + $0x708] sm:$0xff] 0.0
          %469 = vst [vmem:[#allocation2 + $0x710] sm:$0xff] 0.0
          %470 = vst [vmem:[#allocation2 + $0x718] sm:$0xff] 0.0
          %471 = vst [vmem:[#allocation2 + $0x720] sm:$0xff] 0.0
          %472 = vst [vmem:[#allocation2 + $0x728] sm:$0xff] 0.0
          %473 = vst [vmem:[#allocation2 + $0x730] sm:$0xff] 0.0
          %474 = vst [vmem:[#allocation2 + $0x738] sm:$0xff] 0.0
          %475 = vst [vmem:[#allocation2 + $0x740] sm:$0xff] 0.0
          %476 = vst [vmem:[#allocation2 + $0x748] sm:$0xff] 0.0
          %477 = vst [vmem:[#allocation2 + $0x750] sm:$0xff] 0.0
          %478 = vst [vmem:[#allocation2 + $0x758] sm:$0xff] 0.0
          %479 = vst [vmem:[#allocation2 + $0x760] sm:$0xff] 0.0
          %480 = vst [vmem:[#allocation2 + $0x768] sm:$0xff] 0.0
          %481 = vst [vmem:[#allocation2 + $0x770] sm:$0xff] 0.0
          %482 = vst [vmem:[#allocation2 + $0x778] sm:$0xff] 0.0
          %483 = vst [vmem:[#allocation2 + $0x780] sm:$0xff] 0.0
          %484 = vst [vmem:[#allocation2 + $0x788] sm:$0xff] 0.0
          %485 = vst [vmem:[#allocation2 + $0x790] sm:$0xff] 0.0
          %486 = vst [vmem:[#allocation2 + $0x798] sm:$0xff] 0.0
          %487 = vst [vmem:[#allocation2 + $0x7a0] sm:$0xff] 0.0
          %488 = vst [vmem:[#allocation2 + $0x7a8] sm:$0xff] 0.0
          %489 = vst [vmem:[#allocation2 + $0x7b0] sm:$0xff] 0.0
          %490 = vst [vmem:[#allocation2 + $0x7b8] sm:$0xff] 0.0
          %491 = vst [vmem:[#allocation2 + $0x7c0] sm:$0xff] 0.0
          %492 = vst [vmem:[#allocation2 + $0x7c8] sm:$0xff] 0.0
          %493 = vst [vmem:[#allocation2 + $0x7d0] sm:$0xff] 0.0
          %494 = vst [vmem:[#allocation2 + $0x7d8] sm:$0xff] 0.0
          %495 = vst [vmem:[#allocation2 + $0x7e0] sm:$0xff] 0.0
          %496 = vst [vmem:[#allocation2 + $0x7e8] sm:$0xff] 0.0
          %497 = vst [vmem:[#allocation2 + $0x7f0] sm:$0xff] 0.0
          %498 = vst [vmem:[#allocation2 + $0x7f8] sm:$0xff] 0.0
        $region40: #{tpu_custom_call.1} parent=27 // pred_fallthru
          _
        %v499 = vld [vmem:[#allocation2] sm:$0xff]
        %v500 = vld [vmem:[#allocation2 + $0x8] sm:$0xff]
        %v501 = vld [vmem:[#allocation2 + $0x10] sm:$0xff]
        %v502 = vld [vmem:[#allocation2 + $0x18] sm:$0xff]
        %v503 = vld [vmem:[#allocation2 + $0x20] sm:$0xff]
        %v504 = vld [vmem:[#allocation2 + $0x28] sm:$0xff]
        %v505 = vld [vmem:[#allocation2 + $0x30] sm:$0xff]
        %v506 = vld [vmem:[#allocation2 + $0x38] sm:$0xff]
        %v507 = vld [vmem:[#allocation2 + $0x40] sm:$0xff]
        %v508 = vld [vmem:[#allocation2 + $0x48] sm:$0xff]
        %v509 = vld [vmem:[#allocation2 + $0x50] sm:$0xff]
        %v510 = vld [vmem:[#allocation2 + $0x58] sm:$0xff]
        %v511 = vld [vmem:[#allocation2 + $0x60] sm:$0xff]
        %v512 = vld [vmem:[#allocation2 + $0x68] sm:$0xff]
        %v513 = vld [vmem:[#allocation2 + $0x70] sm:$0xff]
        %v514 = vld [vmem:[#allocation2 + $0x78] sm:$0xff]
        %v515 = vld [vmem:[#allocation2 + $0x80] sm:$0xff]
        %v516 = vld [vmem:[#allocation2 + $0x88] sm:$0xff]
        %v517 = vld [vmem:[#allocation2 + $0x90] sm:$0xff]
        %v518 = vld [vmem:[#allocation2 + $0x98] sm:$0xff]
        %v519 = vld [vmem:[#allocation2 + $0xa0] sm:$0xff]
        %v520 = vld [vmem:[#allocation2 + $0xa8] sm:$0xff]
        %v521 = vld [vmem:[#allocation2 + $0xb0] sm:$0xff]
        %v522 = vld [vmem:[#allocation2 + $0xb8] sm:$0xff]
        %v523 = vld [vmem:[#allocation2 + $0xc0] sm:$0xff]
        %v524 = vld [vmem:[#allocation2 + $0xc8] sm:$0xff]
        %v525 = vld [vmem:[#allocation2 + $0xd0] sm:$0xff]
        %v526 = vld [vmem:[#allocation2 + $0xd8] sm:$0xff]
        %v527 = vld [vmem:[#allocation2 + $0xe0] sm:$0xff]
        %v528 = vld [vmem:[#allocation2 + $0xe8] sm:$0xff]
        %v529 = vld [vmem:[#allocation2 + $0xf0] sm:$0xff]
        %v530 = vld [vmem:[#allocation2 + $0xf8] sm:$0xff]
        %v531 = vld [vmem:[#allocation2 + $0x100] sm:$0xff]
        %v532 = vld [vmem:[#allocation2 + $0x108] sm:$0xff]
        %v533 = vld [vmem:[#allocation2 + $0x110] sm:$0xff]
        %v534 = vld [vmem:[#allocation2 + $0x118] sm:$0xff]
        %v535 = vld [vmem:[#allocation2 + $0x120] sm:$0xff]
        %v536 = vld [vmem:[#allocation2 + $0x128] sm:$0xff]
        %v537 = vld [vmem:[#allocation2 + $0x130] sm:$0xff]
        %v538 = vld [vmem:[#allocation2 + $0x138] sm:$0xff]
        %v539 = vld [vmem:[#allocation2 + $0x140] sm:$0xff]
        %v540 = vld [vmem:[#allocation2 + $0x148] sm:$0xff]
        %v541 = vld [vmem:[#allocation2 + $0x150] sm:$0xff]
        %v542 = vld [vmem:[#allocation2 + $0x158] sm:$0xff]
        %v543 = vld [vmem:[#allocation2 + $0x160] sm:$0xff]
        %v544 = vld [vmem:[#allocation2 + $0x168] sm:$0xff]
        %v545 = vld [vmem:[#allocation2 + $0x170] sm:$0xff]
        %v546 = vld [vmem:[#allocation2 + $0x178] sm:$0xff]
        %v547 = vld [vmem:[#allocation2 + $0x180] sm:$0xff]
        %v548 = vld [vmem:[#allocation2 + $0x188] sm:$0xff]
        %v549 = vld [vmem:[#allocation2 + $0x190] sm:$0xff]
        %v550 = vld [vmem:[#allocation2 + $0x198] sm:$0xff]
        %v551 = vld [vmem:[#allocation2 + $0x1a0] sm:$0xff]
        %v552 = vld [vmem:[#allocation2 + $0x1a8] sm:$0xff]
        %v553 = vld [vmem:[#allocation2 + $0x1b0] sm:$0xff]
        %v554 = vld [vmem:[#allocation2 + $0x1b8] sm:$0xff]
        %v555 = vld [vmem:[#allocation2 + $0x1c0] sm:$0xff]
        %v556 = vld [vmem:[#allocation2 + $0x1c8] sm:$0xff]
        %v557 = vld [vmem:[#allocation2 + $0x1d0] sm:$0xff]
        %v558 = vld [vmem:[#allocation2 + $0x1d8] sm:$0xff]
        %v559 = vld [vmem:[#allocation2 + $0x1e0] sm:$0xff]
        %v560 = vld [vmem:[#allocation2 + $0x1e8] sm:$0xff]
        %v561 = vld [vmem:[#allocation2 + $0x1f0] sm:$0xff]
        %v562 = vld [vmem:[#allocation2 + $0x1f8] sm:$0xff]
        %v563 = vld [vmem:[#allocation2 + $0x200] sm:$0xff]
        %v564 = vld [vmem:[#allocation2 + $0x208] sm:$0xff]
        %v565 = vld [vmem:[#allocation2 + $0x210] sm:$0xff]
        %v566 = vld [vmem:[#allocation2 + $0x218] sm:$0xff]
        %v567 = vld [vmem:[#allocation2 + $0x220] sm:$0xff]
        %v568 = vld [vmem:[#allocation2 + $0x228] sm:$0xff]
        %v569 = vld [vmem:[#allocation2 + $0x230] sm:$0xff]
        %v570 = vld [vmem:[#allocation2 + $0x238] sm:$0xff]
        %v571 = vld [vmem:[#allocation2 + $0x240] sm:$0xff]
        %v572 = vld [vmem:[#allocation2 + $0x248] sm:$0xff]
        %v573 = vld [vmem:[#allocation2 + $0x250] sm:$0xff]
        %v574 = vld [vmem:[#allocation2 + $0x258] sm:$0xff]
        %v575 = vld [vmem:[#allocation2 + $0x260] sm:$0xff]
        %v576 = vld [vmem:[#allocation2 + $0x268] sm:$0xff]
        %v577 = vld [vmem:[#allocation2 + $0x270] sm:$0xff]
        %v578 = vld [vmem:[#allocation2 + $0x278] sm:$0xff]
        %v579 = vld [vmem:[#allocation2 + $0x280] sm:$0xff]
        %v580 = vld [vmem:[#allocation2 + $0x288] sm:$0xff]
        %v581 = vld [vmem:[#allocation2 + $0x290] sm:$0xff]
        %v582 = vld [vmem:[#allocation2 + $0x298] sm:$0xff]
        %v583 = vld [vmem:[#allocation2 + $0x2a0] sm:$0xff]
        %v584 = vld [vmem:[#allocation2 + $0x2a8] sm:$0xff]
        %v585 = vld [vmem:[#allocation2 + $0x2b0] sm:$0xff]
        %v586 = vld [vmem:[#allocation2 + $0x2b8] sm:$0xff]
        %v587 = vld [vmem:[#allocation2 + $0x2c0] sm:$0xff]
        %v588 = vld [vmem:[#allocation2 + $0x2c8] sm:$0xff]
        %v589 = vld [vmem:[#allocation2 + $0x2d0] sm:$0xff]
        %v590 = vld [vmem:[#allocation2 + $0x2d8] sm:$0xff]
        %v591 = vld [vmem:[#allocation2 + $0x2e0] sm:$0xff]
        %v592 = vld [vmem:[#allocation2 + $0x2e8] sm:$0xff]
        %v593 = vld [vmem:[#allocation2 + $0x2f0] sm:$0xff]
        %v594 = vld [vmem:[#allocation2 + $0x2f8] sm:$0xff]
        %v595 = vld [vmem:[#allocation2 + $0x300] sm:$0xff]
        %v596 = vld [vmem:[#allocation2 + $0x308] sm:$0xff]
        %v597 = vld [vmem:[#allocation2 + $0x310] sm:$0xff]
        %v598 = vld [vmem:[#allocation2 + $0x318] sm:$0xff]
        %v599 = vld [vmem:[#allocation2 + $0x320] sm:$0xff]
        %v600 = vld [vmem:[#allocation2 + $0x328] sm:$0xff]
        %v601 = vld [vmem:[#allocation2 + $0x330] sm:$0xff]
        %v602 = vld [vmem:[#allocation2 + $0x338] sm:$0xff]
        %v603 = vld [vmem:[#allocation2 + $0x340] sm:$0xff]
        %v604 = vld [vmem:[#allocation2 + $0x348] sm:$0xff]
        %v605 = vld [vmem:[#allocation2 + $0x350] sm:$0xff]
        %v606 = vld [vmem:[#allocation2 + $0x358] sm:$0xff]
        %v607 = vld [vmem:[#allocation2 + $0x360] sm:$0xff]
        %v608 = vld [vmem:[#allocation2 + $0x368] sm:$0xff]
        %v609 = vld [vmem:[#allocation2 + $0x370] sm:$0xff]
        %v610 = vld [vmem:[#allocation2 + $0x378] sm:$0xff]
        %v611 = vld [vmem:[#allocation2 + $0x380] sm:$0xff]
        %v612 = vld [vmem:[#allocation2 + $0x388] sm:$0xff]
        %v613 = vld [vmem:[#allocation2 + $0x390] sm:$0xff]
        %v614 = vld [vmem:[#allocation2 + $0x398] sm:$0xff]
        %v615 = vld [vmem:[#allocation2 + $0x3a0] sm:$0xff]
        %v616 = vld [vmem:[#allocation2 + $0x3a8] sm:$0xff]
        %v617 = vld [vmem:[#allocation2 + $0x3b0] sm:$0xff]
        %v618 = vld [vmem:[#allocation2 + $0x3b8] sm:$0xff]
        %v619 = vld [vmem:[#allocation2 + $0x3c0] sm:$0xff]
        %v620 = vld [vmem:[#allocation2 + $0x3c8] sm:$0xff]
        %v621 = vld [vmem:[#allocation2 + $0x3d0] sm:$0xff]
        %v622 = vld [vmem:[#allocation2 + $0x3d8] sm:$0xff]
        %v623 = vld [vmem:[#allocation2 + $0x3e0] sm:$0xff]
        %v624 = vld [vmem:[#allocation2 + $0x3e8] sm:$0xff]
        %v625 = vld [vmem:[#allocation2 + $0x3f0] sm:$0xff]
        %v626 = vld [vmem:[#allocation2 + $0x3f8] sm:$0xff]
        %v627 = vld [vmem:[#allocation2 + $0x400] sm:$0xff]
        %v628 = vld [vmem:[#allocation2 + $0x408] sm:$0xff]
        %v629 = vld [vmem:[#allocation2 + $0x410] sm:$0xff]
        %v630 = vld [vmem:[#allocation2 + $0x418] sm:$0xff]
        %v631 = vld [vmem:[#allocation2 + $0x420] sm:$0xff]
        %v632 = vld [vmem:[#allocation2 + $0x428] sm:$0xff]
        %v633 = vld [vmem:[#allocation2 + $0x430] sm:$0xff]
        %v634 = vld [vmem:[#allocation2 + $0x438] sm:$0xff]
        %v635 = vld [vmem:[#allocation2 + $0x440] sm:$0xff]
        %v636 = vld [vmem:[#allocation2 + $0x448] sm:$0xff]
        %v637 = vld [vmem:[#allocation2 + $0x450] sm:$0xff]
        %v638 = vld [vmem:[#allocation2 + $0x458] sm:$0xff]
        %v639 = vld [vmem:[#allocation2 + $0x460] sm:$0xff]
        %v640 = vld [vmem:[#allocation2 + $0x468] sm:$0xff]
        %v641 = vld [vmem:[#allocation2 + $0x470] sm:$0xff]
        %v642 = vld [vmem:[#allocation2 + $0x478] sm:$0xff]
        %v643 = vld [vmem:[#allocation2 + $0x480] sm:$0xff]
        %v644 = vld [vmem:[#allocation2 + $0x488] sm:$0xff]
        %v645 = vld [vmem:[#allocation2 + $0x490] sm:$0xff]
        %v646 = vld [vmem:[#allocation2 + $0x498] sm:$0xff]
        %v647 = vld [vmem:[#allocation2 + $0x4a0] sm:$0xff]
        %v648 = vld [vmem:[#allocation2 + $0x4a8] sm:$0xff]
        %v649 = vld [vmem:[#allocation2 + $0x4b0] sm:$0xff]
        %v650 = vld [vmem:[#allocation2 + $0x4b8] sm:$0xff]
        %v651 = vld [vmem:[#allocation2 + $0x4c0] sm:$0xff]
        %v652 = vld [vmem:[#allocation2 + $0x4c8] sm:$0xff]
        %v653 = vld [vmem:[#allocation2 + $0x4d0] sm:$0xff]
        %v654 = vld [vmem:[#allocation2 + $0x4d8] sm:$0xff]
        %v655 = vld [vmem:[#allocation2 + $0x4e0] sm:$0xff]
        %v656 = vld [vmem:[#allocation2 + $0x4e8] sm:$0xff]
        %v657 = vld [vmem:[#allocation2 + $0x4f0] sm:$0xff]
        %v658 = vld [vmem:[#allocation2 + $0x4f8] sm:$0xff]
        %v659 = vld [vmem:[#allocation2 + $0x500] sm:$0xff]
        %v660 = vld [vmem:[#allocation2 + $0x508] sm:$0xff]
        %v661 = vld [vmem:[#allocation2 + $0x510] sm:$0xff]
        %v662 = vld [vmem:[#allocation2 + $0x518] sm:$0xff]
        %v663 = vld [vmem:[#allocation2 + $0x520] sm:$0xff]
        %v664 = vld [vmem:[#allocation2 + $0x528] sm:$0xff]
        %v665 = vld [vmem:[#allocation2 + $0x530] sm:$0xff]
        %v666 = vld [vmem:[#allocation2 + $0x538] sm:$0xff]
        %v667 = vld [vmem:[#allocation2 + $0x540] sm:$0xff]
        %v668 = vld [vmem:[#allocation2 + $0x548] sm:$0xff]
        %v669 = vld [vmem:[#allocation2 + $0x550] sm:$0xff]
        %v670 = vld [vmem:[#allocation2 + $0x558] sm:$0xff]
        %v671 = vld [vmem:[#allocation2 + $0x560] sm:$0xff]
        %v672 = vld [vmem:[#allocation2 + $0x568] sm:$0xff]
        %v673 = vld [vmem:[#allocation2 + $0x570] sm:$0xff]
        %v674 = vld [vmem:[#allocation2 + $0x578] sm:$0xff]
        %v675 = vld [vmem:[#allocation2 + $0x580] sm:$0xff]
        %v676 = vld [vmem:[#allocation2 + $0x588] sm:$0xff]
        %v677 = vld [vmem:[#allocation2 + $0x590] sm:$0xff]
        %v678 = vld [vmem:[#allocation2 + $0x598] sm:$0xff]
        %v679 = vld [vmem:[#allocation2 + $0x5a0] sm:$0xff]
        %v680 = vld [vmem:[#allocation2 + $0x5a8] sm:$0xff]
        %v681 = vld [vmem:[#allocation2 + $0x5b0] sm:$0xff]
        %v682 = vld [vmem:[#allocation2 + $0x5b8] sm:$0xff]
        %v683 = vld [vmem:[#allocation2 + $0x5c0] sm:$0xff]
        %v684 = vld [vmem:[#allocation2 + $0x5c8] sm:$0xff]
        %v685 = vld [vmem:[#allocation2 + $0x5d0] sm:$0xff]
        %v686 = vld [vmem:[#allocation2 + $0x5d8] sm:$0xff]
        %v687 = vld [vmem:[#allocation2 + $0x5e0] sm:$0xff]
        %v688 = vld [vmem:[#allocation2 + $0x5e8] sm:$0xff]
        %v689 = vld [vmem:[#allocation2 + $0x5f0] sm:$0xff]
        %v690 = vld [vmem:[#allocation2 + $0x5f8] sm:$0xff]
        %v691 = vld [vmem:[#allocation2 + $0x600] sm:$0xff]
        %v692 = vld [vmem:[#allocation2 + $0x608] sm:$0xff]
        %v693 = vld [vmem:[#allocation2 + $0x610] sm:$0xff]
        %v694 = vld [vmem:[#allocation2 + $0x618] sm:$0xff]
        %v695 = vld [vmem:[#allocation2 + $0x620] sm:$0xff]
        %v696 = vld [vmem:[#allocation2 + $0x628] sm:$0xff]
        %v697 = vld [vmem:[#allocation2 + $0x630] sm:$0xff]
        %v698 = vld [vmem:[#allocation2 + $0x638] sm:$0xff]
        %v699 = vld [vmem:[#allocation2 + $0x640] sm:$0xff]
        %v700 = vld [vmem:[#allocation2 + $0x648] sm:$0xff]
        %v701 = vld [vmem:[#allocation2 + $0x650] sm:$0xff]
        %v702 = vld [vmem:[#allocation2 + $0x658] sm:$0xff]
        %v703 = vld [vmem:[#allocation2 + $0x660] sm:$0xff]
        %v704 = vld [vmem:[#allocation2 + $0x668] sm:$0xff]
        %v705 = vld [vmem:[#allocation2 + $0x670] sm:$0xff]
        %v706 = vld [vmem:[#allocation2 + $0x678] sm:$0xff]
        %v707 = vld [vmem:[#allocation2 + $0x680] sm:$0xff]
        %v708 = vld [vmem:[#allocation2 + $0x688] sm:$0xff]
        %v709 = vld [vmem:[#allocation2 + $0x690] sm:$0xff]
        %v710 = vld [vmem:[#allocation2 + $0x698] sm:$0xff]
        %v711 = vld [vmem:[#allocation2 + $0x6a0] sm:$0xff]
        %v712 = vld [vmem:[#allocation2 + $0x6a8] sm:$0xff]
        %v713 = vld [vmem:[#allocation2 + $0x6b0] sm:$0xff]
        %v714 = vld [vmem:[#allocation2 + $0x6b8] sm:$0xff]
        %v715 = vld [vmem:[#allocation2 + $0x6c0] sm:$0xff]
        %v716 = vld [vmem:[#allocation2 + $0x6c8] sm:$0xff]
        %v717 = vld [vmem:[#allocation2 + $0x6d0] sm:$0xff]
        %v718 = vld [vmem:[#allocation2 + $0x6d8] sm:$0xff]
        %v719 = vld [vmem:[#allocation2 + $0x6e0] sm:$0xff]
        %v720 = vld [vmem:[#allocation2 + $0x6e8] sm:$0xff]
        %v721 = vld [vmem:[#allocation2 + $0x6f0] sm:$0xff]
        %v722 = vld [vmem:[#allocation2 + $0x6f8] sm:$0xff]
        %v723 = vld [vmem:[#allocation2 + $0x700] sm:$0xff]
        %v724 = vld [vmem:[#allocation2 + $0x708] sm:$0xff]
        %v725 = vld [vmem:[#allocation2 + $0x710] sm:$0xff]
        %v726 = vld [vmem:[#allocation2 + $0x718] sm:$0xff]
        %v727 = vld [vmem:[#allocation2 + $0x720] sm:$0xff]
        %v728 = vld [vmem:[#allocation2 + $0x728] sm:$0xff]
        %v729 = vld [vmem:[#allocation2 + $0x730] sm:$0xff]
        %v730 = vld [vmem:[#allocation2 + $0x738] sm:$0xff]
        %v731 = vld [vmem:[#allocation2 + $0x740] sm:$0xff]
        %v732 = vld [vmem:[#allocation2 + $0x748] sm:$0xff]
        %v733 = vld [vmem:[#allocation2 + $0x750] sm:$0xff]
        %v734 = vld [vmem:[#allocation2 + $0x758] sm:$0xff]
        %v735 = vld [vmem:[#allocation2 + $0x760] sm:$0xff]
        %v736 = vld [vmem:[#allocation2 + $0x768] sm:$0xff]
        %v737 = vld [vmem:[#allocation2 + $0x770] sm:$0xff]
        %v738 = vld [vmem:[#allocation2 + $0x778] sm:$0xff]
        %v739 = vld [vmem:[#allocation2 + $0x780] sm:$0xff]
        %v740 = vld [vmem:[#allocation2 + $0x788] sm:$0xff]
        %v741 = vld [vmem:[#allocation2 + $0x790] sm:$0xff]
        %v742 = vld [vmem:[#allocation2 + $0x798] sm:$0xff]
        %v743 = vld [vmem:[#allocation2 + $0x7a0] sm:$0xff]
        %v744 = vld [vmem:[#allocation2 + $0x7a8] sm:$0xff]
        %v745 = vld [vmem:[#allocation2 + $0x7b0] sm:$0xff]
        %v746 = vld [vmem:[#allocation2 + $0x7b8] sm:$0xff]
        %v747 = vld [vmem:[#allocation2 + $0x7c0] sm:$0xff]
        %v748 = vld [vmem:[#allocation2 + $0x7c8] sm:$0xff]
        %v749 = vld [vmem:[#allocation2 + $0x7d0] sm:$0xff]
        %v750 = vld [vmem:[#allocation2 + $0x7d8] sm:$0xff]
        %v751 = vld [vmem:[#allocation2 + $0x7e0] sm:$0xff]
        %v752 = vld [vmem:[#allocation2 + $0x7e8] sm:$0xff]
        %v753 = vld [vmem:[#allocation2 + $0x7f0] sm:$0xff]
        %v754 = vld [vmem:[#allocation2 + $0x7f8] sm:$0xff]
        %v755 = vld [vmem:[%s198] sm:$0xff]
        %v756 = vld [vmem:[%s198 + $0x8] sm:$0xff]
        %v757 = vld [vmem:[%s198 + $0x10] sm:$0xff]
        %v758 = vld [vmem:[%s198 + $0x18] sm:$0xff]
        %v759 = vld [vmem:[%s198 + $0x20] sm:$0xff]
        %v760 = vld [vmem:[%s198 + $0x28] sm:$0xff]
        %v761 = vld [vmem:[%s198 + $0x30] sm:$0xff]
        %v762 = vld [vmem:[%s198 + $0x38] sm:$0xff]
        %v763 = vld [vmem:[%s198 + $0x40] sm:$0xff]
        %v764 = vld [vmem:[%s198 + $0x48] sm:$0xff]
        %v765 = vld [vmem:[%s198 + $0x50] sm:$0xff]
        %v766 = vld [vmem:[%s198 + $0x58] sm:$0xff]
        %v767 = vld [vmem:[%s198 + $0x60] sm:$0xff]
        %v768 = vld [vmem:[%s198 + $0x68] sm:$0xff]
        %v769 = vld [vmem:[%s198 + $0x70] sm:$0xff]
        %v770 = vld [vmem:[%s198 + $0x78] sm:$0xff]
        %v771 = vld [vmem:[%s198 + $0x80] sm:$0xff]
        %v772 = vld [vmem:[%s198 + $0x88] sm:$0xff]
        %v773 = vld [vmem:[%s198 + $0x90] sm:$0xff]
        %v774 = vld [vmem:[%s198 + $0x98] sm:$0xff]
        %v775 = vld [vmem:[%s198 + $0xa0] sm:$0xff]
        %v776 = vld [vmem:[%s198 + $0xa8] sm:$0xff]
        %v777 = vld [vmem:[%s198 + $0xb0] sm:$0xff]
        %v778 = vld [vmem:[%s198 + $0xb8] sm:$0xff]
        %v779 = vld [vmem:[%s198 + $0xc0] sm:$0xff]
        %v780 = vld [vmem:[%s198 + $0xc8] sm:$0xff]
        %v781 = vld [vmem:[%s198 + $0xd0] sm:$0xff]
        %v782 = vld [vmem:[%s198 + $0xd8] sm:$0xff]
        %v783 = vld [vmem:[%s198 + $0xe0] sm:$0xff]
        %v784 = vld [vmem:[%s198 + $0xe8] sm:$0xff]
        %v785 = vld [vmem:[%s198 + $0xf0] sm:$0xff]
        %v786 = vld [vmem:[%s198 + $0xf8] sm:$0xff]
        %v787 = vld [vmem:[%s198 + $0x100] sm:$0xff]
        %v788 = vld [vmem:[%s198 + $0x108] sm:$0xff]
        %v789 = vld [vmem:[%s198 + $0x110] sm:$0xff]
        %v790 = vld [vmem:[%s198 + $0x118] sm:$0xff]
        %v791 = vld [vmem:[%s198 + $0x120] sm:$0xff]
        %v792 = vld [vmem:[%s198 + $0x128] sm:$0xff]
        %v793 = vld [vmem:[%s198 + $0x130] sm:$0xff]
        %v794 = vld [vmem:[%s198 + $0x138] sm:$0xff]
        %v795 = vld [vmem:[%s198 + $0x140] sm:$0xff]
        %v796 = vld [vmem:[%s198 + $0x148] sm:$0xff]
        %v797 = vld [vmem:[%s198 + $0x150] sm:$0xff]
        %v798 = vld [vmem:[%s198 + $0x158] sm:$0xff]
        %v799 = vld [vmem:[%s198 + $0x160] sm:$0xff]
        %v800 = vld [vmem:[%s198 + $0x168] sm:$0xff]
        %v801 = vld [vmem:[%s198 + $0x170] sm:$0xff]
        %v802 = vld [vmem:[%s198 + $0x178] sm:$0xff]
        %v803 = vld [vmem:[%s198 + $0x180] sm:$0xff]
        %v804 = vld [vmem:[%s198 + $0x188] sm:$0xff]
        %v805 = vld [vmem:[%s198 + $0x190] sm:$0xff]
        %v806 = vld [vmem:[%s198 + $0x198] sm:$0xff]
        %v807 = vld [vmem:[%s198 + $0x1a0] sm:$0xff]
        %v808 = vld [vmem:[%s198 + $0x1a8] sm:$0xff]
        %v809 = vld [vmem:[%s198 + $0x1b0] sm:$0xff]
        %v810 = vld [vmem:[%s198 + $0x1b8] sm:$0xff]
        %v811 = vld [vmem:[%s198 + $0x1c0] sm:$0xff]
        %v812 = vld [vmem:[%s198 + $0x1c8] sm:$0xff]
        %v813 = vld [vmem:[%s198 + $0x1d0] sm:$0xff]
        %v814 = vld [vmem:[%s198 + $0x1d8] sm:$0xff]
        %v815 = vld [vmem:[%s198 + $0x1e0] sm:$0xff]
        %v816 = vld [vmem:[%s198 + $0x1e8] sm:$0xff]
        %v817 = vld [vmem:[%s198 + $0x1f0] sm:$0xff]
        %v818 = vld [vmem:[%s198 + $0x1f8] sm:$0xff]
        %v819 = vld [vmem:[%s198 + $0x200] sm:$0xff]
        %v820 = vld [vmem:[%s198 + $0x208] sm:$0xff]
        %v821 = vld [vmem:[%s198 + $0x210] sm:$0xff]
        %v822 = vld [vmem:[%s198 + $0x218] sm:$0xff]
        %v823 = vld [vmem:[%s198 + $0x220] sm:$0xff]
        %v824 = vld [vmem:[%s198 + $0x228] sm:$0xff]
        %v825 = vld [vmem:[%s198 + $0x230] sm:$0xff]
        %v826 = vld [vmem:[%s198 + $0x238] sm:$0xff]
        %v827 = vld [vmem:[%s198 + $0x240] sm:$0xff]
        %v828 = vld [vmem:[%s198 + $0x248] sm:$0xff]
        %v829 = vld [vmem:[%s198 + $0x250] sm:$0xff]
        %v830 = vld [vmem:[%s198 + $0x258] sm:$0xff]
        %v831 = vld [vmem:[%s198 + $0x260] sm:$0xff]
        %v832 = vld [vmem:[%s198 + $0x268] sm:$0xff]
        %v833 = vld [vmem:[%s198 + $0x270] sm:$0xff]
        %v834 = vld [vmem:[%s198 + $0x278] sm:$0xff]
        %v835 = vld [vmem:[%s198 + $0x280] sm:$0xff]
        %v836 = vld [vmem:[%s198 + $0x288] sm:$0xff]
        %v837 = vld [vmem:[%s198 + $0x290] sm:$0xff]
        %v838 = vld [vmem:[%s198 + $0x298] sm:$0xff]
        %v839 = vld [vmem:[%s198 + $0x2a0] sm:$0xff]
        %v840 = vld [vmem:[%s198 + $0x2a8] sm:$0xff]
        %v841 = vld [vmem:[%s198 + $0x2b0] sm:$0xff]
        %v842 = vld [vmem:[%s198 + $0x2b8] sm:$0xff]
        %v843 = vld [vmem:[%s198 + $0x2c0] sm:$0xff]
        %v844 = vld [vmem:[%s198 + $0x2c8] sm:$0xff]
        %v845 = vld [vmem:[%s198 + $0x2d0] sm:$0xff]
        %v846 = vld [vmem:[%s198 + $0x2d8] sm:$0xff]
        %v847 = vld [vmem:[%s198 + $0x2e0] sm:$0xff]
        %v848 = vld [vmem:[%s198 + $0x2e8] sm:$0xff]
        %v849 = vld [vmem:[%s198 + $0x2f0] sm:$0xff]
        %v850 = vld [vmem:[%s198 + $0x2f8] sm:$0xff]
        %v851 = vld [vmem:[%s198 + $0x300] sm:$0xff]
        %v852 = vld [vmem:[%s198 + $0x308] sm:$0xff]
        %v853 = vld [vmem:[%s198 + $0x310] sm:$0xff]
        %v854 = vld [vmem:[%s198 + $0x318] sm:$0xff]
        %v855 = vld [vmem:[%s198 + $0x320] sm:$0xff]
        %v856 = vld [vmem:[%s198 + $0x328] sm:$0xff]
        %v857 = vld [vmem:[%s198 + $0x330] sm:$0xff]
        %v858 = vld [vmem:[%s198 + $0x338] sm:$0xff]
        %v859 = vld [vmem:[%s198 + $0x340] sm:$0xff]
        %v860 = vld [vmem:[%s198 + $0x348] sm:$0xff]
        %v861 = vld [vmem:[%s198 + $0x350] sm:$0xff]
        %v862 = vld [vmem:[%s198 + $0x358] sm:$0xff]
        %v863 = vld [vmem:[%s198 + $0x360] sm:$0xff]
        %v864 = vld [vmem:[%s198 + $0x368] sm:$0xff]
        %v865 = vld [vmem:[%s198 + $0x370] sm:$0xff]
        %v866 = vld [vmem:[%s198 + $0x378] sm:$0xff]
        %v867 = vld [vmem:[%s198 + $0x380] sm:$0xff]
        %v868 = vld [vmem:[%s198 + $0x388] sm:$0xff]
        %v869 = vld [vmem:[%s198 + $0x390] sm:$0xff]
        %v870 = vld [vmem:[%s198 + $0x398] sm:$0xff]
        %v871 = vld [vmem:[%s198 + $0x3a0] sm:$0xff]
        %v872 = vld [vmem:[%s198 + $0x3a8] sm:$0xff]
        %v873 = vld [vmem:[%s198 + $0x3b0] sm:$0xff]
        %v874 = vld [vmem:[%s198 + $0x3b8] sm:$0xff]
        %v875 = vld [vmem:[%s198 + $0x3c0] sm:$0xff]
        %v876 = vld [vmem:[%s198 + $0x3c8] sm:$0xff]
        %v877 = vld [vmem:[%s198 + $0x3d0] sm:$0xff]
        %v878 = vld [vmem:[%s198 + $0x3d8] sm:$0xff]
        %v879 = vld [vmem:[%s198 + $0x3e0] sm:$0xff]
        %v880 = vld [vmem:[%s198 + $0x3e8] sm:$0xff]
        %v881 = vld [vmem:[%s198 + $0x3f0] sm:$0xff]
        %v882 = vld [vmem:[%s198 + $0x3f8] sm:$0xff]
        %v883 = vld [vmem:[%s198 + $0x400] sm:$0xff]
        %v884 = vld [vmem:[%s198 + $0x408] sm:$0xff]
        %v885 = vld [vmem:[%s198 + $0x410] sm:$0xff]
        %v886 = vld [vmem:[%s198 + $0x418] sm:$0xff]
        %v887 = vld [vmem:[%s198 + $0x420] sm:$0xff]
        %v888 = vld [vmem:[%s198 + $0x428] sm:$0xff]
        %v889 = vld [vmem:[%s198 + $0x430] sm:$0xff]
        %v890 = vld [vmem:[%s198 + $0x438] sm:$0xff]
        %v891 = vld [vmem:[%s198 + $0x440] sm:$0xff]
        %v892 = vld [vmem:[%s198 + $0x448] sm:$0xff]
        %v893 = vld [vmem:[%s198 + $0x450] sm:$0xff]
        %v894 = vld [vmem:[%s198 + $0x458] sm:$0xff]
        %v895 = vld [vmem:[%s198 + $0x460] sm:$0xff]
        %v896 = vld [vmem:[%s198 + $0x468] sm:$0xff]
        %v897 = vld [vmem:[%s198 + $0x470] sm:$0xff]
        %v898 = vld [vmem:[%s198 + $0x478] sm:$0xff]
        %v899 = vld [vmem:[%s198 + $0x480] sm:$0xff]
        %v900 = vld [vmem:[%s198 + $0x488] sm:$0xff]
        %v901 = vld [vmem:[%s198 + $0x490] sm:$0xff]
        %v902 = vld [vmem:[%s198 + $0x498] sm:$0xff]
        %v903 = vld [vmem:[%s198 + $0x4a0] sm:$0xff]
        %v904 = vld [vmem:[%s198 + $0x4a8] sm:$0xff]
        %v905 = vld [vmem:[%s198 + $0x4b0] sm:$0xff]
        %v906 = vld [vmem:[%s198 + $0x4b8] sm:$0xff]
        %v907 = vld [vmem:[%s198 + $0x4c0] sm:$0xff]
        %v908 = vld [vmem:[%s198 + $0x4c8] sm:$0xff]
        %v909 = vld [vmem:[%s198 + $0x4d0] sm:$0xff]
        %v910 = vld [vmem:[%s198 + $0x4d8] sm:$0xff]
        %v911 = vld [vmem:[%s198 + $0x4e0] sm:$0xff]
        %v912 = vld [vmem:[%s198 + $0x4e8] sm:$0xff]
        %v913 = vld [vmem:[%s198 + $0x4f0] sm:$0xff]
        %v914 = vld [vmem:[%s198 + $0x4f8] sm:$0xff]
        %v915 = vld [vmem:[%s198 + $0x500] sm:$0xff]
        %v916 = vld [vmem:[%s198 + $0x508] sm:$0xff]
        %v917 = vld [vmem:[%s198 + $0x510] sm:$0xff]
        %v918 = vld [vmem:[%s198 + $0x518] sm:$0xff]
        %v919 = vld [vmem:[%s198 + $0x520] sm:$0xff]
        %v920 = vld [vmem:[%s198 + $0x528] sm:$0xff]
        %v921 = vld [vmem:[%s198 + $0x530] sm:$0xff]
        %v922 = vld [vmem:[%s198 + $0x538] sm:$0xff]
        %v923 = vld [vmem:[%s198 + $0x540] sm:$0xff]
        %v924 = vld [vmem:[%s198 + $0x548] sm:$0xff]
        %v925 = vld [vmem:[%s198 + $0x550] sm:$0xff]
        %v926 = vld [vmem:[%s198 + $0x558] sm:$0xff]
        %v927 = vld [vmem:[%s198 + $0x560] sm:$0xff]
        %v928 = vld [vmem:[%s198 + $0x568] sm:$0xff]
        %v929 = vld [vmem:[%s198 + $0x570] sm:$0xff]
        %v930 = vld [vmem:[%s198 + $0x578] sm:$0xff]
        %v931 = vld [vmem:[%s198 + $0x580] sm:$0xff]
        %v932 = vld [vmem:[%s198 + $0x588] sm:$0xff]
        %v933 = vld [vmem:[%s198 + $0x590] sm:$0xff]
        %v934 = vld [vmem:[%s198 + $0x598] sm:$0xff]
        %v935 = vld [vmem:[%s198 + $0x5a0] sm:$0xff]
        %v936 = vld [vmem:[%s198 + $0x5a8] sm:$0xff]
        %v937 = vld [vmem:[%s198 + $0x5b0] sm:$0xff]
        %v938 = vld [vmem:[%s198 + $0x5b8] sm:$0xff]
        %v939 = vld [vmem:[%s198 + $0x5c0] sm:$0xff]
        %v940 = vld [vmem:[%s198 + $0x5c8] sm:$0xff]
        %v941 = vld [vmem:[%s198 + $0x5d0] sm:$0xff]
        %v942 = vld [vmem:[%s198 + $0x5d8] sm:$0xff]
        %v943 = vld [vmem:[%s198 + $0x5e0] sm:$0xff]
        %v944 = vld [vmem:[%s198 + $0x5e8] sm:$0xff]
        %v945 = vld [vmem:[%s198 + $0x5f0] sm:$0xff]
        %v946 = vld [vmem:[%s198 + $0x5f8] sm:$0xff]
        %v947 = vld [vmem:[%s198 + $0x600] sm:$0xff]
        %v948 = vld [vmem:[%s198 + $0x608] sm:$0xff]
        %v949 = vld [vmem:[%s198 + $0x610] sm:$0xff]
        %v950 = vld [vmem:[%s198 + $0x618] sm:$0xff]
        %v951 = vld [vmem:[%s198 + $0x620] sm:$0xff]
        %v952 = vld [vmem:[%s198 + $0x628] sm:$0xff]
        %v953 = vld [vmem:[%s198 + $0x630] sm:$0xff]
        %v954 = vld [vmem:[%s198 + $0x638] sm:$0xff]
        %v955 = vld [vmem:[%s198 + $0x640] sm:$0xff]
        %v956 = vld [vmem:[%s198 + $0x648] sm:$0xff]
        %v957 = vld [vmem:[%s198 + $0x650] sm:$0xff]
        %v958 = vld [vmem:[%s198 + $0x658] sm:$0xff]
        %v959 = vld [vmem:[%s198 + $0x660] sm:$0xff]
        %v960 = vld [vmem:[%s198 + $0x668] sm:$0xff]
        %v961 = vld [vmem:[%s198 + $0x670] sm:$0xff]
        %v962 = vld [vmem:[%s198 + $0x678] sm:$0xff]
        %v963 = vld [vmem:[%s198 + $0x680] sm:$0xff]
        %v964 = vld [vmem:[%s198 + $0x688] sm:$0xff]
        %v965 = vld [vmem:[%s198 + $0x690] sm:$0xff]
        %v966 = vld [vmem:[%s198 + $0x698] sm:$0xff]
        %v967 = vld [vmem:[%s198 + $0x6a0] sm:$0xff]
        %v968 = vld [vmem:[%s198 + $0x6a8] sm:$0xff]
        %v969 = vld [vmem:[%s198 + $0x6b0] sm:$0xff]
        %v970 = vld [vmem:[%s198 + $0x6b8] sm:$0xff]
        %v971 = vld [vmem:[%s198 + $0x6c0] sm:$0xff]
        %v972 = vld [vmem:[%s198 + $0x6c8] sm:$0xff]
        %v973 = vld [vmem:[%s198 + $0x6d0] sm:$0xff]
        %v974 = vld [vmem:[%s198 + $0x6d8] sm:$0xff]
        %v975 = vld [vmem:[%s198 + $0x6e0] sm:$0xff]
        %v976 = vld [vmem:[%s198 + $0x6e8] sm:$0xff]
        %v977 = vld [vmem:[%s198 + $0x6f0] sm:$0xff]
        %v978 = vld [vmem:[%s198 + $0x6f8] sm:$0xff]
        %v979 = vld [vmem:[%s198 + $0x700] sm:$0xff]
        %v980 = vld [vmem:[%s198 + $0x708] sm:$0xff]
        %v981 = vld [vmem:[%s198 + $0x710] sm:$0xff]
        %v982 = vld [vmem:[%s198 + $0x718] sm:$0xff]
        %v983 = vld [vmem:[%s198 + $0x720] sm:$0xff]
        %v984 = vld [vmem:[%s198 + $0x728] sm:$0xff]
        %v985 = vld [vmem:[%s198 + $0x730] sm:$0xff]
        %v986 = vld [vmem:[%s198 + $0x738] sm:$0xff]
        %v987 = vld [vmem:[%s198 + $0x740] sm:$0xff]
        %v988 = vld [vmem:[%s198 + $0x748] sm:$0xff]
        %v989 = vld [vmem:[%s198 + $0x750] sm:$0xff]
        %v990 = vld [vmem:[%s198 + $0x758] sm:$0xff]
        %v991 = vld [vmem:[%s198 + $0x760] sm:$0xff]
        %v992 = vld [vmem:[%s198 + $0x768] sm:$0xff]
        %v993 = vld [vmem:[%s198 + $0x770] sm:$0xff]
        %v994 = vld [vmem:[%s198 + $0x778] sm:$0xff]
        %v995 = vld [vmem:[%s198 + $0x780] sm:$0xff]
        %v996 = vld [vmem:[%s198 + $0x788] sm:$0xff]
        %v997 = vld [vmem:[%s198 + $0x790] sm:$0xff]
        %v998 = vld [vmem:[%s198 + $0x798] sm:$0xff]
        %v999 = vld [vmem:[%s198 + $0x7a0] sm:$0xff]
        %v1000 = vld [vmem:[%s198 + $0x7a8] sm:$0xff]
        %v1001 = vld [vmem:[%s198 + $0x7b0] sm:$0xff]
        %v1002 = vld [vmem:[%s198 + $0x7b8] sm:$0xff]
        %v1003 = vld [vmem:[%s198 + $0x7c0] sm:$0xff]
        %v1004 = vld [vmem:[%s198 + $0x7c8] sm:$0xff]
        %v1005 = vld [vmem:[%s198 + $0x7d0] sm:$0xff]
        %v1006 = vld [vmem:[%s198 + $0x7d8] sm:$0xff]
        %v1007 = vld [vmem:[%s198 + $0x7e0] sm:$0xff]
        %v1008 = vld [vmem:[%s198 + $0x7e8] sm:$0xff]
        %v1009 = vld [vmem:[%s198 + $0x7f0] sm:$0xff]
        %v1010 = vld [vmem:[%s198 + $0x7f8] sm:$0xff]
        %v1011 = vld [vmem:[%s207] sm:$0xff]
        %v1012 = vld [vmem:[%s207 + $0x8] sm:$0xff]
        %v1013 = vld [vmem:[%s207 + $0x10] sm:$0xff]
        %v1014 = vld [vmem:[%s207 + $0x18] sm:$0xff]
        %v1015 = vld [vmem:[%s207 + $0x20] sm:$0xff]
        %v1016 = vld [vmem:[%s207 + $0x28] sm:$0xff]
        %v1017 = vld [vmem:[%s207 + $0x30] sm:$0xff]
        %v1018 = vld [vmem:[%s207 + $0x38] sm:$0xff]
        %v1019 = vld [vmem:[%s207 + $0x40] sm:$0xff]
        %v1020 = vld [vmem:[%s207 + $0x48] sm:$0xff]
        %v1021 = vld [vmem:[%s207 + $0x50] sm:$0xff]
        %v1022 = vld [vmem:[%s207 + $0x58] sm:$0xff]
        %v1023 = vld [vmem:[%s207 + $0x60] sm:$0xff]
        %v1024 = vld [vmem:[%s207 + $0x68] sm:$0xff]
        %v1025 = vld [vmem:[%s207 + $0x70] sm:$0xff]
        %v1026 = vld [vmem:[%s207 + $0x78] sm:$0xff]
        %v1027 = vld [vmem:[%s207 + $0x80] sm:$0xff]
        %v1028 = vld [vmem:[%s207 + $0x88] sm:$0xff]
        %v1029 = vld [vmem:[%s207 + $0x90] sm:$0xff]
        %v1030 = vld [vmem:[%s207 + $0x98] sm:$0xff]
        %v1031 = vld [vmem:[%s207 + $0xa0] sm:$0xff]
        %v1032 = vld [vmem:[%s207 + $0xa8] sm:$0xff]
        %v1033 = vld [vmem:[%s207 + $0xb0] sm:$0xff]
        %v1034 = vld [vmem:[%s207 + $0xb8] sm:$0xff]
        %v1035 = vld [vmem:[%s207 + $0xc0] sm:$0xff]
        %v1036 = vld [vmem:[%s207 + $0xc8] sm:$0xff]
        %v1037 = vld [vmem:[%s207 + $0xd0] sm:$0xff]
        %v1038 = vld [vmem:[%s207 + $0xd8] sm:$0xff]
        %v1039 = vld [vmem:[%s207 + $0xe0] sm:$0xff]
        %v1040 = vld [vmem:[%s207 + $0xe8] sm:$0xff]
        %v1041 = vld [vmem:[%s207 + $0xf0] sm:$0xff]
        %v1042 = vld [vmem:[%s207 + $0xf8] sm:$0xff]
        %v1043 = vld [vmem:[%s207 + $0x100] sm:$0xff]
        %v1044 = vld [vmem:[%s207 + $0x108] sm:$0xff]
        %v1045 = vld [vmem:[%s207 + $0x110] sm:$0xff]
        %v1046 = vld [vmem:[%s207 + $0x118] sm:$0xff]
        %v1047 = vld [vmem:[%s207 + $0x120] sm:$0xff]
        %v1048 = vld [vmem:[%s207 + $0x128] sm:$0xff]
        %v1049 = vld [vmem:[%s207 + $0x130] sm:$0xff]
        %v1050 = vld [vmem:[%s207 + $0x138] sm:$0xff]
        %v1051 = vld [vmem:[%s207 + $0x140] sm:$0xff]
        %v1052 = vld [vmem:[%s207 + $0x148] sm:$0xff]
        %v1053 = vld [vmem:[%s207 + $0x150] sm:$0xff]
        %v1054 = vld [vmem:[%s207 + $0x158] sm:$0xff]
        %v1055 = vld [vmem:[%s207 + $0x160] sm:$0xff]
        %v1056 = vld [vmem:[%s207 + $0x168] sm:$0xff]
        %v1057 = vld [vmem:[%s207 + $0x170] sm:$0xff]
        %v1058 = vld [vmem:[%s207 + $0x178] sm:$0xff]
        %v1059 = vld [vmem:[%s207 + $0x180] sm:$0xff]
        %v1060 = vld [vmem:[%s207 + $0x188] sm:$0xff]
        %v1061 = vld [vmem:[%s207 + $0x190] sm:$0xff]
        %v1062 = vld [vmem:[%s207 + $0x198] sm:$0xff]
        %v1063 = vld [vmem:[%s207 + $0x1a0] sm:$0xff]
        %v1064 = vld [vmem:[%s207 + $0x1a8] sm:$0xff]
        %v1065 = vld [vmem:[%s207 + $0x1b0] sm:$0xff]
        %v1066 = vld [vmem:[%s207 + $0x1b8] sm:$0xff]
        %v1067 = vld [vmem:[%s207 + $0x1c0] sm:$0xff]
        %v1068 = vld [vmem:[%s207 + $0x1c8] sm:$0xff]
        %v1069 = vld [vmem:[%s207 + $0x1d0] sm:$0xff]
        %v1070 = vld [vmem:[%s207 + $0x1d8] sm:$0xff]
        %v1071 = vld [vmem:[%s207 + $0x1e0] sm:$0xff]
        %v1072 = vld [vmem:[%s207 + $0x1e8] sm:$0xff]
        %v1073 = vld [vmem:[%s207 + $0x1f0] sm:$0xff]
        %v1074 = vld [vmem:[%s207 + $0x1f8] sm:$0xff]
        %v1075 = vld [vmem:[%s207 + $0x200] sm:$0xff]
        %v1076 = vld [vmem:[%s207 + $0x208] sm:$0xff]
        %v1077 = vld [vmem:[%s207 + $0x210] sm:$0xff]
        %v1078 = vld [vmem:[%s207 + $0x218] sm:$0xff]
        %v1079 = vld [vmem:[%s207 + $0x220] sm:$0xff]
        %v1080 = vld [vmem:[%s207 + $0x228] sm:$0xff]
        %v1081 = vld [vmem:[%s207 + $0x230] sm:$0xff]
        %v1082 = vld [vmem:[%s207 + $0x238] sm:$0xff]
        %v1083 = vld [vmem:[%s207 + $0x240] sm:$0xff]
        %v1084 = vld [vmem:[%s207 + $0x248] sm:$0xff]
        %v1085 = vld [vmem:[%s207 + $0x250] sm:$0xff]
        %v1086 = vld [vmem:[%s207 + $0x258] sm:$0xff]
        %v1087 = vld [vmem:[%s207 + $0x260] sm:$0xff]
        %v1088 = vld [vmem:[%s207 + $0x268] sm:$0xff]
        %v1089 = vld [vmem:[%s207 + $0x270] sm:$0xff]
        %v1090 = vld [vmem:[%s207 + $0x278] sm:$0xff]
        %v1091 = vld [vmem:[%s207 + $0x280] sm:$0xff]
        %v1092 = vld [vmem:[%s207 + $0x288] sm:$0xff]
        %v1093 = vld [vmem:[%s207 + $0x290] sm:$0xff]
        %v1094 = vld [vmem:[%s207 + $0x298] sm:$0xff]
        %v1095 = vld [vmem:[%s207 + $0x2a0] sm:$0xff]
        %v1096 = vld [vmem:[%s207 + $0x2a8] sm:$0xff]
        %v1097 = vld [vmem:[%s207 + $0x2b0] sm:$0xff]
        %v1098 = vld [vmem:[%s207 + $0x2b8] sm:$0xff]
        %v1099 = vld [vmem:[%s207 + $0x2c0] sm:$0xff]
        %v1100 = vld [vmem:[%s207 + $0x2c8] sm:$0xff]
        %v1101 = vld [vmem:[%s207 + $0x2d0] sm:$0xff]
        %v1102 = vld [vmem:[%s207 + $0x2d8] sm:$0xff]
        %v1103 = vld [vmem:[%s207 + $0x2e0] sm:$0xff]
        %v1104 = vld [vmem:[%s207 + $0x2e8] sm:$0xff]
        %v1105 = vld [vmem:[%s207 + $0x2f0] sm:$0xff]
        %v1106 = vld [vmem:[%s207 + $0x2f8] sm:$0xff]
        %v1107 = vld [vmem:[%s207 + $0x300] sm:$0xff]
        %v1108 = vld [vmem:[%s207 + $0x308] sm:$0xff]
        %v1109 = vld [vmem:[%s207 + $0x310] sm:$0xff]
        %v1110 = vld [vmem:[%s207 + $0x318] sm:$0xff]
        %v1111 = vld [vmem:[%s207 + $0x320] sm:$0xff]
        %v1112 = vld [vmem:[%s207 + $0x328] sm:$0xff]
        %v1113 = vld [vmem:[%s207 + $0x330] sm:$0xff]
        %v1114 = vld [vmem:[%s207 + $0x338] sm:$0xff]
        %v1115 = vld [vmem:[%s207 + $0x340] sm:$0xff]
        %v1116 = vld [vmem:[%s207 + $0x348] sm:$0xff]
        %v1117 = vld [vmem:[%s207 + $0x350] sm:$0xff]
        %v1118 = vld [vmem:[%s207 + $0x358] sm:$0xff]
        %v1119 = vld [vmem:[%s207 + $0x360] sm:$0xff]
        %v1120 = vld [vmem:[%s207 + $0x368] sm:$0xff]
        %v1121 = vld [vmem:[%s207 + $0x370] sm:$0xff]
        %v1122 = vld [vmem:[%s207 + $0x378] sm:$0xff]
        %v1123 = vld [vmem:[%s207 + $0x380] sm:$0xff]
        %v1124 = vld [vmem:[%s207 + $0x388] sm:$0xff]
        %v1125 = vld [vmem:[%s207 + $0x390] sm:$0xff]
        %v1126 = vld [vmem:[%s207 + $0x398] sm:$0xff]
        %v1127 = vld [vmem:[%s207 + $0x3a0] sm:$0xff]
        %v1128 = vld [vmem:[%s207 + $0x3a8] sm:$0xff]
        %v1129 = vld [vmem:[%s207 + $0x3b0] sm:$0xff]
        %v1130 = vld [vmem:[%s207 + $0x3b8] sm:$0xff]
        %v1131 = vld [vmem:[%s207 + $0x3c0] sm:$0xff]
        %v1132 = vld [vmem:[%s207 + $0x3c8] sm:$0xff]
        %v1133 = vld [vmem:[%s207 + $0x3d0] sm:$0xff]
        %v1134 = vld [vmem:[%s207 + $0x3d8] sm:$0xff]
        %v1135 = vld [vmem:[%s207 + $0x3e0] sm:$0xff]
        %v1136 = vld [vmem:[%s207 + $0x3e8] sm:$0xff]
        %v1137 = vld [vmem:[%s207 + $0x3f0] sm:$0xff]
        %v1138 = vld [vmem:[%s207 + $0x3f8] sm:$0xff]
        %v1139 = vld [vmem:[%s207 + $0x400] sm:$0xff]
        %v1140 = vld [vmem:[%s207 + $0x408] sm:$0xff]
        %v1141 = vld [vmem:[%s207 + $0x410] sm:$0xff]
        %v1142 = vld [vmem:[%s207 + $0x418] sm:$0xff]
        %v1143 = vld [vmem:[%s207 + $0x420] sm:$0xff]
        %v1144 = vld [vmem:[%s207 + $0x428] sm:$0xff]
        %v1145 = vld [vmem:[%s207 + $0x430] sm:$0xff]
        %v1146 = vld [vmem:[%s207 + $0x438] sm:$0xff]
        %v1147 = vld [vmem:[%s207 + $0x440] sm:$0xff]
        %v1148 = vld [vmem:[%s207 + $0x448] sm:$0xff]
        %v1149 = vld [vmem:[%s207 + $0x450] sm:$0xff]
        %v1150 = vld [vmem:[%s207 + $0x458] sm:$0xff]
        %v1151 = vld [vmem:[%s207 + $0x460] sm:$0xff]
        %v1152 = vld [vmem:[%s207 + $0x468] sm:$0xff]
        %v1153 = vld [vmem:[%s207 + $0x470] sm:$0xff]
        %v1154 = vld [vmem:[%s207 + $0x478] sm:$0xff]
        %v1155 = vld [vmem:[%s207 + $0x480] sm:$0xff]
        %v1156 = vld [vmem:[%s207 + $0x488] sm:$0xff]
        %v1157 = vld [vmem:[%s207 + $0x490] sm:$0xff]
        %v1158 = vld [vmem:[%s207 + $0x498] sm:$0xff]
        %v1159 = vld [vmem:[%s207 + $0x4a0] sm:$0xff]
        %v1160 = vld [vmem:[%s207 + $0x4a8] sm:$0xff]
        %v1161 = vld [vmem:[%s207 + $0x4b0] sm:$0xff]
        %v1162 = vld [vmem:[%s207 + $0x4b8] sm:$0xff]
        %v1163 = vld [vmem:[%s207 + $0x4c0] sm:$0xff]
        %v1164 = vld [vmem:[%s207 + $0x4c8] sm:$0xff]
        %v1165 = vld [vmem:[%s207 + $0x4d0] sm:$0xff]
        %v1166 = vld [vmem:[%s207 + $0x4d8] sm:$0xff]
        %v1167 = vld [vmem:[%s207 + $0x4e0] sm:$0xff]
        %v1168 = vld [vmem:[%s207 + $0x4e8] sm:$0xff]
        %v1169 = vld [vmem:[%s207 + $0x4f0] sm:$0xff]
        %v1170 = vld [vmem:[%s207 + $0x4f8] sm:$0xff]
        %v1171 = vld [vmem:[%s207 + $0x500] sm:$0xff]
        %v1172 = vld [vmem:[%s207 + $0x508] sm:$0xff]
        %v1173 = vld [vmem:[%s207 + $0x510] sm:$0xff]
        %v1174 = vld [vmem:[%s207 + $0x518] sm:$0xff]
        %v1175 = vld [vmem:[%s207 + $0x520] sm:$0xff]
        %v1176 = vld [vmem:[%s207 + $0x528] sm:$0xff]
        %v1177 = vld [vmem:[%s207 + $0x530] sm:$0xff]
        %v1178 = vld [vmem:[%s207 + $0x538] sm:$0xff]
        %v1179 = vld [vmem:[%s207 + $0x540] sm:$0xff]
        %v1180 = vld [vmem:[%s207 + $0x548] sm:$0xff]
        %v1181 = vld [vmem:[%s207 + $0x550] sm:$0xff]
        %v1182 = vld [vmem:[%s207 + $0x558] sm:$0xff]
        %v1183 = vld [vmem:[%s207 + $0x560] sm:$0xff]
        %v1184 = vld [vmem:[%s207 + $0x568] sm:$0xff]
        %v1185 = vld [vmem:[%s207 + $0x570] sm:$0xff]
        %v1186 = vld [vmem:[%s207 + $0x578] sm:$0xff]
        %v1187 = vld [vmem:[%s207 + $0x580] sm:$0xff]
        %v1188 = vld [vmem:[%s207 + $0x588] sm:$0xff]
        %v1189 = vld [vmem:[%s207 + $0x590] sm:$0xff]
        %v1190 = vld [vmem:[%s207 + $0x598] sm:$0xff]
        %v1191 = vld [vmem:[%s207 + $0x5a0] sm:$0xff]
        %v1192 = vld [vmem:[%s207 + $0x5a8] sm:$0xff]
        %v1193 = vld [vmem:[%s207 + $0x5b0] sm:$0xff]
        %v1194 = vld [vmem:[%s207 + $0x5b8] sm:$0xff]
        %v1195 = vld [vmem:[%s207 + $0x5c0] sm:$0xff]
        %v1196 = vld [vmem:[%s207 + $0x5c8] sm:$0xff]
        %v1197 = vld [vmem:[%s207 + $0x5d0] sm:$0xff]
        %v1198 = vld [vmem:[%s207 + $0x5d8] sm:$0xff]
        %v1199 = vld [vmem:[%s207 + $0x5e0] sm:$0xff]
        %v1200 = vld [vmem:[%s207 + $0x5e8] sm:$0xff]
        %v1201 = vld [vmem:[%s207 + $0x5f0] sm:$0xff]
        %v1202 = vld [vmem:[%s207 + $0x5f8] sm:$0xff]
        %v1203 = vld [vmem:[%s207 + $0x600] sm:$0xff]
        %v1204 = vld [vmem:[%s207 + $0x608] sm:$0xff]
        %v1205 = vld [vmem:[%s207 + $0x610] sm:$0xff]
        %v1206 = vld [vmem:[%s207 + $0x618] sm:$0xff]
        %v1207 = vld [vmem:[%s207 + $0x620] sm:$0xff]
        %v1208 = vld [vmem:[%s207 + $0x628] sm:$0xff]
        %v1209 = vld [vmem:[%s207 + $0x630] sm:$0xff]
        %v1210 = vld [vmem:[%s207 + $0x638] sm:$0xff]
        %v1211 = vld [vmem:[%s207 + $0x640] sm:$0xff]
        %v1212 = vld [vmem:[%s207 + $0x648] sm:$0xff]
        %v1213 = vld [vmem:[%s207 + $0x650] sm:$0xff]
        %v1214 = vld [vmem:[%s207 + $0x658] sm:$0xff]
        %v1215 = vld [vmem:[%s207 + $0x660] sm:$0xff]
        %v1216 = vld [vmem:[%s207 + $0x668] sm:$0xff]
        %v1217 = vld [vmem:[%s207 + $0x670] sm:$0xff]
        %v1218 = vld [vmem:[%s207 + $0x678] sm:$0xff]
        %v1219 = vld [vmem:[%s207 + $0x680] sm:$0xff]
        %v1220 = vld [vmem:[%s207 + $0x688] sm:$0xff]
        %v1221 = vld [vmem:[%s207 + $0x690] sm:$0xff]
        %v1222 = vld [vmem:[%s207 + $0x698] sm:$0xff]
        %v1223 = vld [vmem:[%s207 + $0x6a0] sm:$0xff]
        %v1224 = vld [vmem:[%s207 + $0x6a8] sm:$0xff]
        %v1225 = vld [vmem:[%s207 + $0x6b0] sm:$0xff]
        %v1226 = vld [vmem:[%s207 + $0x6b8] sm:$0xff]
        %v1227 = vld [vmem:[%s207 + $0x6c0] sm:$0xff]
        %v1228 = vld [vmem:[%s207 + $0x6c8] sm:$0xff]
        %v1229 = vld [vmem:[%s207 + $0x6d0] sm:$0xff]
        %v1230 = vld [vmem:[%s207 + $0x6d8] sm:$0xff]
        %v1231 = vld [vmem:[%s207 + $0x6e0] sm:$0xff]
        %v1232 = vld [vmem:[%s207 + $0x6e8] sm:$0xff]
        %v1233 = vld [vmem:[%s207 + $0x6f0] sm:$0xff]
        %v1234 = vld [vmem:[%s207 + $0x6f8] sm:$0xff]
        %v1235 = vld [vmem:[%s207 + $0x700] sm:$0xff]
        %v1236 = vld [vmem:[%s207 + $0x708] sm:$0xff]
        %v1237 = vld [vmem:[%s207 + $0x710] sm:$0xff]
        %v1238 = vld [vmem:[%s207 + $0x718] sm:$0xff]
        %v1239 = vld [vmem:[%s207 + $0x720] sm:$0xff]
        %v1240 = vld [vmem:[%s207 + $0x728] sm:$0xff]
        %v1241 = vld [vmem:[%s207 + $0x730] sm:$0xff]
        %v1242 = vld [vmem:[%s207 + $0x738] sm:$0xff]
        %v1243 = vld [vmem:[%s207 + $0x740] sm:$0xff]
        %v1244 = vld [vmem:[%s207 + $0x748] sm:$0xff]
        %v1245 = vld [vmem:[%s207 + $0x750] sm:$0xff]
        %v1246 = vld [vmem:[%s207 + $0x758] sm:$0xff]
        %v1247 = vld [vmem:[%s207 + $0x760] sm:$0xff]
        %v1248 = vld [vmem:[%s207 + $0x768] sm:$0xff]
        %v1249 = vld [vmem:[%s207 + $0x770] sm:$0xff]
        %v1250 = vld [vmem:[%s207 + $0x778] sm:$0xff]
        %v1251 = vld [vmem:[%s207 + $0x780] sm:$0xff]
        %v1252 = vld [vmem:[%s207 + $0x788] sm:$0xff]
        %v1253 = vld [vmem:[%s207 + $0x790] sm:$0xff]
        %v1254 = vld [vmem:[%s207 + $0x798] sm:$0xff]
        %v1255 = vld [vmem:[%s207 + $0x7a0] sm:$0xff]
        %v1256 = vld [vmem:[%s207 + $0x7a8] sm:$0xff]
        %v1257 = vld [vmem:[%s207 + $0x7b0] sm:$0xff]
        %v1258 = vld [vmem:[%s207 + $0x7b8] sm:$0xff]
        %v1259 = vld [vmem:[%s207 + $0x7c0] sm:$0xff]
        %v1260 = vld [vmem:[%s207 + $0x7c8] sm:$0xff]
        %v1261 = vld [vmem:[%s207 + $0x7d0] sm:$0xff]
        %v1262 = vld [vmem:[%s207 + $0x7d8] sm:$0xff]
        %v1263 = vld [vmem:[%s207 + $0x7e0] sm:$0xff]
        %v1264 = vld [vmem:[%s207 + $0x7e8] sm:$0xff]
        %v1265 = vld [vmem:[%s207 + $0x7f0] sm:$0xff]
        %v1266 = vld [vmem:[%s207 + $0x7f8] sm:$0xff]
        %1267 = vmatprep.subr.mxu0 %v1012
        %1268 = vmatpush1.msra.mxu0 %v1011
        %1269 = vmatprep.subr.mxu0 %v1016
        %1270 = vmatpush1.msra.mxu0 %v1015
        %1271 = vmatprep.subr.mxu0 %v1020
        %1272 = vmatpush1.msra.mxu0 %v1019
        %1273 = vmatprep.subr.mxu0 %v1024
        %1274 = vmatpush1.msra.mxu0 %v1023
        %1275 = vmatprep.subr.mxu0 %v1028
        %1276 = vmatpush1.msra.mxu0 %v1027
        %1277 = vmatprep.subr.mxu0 %v1032
        %1278 = vmatpush1.msra.mxu0 %v1031
        %1279 = vmatprep.subr.mxu0 %v1036
        %1280 = vmatpush1.msra.mxu0 %v1035
        %1281 = vmatprep.subr.mxu0 %v1040
        %1282 = vmatpush1.msra.mxu0 %v1039
        %1283 = vmatprep.subr.mxu0 %v1044
        %1284 = vmatpush1.msra.mxu0 %v1043
        %1285 = vmatprep.subr.mxu0 %v1048
        %1286 = vmatpush1.msra.mxu0 %v1047
        %1287 = vmatprep.subr.mxu0 %v1052
        %1288 = vmatpush1.msra.mxu0 %v1051
        %1289 = vmatprep.subr.mxu0 %v1056
        %1290 = vmatpush1.msra.mxu0 %v1055
        %1291 = vmatprep.subr.mxu0 %v1060
        %1292 = vmatpush1.msra.mxu0 %v1059
        %1293 = vmatprep.subr.mxu0 %v1064
        %1294 = vmatpush1.msra.mxu0 %v1063
        %1295 = vmatprep.subr.mxu0 %v1068
        %1296 = vmatpush1.msra.mxu0 %v1067
        %1297 = vmatprep.subr.mxu0 %v1072
        %1298 = vmatpush1.msra.mxu0 %v1071
        %1299 = vmatprep.subr.mxu0 %v1076
        %1300 = vmatpush1.msra.mxu0 %v1075
        %1301 = vmatprep.subr.mxu0 %v1080
        %1302 = vmatpush1.msra.mxu0 %v1079
        %1303 = vmatprep.subr.mxu0 %v1084
        %1304 = vmatpush1.msra.mxu0 %v1083
        %1305 = vmatprep.subr.mxu0 %v1088
        %1306 = vmatpush1.msra.mxu0 %v1087
        %1307 = vmatprep.subr.mxu0 %v1092
        %1308 = vmatpush1.msra.mxu0 %v1091
        %1309 = vmatprep.subr.mxu0 %v1096
        %1310 = vmatpush1.msra.mxu0 %v1095
        %1311 = vmatprep.subr.mxu0 %v1100
        %1312 = vmatpush1.msra.mxu0 %v1099
        %1313 = vmatprep.subr.mxu0 %v1104
        %1314 = vmatpush1.msra.mxu0 %v1103
        %1315 = vmatprep.subr.mxu0 %v1108
        %1316 = vmatpush1.msra.mxu0 %v1107
        %1317 = vmatprep.subr.mxu0 %v1112
        %1318 = vmatpush1.msra.mxu0 %v1111
        %1319 = vmatprep.subr.mxu0 %v1116
        %1320 = vmatpush1.msra.mxu0 %v1115
        %1321 = vmatprep.subr.mxu0 %v1120
        %1322 = vmatpush1.msra.mxu0 %v1119
        %1323 = vmatprep.subr.mxu0 %v1124
        %1324 = vmatpush1.msra.mxu0 %v1123
        %1325 = vmatprep.subr.mxu0 %v1128
        %1326 = vmatpush1.msra.mxu0 %v1127
        %1327 = vmatprep.subr.mxu0 %v1132
        %1328 = vmatpush1.msra.mxu0 %v1131
        %1329 = vmatprep.subr.mxu0 %v1136
        %1330 = vmatpush1.msra.mxu0 %v1135
        %1331 = vmatprep.mubr.f32.mxu0 %v756
        %1332 = vmatmul.mubr.f32.gmra.mrb[0].mxu0 %v755
        %v1333 = vpop.f32.mrb[0].mxu0
        %v1334 = vadd.f32 0.0, %v1333
        %v1335 = vpop.f32.mrb[0].mxu0
        %v1336 = vadd.f32 0.0, %v1335
        %1337 = vmatprep.mubr.f32.mxu0 %v760
        %1338 = vmatmul.mubr.f32.gmra.mrb[0].mxu0 %v759
        %v1339 = vpop.f32.mrb[0].mxu0
        %v1340 = vadd.f32 0.0, %v1339
        %v1341 = vpop.f32.mrb[0].mxu0
        %v1342 = vadd.f32 0.0, %v1341
        %1343 = vmatprep.mubr.f32.mxu0 %v764
        %1344 = vmatmul.mubr.f32.gmra.mrb[0].mxu0 %v763
        %v1345 = vpop.f32.mrb[0].mxu0
        %v1346 = vadd.f32 0.0, %v1345
        %v1347 = vpop.f32.mrb[0].mxu0
        %v1348 = vadd.f32 0.0, %v1347
        %1349 = vmatprep.mubr.f32.mxu0 %v768
        %1350 = vmatmul.mubr.f32.gmra.mrb[0].mxu0 %v767
        %v1351 = vpop.f32.mrb[0].mxu0
        %v1352 = vadd.f32 0.0, %v1351
        %v1353 = vpop.f32.mrb[0].mxu0
        %v1354 = vadd.f32 0.0, %v1353
        %1355 = vmatprep.mubr.f32.mxu0 %v772
        %1356 = vmatmul.mubr.f32.gmra.mrb[0].mxu0 %v771
        %v1357 = vpop.f32.mrb[0].mxu0
        %v1358 = vadd.f32 0.0, %v1357
        %v1359 = vpop.f32.mrb[0].mxu0
        %v1360 = vadd.f32 0.0, %v1359
        %1361 = vmatprep.mubr.f32.mxu0 %v776
        %1362 = vmatmul.mubr.f32.gmra.mrb[0].mxu0 %v775
        %v1363 = vpop.f32.mrb[0].mxu0
        %v1364 = vadd.f32 0.0, %v1363
        %v1365 = vpop.f32.mrb[0].mxu0
        %v1366 = vadd.f32 0.0, %v1365
        %1367 = vmatprep.mubr.f32.mxu0 %v780
        %1368 = vmatmul.mubr.f32.gmra.mrb[0].mxu0 %v779
        %v1369 = vpop.f32.mrb[0].mxu0
        %v1370 = vadd.f32 0.0, %v1369
        %v1371 = vpop.f32.mrb[0].mxu0
        %v1372 = vadd.f32 0.0, %v1371
        %1373 = vmatprep.mubr.f32.mxu0 %v784
        %1374 = vmatmul.mubr.f32.gmra.mrb[0].mxu0 %v783
        %v1375 = vpop.f32.mrb[0].mxu0
        %v1376 = vadd.f32 0.0, %v1375
        %v1377 = vpop.f32.mrb[0].mxu0
        %v1378 = vadd.f32 0.0, %v1377
        %1379 = vmatprep.mubr.f32.mxu0 %v788
        %1380 = vmatmul.mubr.f32.gmra.mrb[0].mxu0 %v787
        %v1381 = vpop.f32.mrb[0].mxu0
        %v1382 = vadd.f32 0.0, %v1381
        %v1383 = vpop.f32.mrb[0].mxu0
        %v1384 = vadd.f32 0.0, %v1383
        %1385 = vmatprep.mubr.f32.mxu0 %v792
        %1386 = vmatmul.mubr.f32.gmra.mrb[0].mxu0 %v791
        %v1387 = vpop.f32.mrb[0].mxu0
        %v1388 = vadd.f32 0.0, %v1387
        %v1389 = vpop.f32.mrb[0].mxu0
        %v1390 = vadd.f32 0.0, %v1389
        %1391 = vmatprep.mubr.f32.mxu0 %v796
        %1392 = vmatmul.mubr.f32.gmra.mrb[0].mxu0 %v795
        %v1393 = vpop.f32.mrb[0].mxu0
        %v1394 = vadd.f32 0.0, %v1393
        %v1395 = vpop.f32.mrb[0].mxu0
        %v1396 = vadd.f32 0.0, %v1395
        %1397 = vmatprep.mubr.f32.mxu0 %v800
        %1398 = vmatmul.mubr.f32.gmra.mrb[0].mxu0 %v799
        %v1399 = vpop.f32.mrb[0].mxu0
        %v1400 = vadd.f32 0.0, %v1399
        %v1401 = vpop.f32.mrb[0].mxu0
        %v1402 = vadd.f32 0.0, %v1401
        %1403 = vmatprep.mubr.f32.mxu0 %v804
        %1404 = vmatmul.mubr.f32.gmra.mrb[0].mxu0 %v803
        %v1405 = vpop.f32.mrb[0].mxu0
        %v1406 = vadd.f32 0.0, %v1405
        %v1407 = vpop.f32.mrb[0].mxu0
        %v1408 = vadd.f32 0.0, %v1407
        %1409 = vmatprep.mubr.f32.mxu0 %v808
        %1410 = vmatmul.mubr.f32.gmra.mrb[0].mxu0 %v807
        %v1411 = vpop.f32.mrb[0].mxu0
        %v1412 = vadd.f32 0.0, %v1411
        %v1413 = vpop.f32.mrb[0].mxu0
        %v1414 = vadd.f32 0.0, %v1413
        %1415 = vmatprep.mubr.f32.mxu0 %v812
        %1416 = vmatmul.mubr.f32.gmra.mrb[0].mxu0 %v811
        %v1417 = vpop.f32.mrb[0].mxu0
        %v1418 = vadd.f32 0.0, %v1417
        %v1419 = vpop.f32.mrb[0].mxu0
        %v1420 = vadd.f32 0.0, %v1419
        %1421 = vmatprep.mubr.f32.mxu0 %v816
        %1422 = vmatmul.mubr.f32.gmra.mrb[0].mxu0 %v815
        %v1423 = vpop.f32.mrb[0].mxu0
        %v1424 = vadd.f32 0.0, %v1423
        %v1425 = vpop.f32.mrb[0].mxu0
        %v1426 = vadd.f32 0.0, %v1425
        %1427 = vmatprep.mubr.f32.mxu0 %v820
        %1428 = vmatmul.mubr.f32.gmra.mrb[0].mxu0 %v819
        %v1429 = vpop.f32.mrb[0].mxu0
        %v1430 = vadd.f32 0.0, %v1429
        %v1431 = vpop.f32.mrb[0].mxu0
        %v1432 = vadd.f32 0.0, %v1431
        %1433 = vmatprep.mubr.f32.mxu0 %v824
        %1434 = vmatmul.mubr.f32.gmra.mrb[0].mxu0 %v823
        %v1435 = vpop.f32.mrb[0].mxu0
        %v1436 = vadd.f32 0.0, %v1435
        %v1437 = vpop.f32.mrb[0].mxu0
        %v1438 = vadd.f32 0.0, %v1437
        %1439 = vmatprep.mubr.f32.mxu0 %v828
        %1440 = vmatmul.mubr.f32.gmra.mrb[0].mxu0 %v827
        %v1441 = vpop.f32.mrb[0].mxu0
        %v1442 = vadd.f32 0.0, %v1441
        %v1443 = vpop.f32.mrb[0].mxu0
        %v1444 = vadd.f32 0.0, %v1443
        %1445 = vmatprep.mubr.f32.mxu0 %v832
        %1446 = vmatmul.mubr.f32.gmra.mrb[0].mxu0 %v831
        %v1447 = vpop.f32.mrb[0].mxu0
        %v1448 = vadd.f32 0.0, %v1447
        %v1449 = vpop.f32.mrb[0].mxu0
        %v1450 = vadd.f32 0.0, %v1449
        %1451 = vmatprep.mubr.f32.mxu0 %v836
        %1452 = vmatmul.mubr.f32.gmra.mrb[0].mxu0 %v835
        %v1453 = vpop.f32.mrb[0].mxu0
        %v1454 = vadd.f32 0.0, %v1453
        %v1455 = vpop.f32.mrb[0].mxu0
        %v1456 = vadd.f32 0.0, %v1455
        %1457 = vmatprep.mubr.f32.mxu0 %v840
        %1458 = vmatmul.mubr.f32.gmra.mrb[0].mxu0 %v839
        %v1459 = vpop.f32.mrb[0].mxu0
        %v1460 = vadd.f32 0.0, %v1459
        %v1461 = vpop.f32.mrb[0].mxu0
        %v1462 = vadd.f32 0.0, %v1461
        %1463 = vmatprep.mubr.f32.mxu0 %v844
        %1464 = vmatmul.mubr.f32.gmra.mrb[0].mxu0 %v843
        %v1465 = vpop.f32.mrb[0].mxu0
        %v1466 = vadd.f32 0.0, %v1465
        %v1467 = vpop.f32.mrb[0].mxu0
        %v1468 = vadd.f32 0.0, %v1467
        %1469 = vmatprep.mubr.f32.mxu0 %v848
        %1470 = vmatmul.mubr.f32.gmra.mrb[0].mxu0 %v847
        %v1471 = vpop.f32.mrb[0].mxu0
        %v1472 = vadd.f32 0.0, %v1471
        %v1473 = vpop.f32.mrb[0].mxu0
        %v1474 = vadd.f32 0.0, %v1473
        %1475 = vmatprep.mubr.f32.mxu0 %v852
        %1476 = vmatmul.mubr.f32.gmra.mrb[0].mxu0 %v851
        %v1477 = vpop.f32.mrb[0].mxu0
        %v1478 = vadd.f32 0.0, %v1477
        %v1479 = vpop.f32.mrb[0].mxu0
        %v1480 = vadd.f32 0.0, %v1479
        %1481 = vmatprep.mubr.f32.mxu0 %v856
        %1482 = vmatmul.mubr.f32.gmra.mrb[0].mxu0 %v855
        %v1483 = vpop.f32.mrb[0].mxu0
        %v1484 = vadd.f32 0.0, %v1483
        %v1485 = vpop.f32.mrb[0].mxu0
        %v1486 = vadd.f32 0.0, %v1485
        %1487 = vmatprep.mubr.f32.mxu0 %v860
        %1488 = vmatmul.mubr.f32.gmra.mrb[0].mxu0 %v859
        %v1489 = vpop.f32.mrb[0].mxu0
        %v1490 = vadd.f32 0.0, %v1489
        %v1491 = vpop.f32.mrb[0].mxu0
        %v1492 = vadd.f32 0.0, %v1491
        %1493 = vmatprep.mubr.f32.mxu0 %v864
        %1494 = vmatmul.mubr.f32.gmra.mrb[0].mxu0 %v863
        %v1495 = vpop.f32.mrb[0].mxu0
        %v1496 = vadd.f32 0.0, %v1495
        %v1497 = vpop.f32.mrb[0].mxu0
        %v1498 = vadd.f32 0.0, %v1497
        %1499 = vmatprep.mubr.f32.mxu0 %v868
        %1500 = vmatmul.mubr.f32.gmra.mrb[0].mxu0 %v867
        %v1501 = vpop.f32.mrb[0].mxu0
        %v1502 = vadd.f32 0.0, %v1501
        %v1503 = vpop.f32.mrb[0].mxu0
        %v1504 = vadd.f32 0.0, %v1503
        %1505 = vmatprep.mubr.f32.mxu0 %v872
        %1506 = vmatmul.mubr.f32.gmra.mrb[0].mxu0 %v871
        %v1507 = vpop.f32.mrb[0].mxu0
        %v1508 = vadd.f32 0.0, %v1507
        %v1509 = vpop.f32.mrb[0].mxu0
        %v1510 = vadd.f32 0.0, %v1509
        %1511 = vmatprep.mubr.f32.mxu0 %v876
        %1512 = vmatmul.mubr.f32.gmra.mrb[0].mxu0 %v875
        %v1513 = vpop.f32.mrb[0].mxu0
        %v1514 = vadd.f32 0.0, %v1513
        %v1515 = vpop.f32.mrb[0].mxu0
        %v1516 = vadd.f32 0.0, %v1515
        %1517 = vmatprep.mubr.f32.mxu0 %v880
        %1518 = vmatmul.mubr.f32.gmra.mrb[0].mxu0 %v879
        %v1519 = vpop.f32.mrb[0].mxu0
        %v1520 = vadd.f32 0.0, %v1519
        %v1521 = vpop.f32.mrb[0].mxu0
        %v1522 = vadd.f32 0.0, %v1521
        %1523 = vmatprep.mubr.f32.mxu0 %v884
        %1524 = vmatmul.mubr.f32.gmra.mrb[0].mxu0 %v883
        %v1525 = vpop.f32.mrb[0].mxu0
        %v1526 = vadd.f32 0.0, %v1525
        %v1527 = vpop.f32.mrb[0].mxu0
        %v1528 = vadd.f32 0.0, %v1527
        %1529 = vmatprep.mubr.f32.mxu0 %v888
        %1530 = vmatmul.mubr.f32.gmra.mrb[0].mxu0 %v887
        %v1531 = vpop.f32.mrb[0].mxu0
        %v1532 = vadd.f32 0.0, %v1531
        %v1533 = vpop.f32.mrb[0].mxu0
        %v1534 = vadd.f32 0.0, %v1533
        %1535 = vmatprep.mubr.f32.mxu0 %v892
        %1536 = vmatmul.mubr.f32.gmra.mrb[0].mxu0 %v891
        %v1537 = vpop.f32.mrb[0].mxu0
        %v1538 = vadd.f32 0.0, %v1537
        %v1539 = vpop.f32.mrb[0].mxu0
        %v1540 = vadd.f32 0.0, %v1539
        %1541 = vmatprep.mubr.f32.mxu0 %v896
        %1542 = vmatmul.mubr.f32.gmra.mrb[0].mxu0 %v895
        %v1543 = vpop.f32.mrb[0].mxu0
        %v1544 = vadd.f32 0.0, %v1543
        %v1545 = vpop.f32.mrb[0].mxu0
        %v1546 = vadd.f32 0.0, %v1545
        %1547 = vmatprep.mubr.f32.mxu0 %v900
        %1548 = vmatmul.mubr.f32.gmra.mrb[0].mxu0 %v899
        %v1549 = vpop.f32.mrb[0].mxu0
        %v1550 = vadd.f32 0.0, %v1549
        %v1551 = vpop.f32.mrb[0].mxu0
        %v1552 = vadd.f32 0.0, %v1551
        %1553 = vmatprep.mubr.f32.mxu0 %v904
        %1554 = vmatmul.mubr.f32.gmra.mrb[0].mxu0 %v903
        %v1555 = vpop.f32.mrb[0].mxu0
        %v1556 = vadd.f32 0.0, %v1555
        %v1557 = vpop.f32.mrb[0].mxu0
        %v1558 = vadd.f32 0.0, %v1557
        %1559 = vmatprep.mubr.f32.mxu0 %v908
        %1560 = vmatmul.mubr.f32.gmra.mrb[0].mxu0 %v907
        %v1561 = vpop.f32.mrb[0].mxu0
        %v1562 = vadd.f32 0.0, %v1561
        %v1563 = vpop.f32.mrb[0].mxu0
        %v1564 = vadd.f32 0.0, %v1563
        %1565 = vmatprep.mubr.f32.mxu0 %v912
        %1566 = vmatmul.mubr.f32.gmra.mrb[0].mxu0 %v911
        %v1567 = vpop.f32.mrb[0].mxu0
        %v1568 = vadd.f32 0.0, %v1567
        %v1569 = vpop.f32.mrb[0].mxu0
        %v1570 = vadd.f32 0.0, %v1569
        %1571 = vmatprep.mubr.f32.mxu0 %v916
        %1572 = vmatmul.mubr.f32.gmra.mrb[0].mxu0 %v915
        %v1573 = vpop.f32.mrb[0].mxu0
        %v1574 = vadd.f32 0.0, %v1573
        %v1575 = vpop.f32.mrb[0].mxu0
        %v1576 = vadd.f32 0.0, %v1575
        %1577 = vmatprep.mubr.f32.mxu0 %v920
        %1578 = vmatmul.mubr.f32.gmra.mrb[0].mxu0 %v919
        %v1579 = vpop.f32.mrb[0].mxu0
        %v1580 = vadd.f32 0.0, %v1579
        %v1581 = vpop.f32.mrb[0].mxu0
        %v1582 = vadd.f32 0.0, %v1581
        %1583 = vmatprep.mubr.f32.mxu0 %v924
        %1584 = vmatmul.mubr.f32.gmra.mrb[0].mxu0 %v923
        %v1585 = vpop.f32.mrb[0].mxu0
        %v1586 = vadd.f32 0.0, %v1585
        %v1587 = vpop.f32.mrb[0].mxu0
        %v1588 = vadd.f32 0.0, %v1587
        %1589 = vmatprep.mubr.f32.mxu0 %v928
        %1590 = vmatmul.mubr.f32.gmra.mrb[0].mxu0 %v927
        %v1591 = vpop.f32.mrb[0].mxu0
        %v1592 = vadd.f32 0.0, %v1591
        %v1593 = vpop.f32.mrb[0].mxu0
        %v1594 = vadd.f32 0.0, %v1593
        %1595 = vmatprep.mubr.f32.mxu0 %v932
        %1596 = vmatmul.mubr.f32.gmra.mrb[0].mxu0 %v931
        %v1597 = vpop.f32.mrb[0].mxu0
        %v1598 = vadd.f32 0.0, %v1597
        %v1599 = vpop.f32.mrb[0].mxu0
        %v1600 = vadd.f32 0.0, %v1599
        %1601 = vmatprep.mubr.f32.mxu0 %v936
        %1602 = vmatmul.mubr.f32.gmra.mrb[0].mxu0 %v935
        %v1603 = vpop.f32.mrb[0].mxu0
        %v1604 = vadd.f32 0.0, %v1603
        %v1605 = vpop.f32.mrb[0].mxu0
        %v1606 = vadd.f32 0.0, %v1605
        %1607 = vmatprep.mubr.f32.mxu0 %v940
        %1608 = vmatmul.mubr.f32.gmra.mrb[0].mxu0 %v939
        %v1609 = vpop.f32.mrb[0].mxu0
        %v1610 = vadd.f32 0.0, %v1609
        %v1611 = vpop.f32.mrb[0].mxu0
        %v1612 = vadd.f32 0.0, %v1611
        %1613 = vmatprep.mubr.f32.mxu0 %v944
        %1614 = vmatmul.mubr.f32.gmra.mrb[0].mxu0 %v943
        %v1615 = vpop.f32.mrb[0].mxu0
        %v1616 = vadd.f32 0.0, %v1615
        %v1617 = vpop.f32.mrb[0].mxu0
        %v1618 = vadd.f32 0.0, %v1617
        %1619 = vmatprep.mubr.f32.mxu0 %v948
        %1620 = vmatmul.mubr.f32.gmra.mrb[0].mxu0 %v947
        %v1621 = vpop.f32.mrb[0].mxu0
        %v1622 = vadd.f32 0.0, %v1621
        %v1623 = vpop.f32.mrb[0].mxu0
        %v1624 = vadd.f32 0.0, %v1623
        %1625 = vmatprep.mubr.f32.mxu0 %v952
        %1626 = vmatmul.mubr.f32.gmra.mrb[0].mxu0 %v951
        %v1627 = vpop.f32.mrb[0].mxu0
        %v1628 = vadd.f32 0.0, %v1627
        %v1629 = vpop.f32.mrb[0].mxu0
        %v1630 = vadd.f32 0.0, %v1629
        %1631 = vmatprep.mubr.f32.mxu0 %v956
        %1632 = vmatmul.mubr.f32.gmra.mrb[0].mxu0 %v955
        %v1633 = vpop.f32.mrb[0].mxu0
        %v1634 = vadd.f32 0.0, %v1633
        %v1635 = vpop.f32.mrb[0].mxu0
        %v1636 = vadd.f32 0.0, %v1635
        %1637 = vmatprep.mubr.f32.mxu0 %v960
        %1638 = vmatmul.mubr.f32.gmra.mrb[0].mxu0 %v959
        %v1639 = vpop.f32.mrb[0].mxu0
        %v1640 = vadd.f32 0.0, %v1639
        %v1641 = vpop.f32.mrb[0].mxu0
        %v1642 = vadd.f32 0.0, %v1641
        %1643 = vmatprep.mubr.f32.mxu0 %v964
        %1644 = vmatmul.mubr.f32.gmra.mrb[0].mxu0 %v963
        %v1645 = vpop.f32.mrb[0].mxu0
        %v1646 = vadd.f32 0.0, %v1645
        %v1647 = vpop.f32.mrb[0].mxu0
        %v1648 = vadd.f32 0.0, %v1647
        %1649 = vmatprep.mubr.f32.mxu0 %v968
        %1650 = vmatmul.mubr.f32.gmra.mrb[0].mxu0 %v967
        %v1651 = vpop.f32.mrb[0].mxu0
        %v1652 = vadd.f32 0.0, %v1651
        %v1653 = vpop.f32.mrb[0].mxu0
        %v1654 = vadd.f32 0.0, %v1653
        %1655 = vmatprep.mubr.f32.mxu0 %v972
        %1656 = vmatmul.mubr.f32.gmra.mrb[0].mxu0 %v971
        %v1657 = vpop.f32.mrb[0].mxu0
        %v1658 = vadd.f32 0.0, %v1657
        %v1659 = vpop.f32.mrb[0].mxu0
        %v1660 = vadd.f32 0.0, %v1659
        %1661 = vmatprep.mubr.f32.mxu0 %v976
        %1662 = vmatmul.mubr.f32.gmra.mrb[0].mxu0 %v975
        %v1663 = vpop.f32.mrb[0].mxu0
        %v1664 = vadd.f32 0.0, %v1663
        %v1665 = vpop.f32.mrb[0].mxu0
        %v1666 = vadd.f32 0.0, %v1665
        %1667 = vmatprep.mubr.f32.mxu0 %v980
        %1668 = vmatmul.mubr.f32.gmra.mrb[0].mxu0 %v979
        %v1669 = vpop.f32.mrb[0].mxu0
        %v1670 = vadd.f32 0.0, %v1669
        %v1671 = vpop.f32.mrb[0].mxu0
        %v1672 = vadd.f32 0.0, %v1671
        %1673 = vmatprep.mubr.f32.mxu0 %v984
        %1674 = vmatmul.mubr.f32.gmra.mrb[0].mxu0 %v983
        %v1675 = vpop.f32.mrb[0].mxu0
        %v1676 = vadd.f32 0.0, %v1675
        %v1677 = vpop.f32.mrb[0].mxu0
        %v1678 = vadd.f32 0.0, %v1677
        %1679 = vmatprep.mubr.f32.mxu0 %v988
        %1680 = vmatmul.mubr.f32.gmra.mrb[0].mxu0 %v987
        %v1681 = vpop.f32.mrb[0].mxu0
        %v1682 = vadd.f32 0.0, %v1681
        %v1683 = vpop.f32.mrb[0].mxu0
        %v1684 = vadd.f32 0.0, %v1683
        %1685 = vmatprep.mubr.f32.mxu0 %v992
        %1686 = vmatmul.mubr.f32.gmra.mrb[0].mxu0 %v991
        %v1687 = vpop.f32.mrb[0].mxu0
        %v1688 = vadd.f32 0.0, %v1687
        %v1689 = vpop.f32.mrb[0].mxu0
        %v1690 = vadd.f32 0.0, %v1689
        %1691 = vmatprep.mubr.f32.mxu0 %v996
        %1692 = vmatmul.mubr.f32.gmra.mrb[0].mxu0 %v995
        %v1693 = vpop.f32.mrb[0].mxu0
        %v1694 = vadd.f32 0.0, %v1693
        %v1695 = vpop.f32.mrb[0].mxu0
        %v1696 = vadd.f32 0.0, %v1695
        %1697 = vmatprep.mubr.f32.mxu0 %v1000
        %1698 = vmatmul.mubr.f32.gmra.mrb[0].mxu0 %v999
        %v1699 = vpop.f32.mrb[0].mxu0
        %v1700 = vadd.f32 0.0, %v1699
        %v1701 = vpop.f32.mrb[0].mxu0
        %v1702 = vadd.f32 0.0, %v1701
        %1703 = vmatprep.mubr.f32.mxu0 %v1004
        %1704 = vmatmul.mubr.f32.gmra.mrb[0].mxu0 %v1003
        %v1705 = vpop.f32.mrb[0].mxu0
        %v1706 = vadd.f32 0.0, %v1705
        %v1707 = vpop.f32.mrb[0].mxu0
        %v1708 = vadd.f32 0.0, %v1707
        %1709 = vmatprep.mubr.f32.mxu0 %v1008
        %1710 = vmatmul.mubr.f32.gmra.mrb[0].mxu0 %v1007
        %v1711 = vpop.f32.mrb[0].mxu0
        %v1712 = vadd.f32 0.0, %v1711
        %v1713 = vpop.f32.mrb[0].mxu0
        %v1714 = vadd.f32 0.0, %v1713
        %1715 = vdwg.mxu0
        %1716 = vmatprep.subr.mxu0 %v1140
        %1717 = vmatpush1.msra.mxu0 %v1139
        %1718 = vmatprep.subr.mxu0 %v1144
        %1719 = vmatpush1.msra.mxu0 %v1143
        %1720 = vmatprep.subr.mxu0 %v1148
        %1721 = vmatpush1.msra.mxu0 %v1147
        %1722 = vmatprep.subr.mxu0 %v1152
        %1723 = vmatpush1.msra.mxu0 %v1151
        %1724 = vmatprep.subr.mxu0 %v1156
        %1725 = vmatpush1.msra.mxu0 %v1155
        %1726 = vmatprep.subr.mxu0 %v1160
        %1727 = vmatpush1.msra.mxu0 %v1159
        %1728 = vmatprep.subr.mxu0 %v1164
        %1729 = vmatpush1.msra.mxu0 %v1163
        %1730 = vmatprep.subr.mxu0 %v1168
        %1731 = vmatpush1.msra.mxu0 %v1167
        %1732 = vmatprep.subr.mxu0 %v1172
        %1733 = vmatpush1.msra.mxu0 %v1171
        %1734 = vmatprep.subr.mxu0 %v1176
        %1735 = vmatpush1.msra.mxu0 %v1175
        %1736 = vmatprep.subr.mxu0 %v1180
        %1737 = vmatpush1.msra.mxu0 %v1179
        %1738 = vmatprep.subr.mxu0 %v1184
        %1739 = vmatpush1.msra.mxu0 %v1183
        %1740 = vmatprep.subr.mxu0 %v1188
        %1741 = vmatpush1.msra.mxu0 %v1187
        %1742 = vmatprep.subr.mxu0 %v1192
        %1743 = vmatpush1.msra.mxu0 %v1191
        %1744 = vmatprep.subr.mxu0 %v1196
        %1745 = vmatpush1.msra.mxu0 %v1195
        %1746 = vmatprep.subr.mxu0 %v1200
        %1747 = vmatpush1.msra.mxu0 %v1199
        %1748 = vmatprep.subr.mxu0 %v1204
        %1749 = vmatpush1.msra.mxu0 %v1203
        %1750 = vmatprep.subr.mxu0 %v1208
        %1751 = vmatpush1.msra.mxu0 %v1207
        %1752 = vmatprep.subr.mxu0 %v1212
        %1753 = vmatpush1.msra.mxu0 %v1211
        %1754 = vmatprep.subr.mxu0 %v1216
        %1755 = vmatpush1.msra.mxu0 %v1215
        %1756 = vmatprep.subr.mxu0 %v1220
        %1757 = vmatpush1.msra.mxu0 %v1219
        %1758 = vmatprep.subr.mxu0 %v1224
        %1759 = vmatpush1.msra.mxu0 %v1223
        %1760 = vmatprep.subr.mxu0 %v1228
        %1761 = vmatpush1.msra.mxu0 %v1227
        %1762 = vmatprep.subr.mxu0 %v1232
        %1763 = vmatpush1.msra.mxu0 %v1231
        %1764 = vmatprep.subr.mxu0 %v1236
        %1765 = vmatpush1.msra.mxu0 %v1235
        %1766 = vmatprep.subr.mxu0 %v1240
        %1767 = vmatpush1.msra.mxu0 %v1239
        %1768 = vmatprep.subr.mxu0 %v1244
        %1769 = vmatpush1.msra.mxu0 %v1243
        %1770 = vmatprep.subr.mxu0 %v1248
        %1771 = vmatpush1.msra.mxu0 %v1247
        %1772 = vmatprep.subr.mxu0 %v1252
        %1773 = vmatpush1.msra.mxu0 %v1251
        %1774 = vmatprep.subr.mxu0 %v1256
        %1775 = vmatpush1.msra.mxu0 %v1255
        %1776 = vmatprep.subr.mxu0 %v1260
        %1777 = vmatpush1.msra.mxu0 %v1259
        %1778 = vmatprep.subr.mxu0 %v1264
        %1779 = vmatpush1.msra.mxu0 %v1263
        %1780 = vmatprep.mubr.f32.mxu0 %v758
        %1781 = vmatmul.mubr.f32.gmra.mrb[0].mxu0 %v757
        %v1782 = vpop.f32.mrb[0].mxu0
        %v1783 = vadd.f32 %v1334, %v1782
        %v1784 = vpop.f32.mrb[0].mxu0
        %v1785 = vadd.f32 %v1336, %v1784
        %1786 = vmatprep.mubr.f32.mxu0 %v762
        %1787 = vmatmul.mubr.f32.gmra.mrb[0].mxu0 %v761
        %v1788 = vpop.f32.mrb[0].mxu0
        %v1789 = vadd.f32 %v1340, %v1788
        %v1790 = vpop.f32.mrb[0].mxu0
        %v1791 = vadd.f32 %v1342, %v1790
        %1792 = vmatprep.mubr.f32.mxu0 %v766
        %1793 = vmatmul.mubr.f32.gmra.mrb[0].mxu0 %v765
        %v1794 = vpop.f32.mrb[0].mxu0
        %v1795 = vadd.f32 %v1346, %v1794
        %v1796 = vpop.f32.mrb[0].mxu0
        %v1797 = vadd.f32 %v1348, %v1796
        %1798 = vmatprep.mubr.f32.mxu0 %v770
        %1799 = vmatmul.mubr.f32.gmra.mrb[0].mxu0 %v769
        %v1800 = vpop.f32.mrb[0].mxu0
        %v1801 = vadd.f32 %v1352, %v1800
        %v1802 = vpop.f32.mrb[0].mxu0
        %v1803 = vadd.f32 %v1354, %v1802
        %1804 = vmatprep.mubr.f32.mxu0 %v774
        %1805 = vmatmul.mubr.f32.gmra.mrb[0].mxu0 %v773
        %v1806 = vpop.f32.mrb[0].mxu0
        %v1807 = vadd.f32 %v1358, %v1806
        %v1808 = vpop.f32.mrb[0].mxu0
        %v1809 = vadd.f32 %v1360, %v1808
        %1810 = vmatprep.mubr.f32.mxu0 %v778
        %1811 = vmatmul.mubr.f32.gmra.mrb[0].mxu0 %v777
        %v1812 = vpop.f32.mrb[0].mxu0
        %v1813 = vadd.f32 %v1364, %v1812
        %v1814 = vpop.f32.mrb[0].mxu0
        %v1815 = vadd.f32 %v1366, %v1814
        %1816 = vmatprep.mubr.f32.mxu0 %v782
        %1817 = vmatmul.mubr.f32.gmra.mrb[0].mxu0 %v781
        %v1818 = vpop.f32.mrb[0].mxu0
        %v1819 = vadd.f32 %v1370, %v1818
        %v1820 = vpop.f32.mrb[0].mxu0
        %v1821 = vadd.f32 %v1372, %v1820
        %1822 = vmatprep.mubr.f32.mxu0 %v786
        %1823 = vmatmul.mubr.f32.gmra.mrb[0].mxu0 %v785
        %v1824 = vpop.f32.mrb[0].mxu0
        %v1825 = vadd.f32 %v1376, %v1824
        %v1826 = vpop.f32.mrb[0].mxu0
        %v1827 = vadd.f32 %v1378, %v1826
        %1828 = vmatprep.mubr.f32.mxu0 %v790
        %1829 = vmatmul.mubr.f32.gmra.mrb[0].mxu0 %v789
        %v1830 = vpop.f32.mrb[0].mxu0
        %v1831 = vadd.f32 %v1382, %v1830
        %v1832 = vpop.f32.mrb[0].mxu0
        %v1833 = vadd.f32 %v1384, %v1832
        %1834 = vmatprep.mubr.f32.mxu0 %v794
        %1835 = vmatmul.mubr.f32.gmra.mrb[0].mxu0 %v793
        %v1836 = vpop.f32.mrb[0].mxu0
        %v1837 = vadd.f32 %v1388, %v1836
        %v1838 = vpop.f32.mrb[0].mxu0
        %v1839 = vadd.f32 %v1390, %v1838
        %1840 = vmatprep.mubr.f32.mxu0 %v798
        %1841 = vmatmul.mubr.f32.gmra.mrb[0].mxu0 %v797
        %v1842 = vpop.f32.mrb[0].mxu0
        %v1843 = vadd.f32 %v1394, %v1842
        %v1844 = vpop.f32.mrb[0].mxu0
        %v1845 = vadd.f32 %v1396, %v1844
        %1846 = vmatprep.mubr.f32.mxu0 %v802
        %1847 = vmatmul.mubr.f32.gmra.mrb[0].mxu0 %v801
        %v1848 = vpop.f32.mrb[0].mxu0
        %v1849 = vadd.f32 %v1400, %v1848
        %v1850 = vpop.f32.mrb[0].mxu0
        %v1851 = vadd.f32 %v1402, %v1850
        %1852 = vmatprep.mubr.f32.mxu0 %v806
        %1853 = vmatmul.mubr.f32.gmra.mrb[0].mxu0 %v805
        %v1854 = vpop.f32.mrb[0].mxu0
        %v1855 = vadd.f32 %v1406, %v1854
        %v1856 = vpop.f32.mrb[0].mxu0
        %v1857 = vadd.f32 %v1408, %v1856
        %1858 = vmatprep.mubr.f32.mxu0 %v810
        %1859 = vmatmul.mubr.f32.gmra.mrb[0].mxu0 %v809
        %v1860 = vpop.f32.mrb[0].mxu0
        %v1861 = vadd.f32 %v1412, %v1860
        %v1862 = vpop.f32.mrb[0].mxu0
        %v1863 = vadd.f32 %v1414, %v1862
        %1864 = vmatprep.mubr.f32.mxu0 %v814
        %1865 = vmatmul.mubr.f32.gmra.mrb[0].mxu0 %v813
        %v1866 = vpop.f32.mrb[0].mxu0
        %v1867 = vadd.f32 %v1418, %v1866
        %v1868 = vpop.f32.mrb[0].mxu0
        %v1869 = vadd.f32 %v1420, %v1868
        %1870 = vmatprep.mubr.f32.mxu0 %v818
        %1871 = vmatmul.mubr.f32.gmra.mrb[0].mxu0 %v817
        %v1872 = vpop.f32.mrb[0].mxu0
        %v1873 = vadd.f32 %v1424, %v1872
        %v1874 = vpop.f32.mrb[0].mxu0
        %v1875 = vadd.f32 %v1426, %v1874
        %1876 = vmatprep.mubr.f32.mxu0 %v822
        %1877 = vmatmul.mubr.f32.gmra.mrb[0].mxu0 %v821
        %v1878 = vpop.f32.mrb[0].mxu0
        %v1879 = vadd.f32 %v1430, %v1878
        %v1880 = vpop.f32.mrb[0].mxu0
        %v1881 = vadd.f32 %v1432, %v1880
        %1882 = vmatprep.mubr.f32.mxu0 %v826
        %1883 = vmatmul.mubr.f32.gmra.mrb[0].mxu0 %v825
        %v1884 = vpop.f32.mrb[0].mxu0
        %v1885 = vadd.f32 %v1436, %v1884
        %v1886 = vpop.f32.mrb[0].mxu0
        %v1887 = vadd.f32 %v1438, %v1886
        %1888 = vmatprep.mubr.f32.mxu0 %v830
        %1889 = vmatmul.mubr.f32.gmra.mrb[0].mxu0 %v829
        %v1890 = vpop.f32.mrb[0].mxu0
        %v1891 = vadd.f32 %v1442, %v1890
        %v1892 = vpop.f32.mrb[0].mxu0
        %v1893 = vadd.f32 %v1444, %v1892
        %1894 = vmatprep.mubr.f32.mxu0 %v834
        %1895 = vmatmul.mubr.f32.gmra.mrb[0].mxu0 %v833
        %v1896 = vpop.f32.mrb[0].mxu0
        %v1897 = vadd.f32 %v1448, %v1896
        %v1898 = vpop.f32.mrb[0].mxu0
        %v1899 = vadd.f32 %v1450, %v1898
        %1900 = vmatprep.mubr.f32.mxu0 %v838
        %1901 = vmatmul.mubr.f32.gmra.mrb[0].mxu0 %v837
        %v1902 = vpop.f32.mrb[0].mxu0
        %v1903 = vadd.f32 %v1454, %v1902
        %v1904 = vpop.f32.mrb[0].mxu0
        %v1905 = vadd.f32 %v1456, %v1904
        %1906 = vmatprep.mubr.f32.mxu0 %v842
        %1907 = vmatmul.mubr.f32.gmra.mrb[0].mxu0 %v841
        %v1908 = vpop.f32.mrb[0].mxu0
        %v1909 = vadd.f32 %v1460, %v1908
        %v1910 = vpop.f32.mrb[0].mxu0
        %v1911 = vadd.f32 %v1462, %v1910
        %1912 = vmatprep.mubr.f32.mxu0 %v846
        %1913 = vmatmul.mubr.f32.gmra.mrb[0].mxu0 %v845
        %v1914 = vpop.f32.mrb[0].mxu0
        %v1915 = vadd.f32 %v1466, %v1914
        %v1916 = vpop.f32.mrb[0].mxu0
        %v1917 = vadd.f32 %v1468, %v1916
        %1918 = vmatprep.mubr.f32.mxu0 %v850
        %1919 = vmatmul.mubr.f32.gmra.mrb[0].mxu0 %v849
        %v1920 = vpop.f32.mrb[0].mxu0
        %v1921 = vadd.f32 %v1472, %v1920
        %v1922 = vpop.f32.mrb[0].mxu0
        %v1923 = vadd.f32 %v1474, %v1922
        %1924 = vmatprep.mubr.f32.mxu0 %v854
        %1925 = vmatmul.mubr.f32.gmra.mrb[0].mxu0 %v853
        %v1926 = vpop.f32.mrb[0].mxu0
        %v1927 = vadd.f32 %v1478, %v1926
        %v1928 = vpop.f32.mrb[0].mxu0
        %v1929 = vadd.f32 %v1480, %v1928
        %1930 = vmatprep.mubr.f32.mxu0 %v858
        %1931 = vmatmul.mubr.f32.gmra.mrb[0].mxu0 %v857
        %v1932 = vpop.f32.mrb[0].mxu0
        %v1933 = vadd.f32 %v1484, %v1932
        %v1934 = vpop.f32.mrb[0].mxu0
        %v1935 = vadd.f32 %v1486, %v1934
        %1936 = vmatprep.mubr.f32.mxu0 %v862
        %1937 = vmatmul.mubr.f32.gmra.mrb[0].mxu0 %v861
        %v1938 = vpop.f32.mrb[0].mxu0
        %v1939 = vadd.f32 %v1490, %v1938
        %v1940 = vpop.f32.mrb[0].mxu0
        %v1941 = vadd.f32 %v1492, %v1940
        %1942 = vmatprep.mubr.f32.mxu0 %v866
        %1943 = vmatmul.mubr.f32.gmra.mrb[0].mxu0 %v865
        %v1944 = vpop.f32.mrb[0].mxu0
        %v1945 = vadd.f32 %v1496, %v1944
        %v1946 = vpop.f32.mrb[0].mxu0
        %v1947 = vadd.f32 %v1498, %v1946
        %1948 = vmatprep.mubr.f32.mxu0 %v870
        %1949 = vmatmul.mubr.f32.gmra.mrb[0].mxu0 %v869
        %v1950 = vpop.f32.mrb[0].mxu0
        %v1951 = vadd.f32 %v1502, %v1950
        %v1952 = vpop.f32.mrb[0].mxu0
        %v1953 = vadd.f32 %v1504, %v1952
        %1954 = vmatprep.mubr.f32.mxu0 %v874
        %1955 = vmatmul.mubr.f32.gmra.mrb[0].mxu0 %v873
        %v1956 = vpop.f32.mrb[0].mxu0
        %v1957 = vadd.f32 %v1508, %v1956
        %v1958 = vpop.f32.mrb[0].mxu0
        %v1959 = vadd.f32 %v1510, %v1958
        %1960 = vmatprep.mubr.f32.mxu0 %v878
        %1961 = vmatmul.mubr.f32.gmra.mrb[0].mxu0 %v877
        %v1962 = vpop.f32.mrb[0].mxu0
        %v1963 = vadd.f32 %v1514, %v1962
        %v1964 = vpop.f32.mrb[0].mxu0
        %v1965 = vadd.f32 %v1516, %v1964
        %1966 = vmatprep.mubr.f32.mxu0 %v882
        %1967 = vmatmul.mubr.f32.gmra.mrb[0].mxu0 %v881
        %v1968 = vpop.f32.mrb[0].mxu0
        %v1969 = vadd.f32 %v1520, %v1968
        %v1970 = vpop.f32.mrb[0].mxu0
        %v1971 = vadd.f32 %v1522, %v1970
        %1972 = vmatprep.mubr.f32.mxu0 %v886
        %1973 = vmatmul.mubr.f32.gmra.mrb[0].mxu0 %v885
        %v1974 = vpop.f32.mrb[0].mxu0
        %v1975 = vadd.f32 %v1526, %v1974
        %v1976 = vpop.f32.mrb[0].mxu0
        %v1977 = vadd.f32 %v1528, %v1976
        %1978 = vmatprep.mubr.f32.mxu0 %v890
        %1979 = vmatmul.mubr.f32.gmra.mrb[0].mxu0 %v889
        %v1980 = vpop.f32.mrb[0].mxu0
        %v1981 = vadd.f32 %v1532, %v1980
        %v1982 = vpop.f32.mrb[0].mxu0
        %v1983 = vadd.f32 %v1534, %v1982
        %1984 = vmatprep.mubr.f32.mxu0 %v894
        %1985 = vmatmul.mubr.f32.gmra.mrb[0].mxu0 %v893
        %v1986 = vpop.f32.mrb[0].mxu0
        %v1987 = vadd.f32 %v1538, %v1986
        %v1988 = vpop.f32.mrb[0].mxu0
        %v1989 = vadd.f32 %v1540, %v1988
        %1990 = vmatprep.mubr.f32.mxu0 %v898
        %1991 = vmatmul.mubr.f32.gmra.mrb[0].mxu0 %v897
        %v1992 = vpop.f32.mrb[0].mxu0
        %v1993 = vadd.f32 %v1544, %v1992
        %v1994 = vpop.f32.mrb[0].mxu0
        %v1995 = vadd.f32 %v1546, %v1994
        %1996 = vmatprep.mubr.f32.mxu0 %v902
        %1997 = vmatmul.mubr.f32.gmra.mrb[0].mxu0 %v901
        %v1998 = vpop.f32.mrb[0].mxu0
        %v1999 = vadd.f32 %v1550, %v1998
        %v2000 = vpop.f32.mrb[0].mxu0
        %v2001 = vadd.f32 %v1552, %v2000
        %2002 = vmatprep.mubr.f32.mxu0 %v906
        %2003 = vmatmul.mubr.f32.gmra.mrb[0].mxu0 %v905
        %v2004 = vpop.f32.mrb[0].mxu0
        %v2005 = vadd.f32 %v1556, %v2004
        %v2006 = vpop.f32.mrb[0].mxu0
        %v2007 = vadd.f32 %v1558, %v2006
        %2008 = vmatprep.mubr.f32.mxu0 %v910
        %2009 = vmatmul.mubr.f32.gmra.mrb[0].mxu0 %v909
        %v2010 = vpop.f32.mrb[0].mxu0
        %v2011 = vadd.f32 %v1562, %v2010
        %v2012 = vpop.f32.mrb[0].mxu0
        %v2013 = vadd.f32 %v1564, %v2012
        %2014 = vmatprep.mubr.f32.mxu0 %v914
        %2015 = vmatmul.mubr.f32.gmra.mrb[0].mxu0 %v913
        %v2016 = vpop.f32.mrb[0].mxu0
        %v2017 = vadd.f32 %v1568, %v2016
        %v2018 = vpop.f32.mrb[0].mxu0
        %v2019 = vadd.f32 %v1570, %v2018
        %2020 = vmatprep.mubr.f32.mxu0 %v918
        %2021 = vmatmul.mubr.f32.gmra.mrb[0].mxu0 %v917
        %v2022 = vpop.f32.mrb[0].mxu0
        %v2023 = vadd.f32 %v1574, %v2022
        %v2024 = vpop.f32.mrb[0].mxu0
        %v2025 = vadd.f32 %v1576, %v2024
        %2026 = vmatprep.mubr.f32.mxu0 %v922
        %2027 = vmatmul.mubr.f32.gmra.mrb[0].mxu0 %v921
        %v2028 = vpop.f32.mrb[0].mxu0
        %v2029 = vadd.f32 %v1580, %v2028
        %v2030 = vpop.f32.mrb[0].mxu0
        %v2031 = vadd.f32 %v1582, %v2030
        %2032 = vmatprep.mubr.f32.mxu0 %v926
        %2033 = vmatmul.mubr.f32.gmra.mrb[0].mxu0 %v925
        %v2034 = vpop.f32.mrb[0].mxu0
        %v2035 = vadd.f32 %v1586, %v2034
        %v2036 = vpop.f32.mrb[0].mxu0
        %v2037 = vadd.f32 %v1588, %v2036
        %2038 = vmatprep.mubr.f32.mxu0 %v930
        %2039 = vmatmul.mubr.f32.gmra.mrb[0].mxu0 %v929
        %v2040 = vpop.f32.mrb[0].mxu0
        %v2041 = vadd.f32 %v1592, %v2040
        %v2042 = vpop.f32.mrb[0].mxu0
        %v2043 = vadd.f32 %v1594, %v2042
        %2044 = vmatprep.mubr.f32.mxu0 %v934
        %2045 = vmatmul.mubr.f32.gmra.mrb[0].mxu0 %v933
        %v2046 = vpop.f32.mrb[0].mxu0
        %v2047 = vadd.f32 %v1598, %v2046
        %v2048 = vpop.f32.mrb[0].mxu0
        %v2049 = vadd.f32 %v1600, %v2048
        %2050 = vmatprep.mubr.f32.mxu0 %v938
        %2051 = vmatmul.mubr.f32.gmra.mrb[0].mxu0 %v937
        %v2052 = vpop.f32.mrb[0].mxu0
        %v2053 = vadd.f32 %v1604, %v2052
        %v2054 = vpop.f32.mrb[0].mxu0
        %v2055 = vadd.f32 %v1606, %v2054
        %2056 = vmatprep.mubr.f32.mxu0 %v942
        %2057 = vmatmul.mubr.f32.gmra.mrb[0].mxu0 %v941
        %v2058 = vpop.f32.mrb[0].mxu0
        %v2059 = vadd.f32 %v1610, %v2058
        %v2060 = vpop.f32.mrb[0].mxu0
        %v2061 = vadd.f32 %v1612, %v2060
        %2062 = vmatprep.mubr.f32.mxu0 %v946
        %2063 = vmatmul.mubr.f32.gmra.mrb[0].mxu0 %v945
        %v2064 = vpop.f32.mrb[0].mxu0
        %v2065 = vadd.f32 %v1616, %v2064
        %v2066 = vpop.f32.mrb[0].mxu0
        %v2067 = vadd.f32 %v1618, %v2066
        %2068 = vmatprep.mubr.f32.mxu0 %v950
        %2069 = vmatmul.mubr.f32.gmra.mrb[0].mxu0 %v949
        %v2070 = vpop.f32.mrb[0].mxu0
        %v2071 = vadd.f32 %v1622, %v2070
        %v2072 = vpop.f32.mrb[0].mxu0
        %v2073 = vadd.f32 %v1624, %v2072
        %2074 = vmatprep.mubr.f32.mxu0 %v954
        %2075 = vmatmul.mubr.f32.gmra.mrb[0].mxu0 %v953
        %v2076 = vpop.f32.mrb[0].mxu0
        %v2077 = vadd.f32 %v1628, %v2076
        %v2078 = vpop.f32.mrb[0].mxu0
        %v2079 = vadd.f32 %v1630, %v2078
        %2080 = vmatprep.mubr.f32.mxu0 %v958
        %2081 = vmatmul.mubr.f32.gmra.mrb[0].mxu0 %v957
        %v2082 = vpop.f32.mrb[0].mxu0
        %v2083 = vadd.f32 %v1634, %v2082
        %v2084 = vpop.f32.mrb[0].mxu0
        %v2085 = vadd.f32 %v1636, %v2084
        %2086 = vmatprep.mubr.f32.mxu0 %v962
        %2087 = vmatmul.mubr.f32.gmra.mrb[0].mxu0 %v961
        %v2088 = vpop.f32.mrb[0].mxu0
        %v2089 = vadd.f32 %v1640, %v2088
        %v2090 = vpop.f32.mrb[0].mxu0
        %v2091 = vadd.f32 %v1642, %v2090
        %2092 = vmatprep.mubr.f32.mxu0 %v966
        %2093 = vmatmul.mubr.f32.gmra.mrb[0].mxu0 %v965
        %v2094 = vpop.f32.mrb[0].mxu0
        %v2095 = vadd.f32 %v1646, %v2094
        %v2096 = vpop.f32.mrb[0].mxu0
        %v2097 = vadd.f32 %v1648, %v2096
        %2098 = vmatprep.mubr.f32.mxu0 %v970
        %2099 = vmatmul.mubr.f32.gmra.mrb[0].mxu0 %v969
        %v2100 = vpop.f32.mrb[0].mxu0
        %v2101 = vadd.f32 %v1652, %v2100
        %v2102 = vpop.f32.mrb[0].mxu0
        %v2103 = vadd.f32 %v1654, %v2102
        %2104 = vmatprep.mubr.f32.mxu0 %v974
        %2105 = vmatmul.mubr.f32.gmra.mrb[0].mxu0 %v973
        %v2106 = vpop.f32.mrb[0].mxu0
        %v2107 = vadd.f32 %v1658, %v2106
        %v2108 = vpop.f32.mrb[0].mxu0
        %v2109 = vadd.f32 %v1660, %v2108
        %2110 = vmatprep.mubr.f32.mxu0 %v978
        %2111 = vmatmul.mubr.f32.gmra.mrb[0].mxu0 %v977
        %v2112 = vpop.f32.mrb[0].mxu0
        %v2113 = vadd.f32 %v1664, %v2112
        %v2114 = vpop.f32.mrb[0].mxu0
        %v2115 = vadd.f32 %v1666, %v2114
        %2116 = vmatprep.mubr.f32.mxu0 %v982
        %2117 = vmatmul.mubr.f32.gmra.mrb[0].mxu0 %v981
        %v2118 = vpop.f32.mrb[0].mxu0
        %v2119 = vadd.f32 %v1670, %v2118
        %v2120 = vpop.f32.mrb[0].mxu0
        %v2121 = vadd.f32 %v1672, %v2120
        %2122 = vmatprep.mubr.f32.mxu0 %v986
        %2123 = vmatmul.mubr.f32.gmra.mrb[0].mxu0 %v985
        %v2124 = vpop.f32.mrb[0].mxu0
        %v2125 = vadd.f32 %v1676, %v2124
        %v2126 = vpop.f32.mrb[0].mxu0
        %v2127 = vadd.f32 %v1678, %v2126
        %2128 = vmatprep.mubr.f32.mxu0 %v990
        %2129 = vmatmul.mubr.f32.gmra.mrb[0].mxu0 %v989
        %v2130 = vpop.f32.mrb[0].mxu0
        %v2131 = vadd.f32 %v1682, %v2130
        %v2132 = vpop.f32.mrb[0].mxu0
        %v2133 = vadd.f32 %v1684, %v2132
        %2134 = vmatprep.mubr.f32.mxu0 %v994
        %2135 = vmatmul.mubr.f32.gmra.mrb[0].mxu0 %v993
        %v2136 = vpop.f32.mrb[0].mxu0
        %v2137 = vadd.f32 %v1688, %v2136
        %v2138 = vpop.f32.mrb[0].mxu0
        %v2139 = vadd.f32 %v1690, %v2138
        %2140 = vmatprep.mubr.f32.mxu0 %v998
        %2141 = vmatmul.mubr.f32.gmra.mrb[0].mxu0 %v997
        %v2142 = vpop.f32.mrb[0].mxu0
        %v2143 = vadd.f32 %v1694, %v2142
        %v2144 = vpop.f32.mrb[0].mxu0
        %v2145 = vadd.f32 %v1696, %v2144
        %2146 = vmatprep.mubr.f32.mxu0 %v1002
        %2147 = vmatmul.mubr.f32.gmra.mrb[0].mxu0 %v1001
        %v2148 = vpop.f32.mrb[0].mxu0
        %v2149 = vadd.f32 %v1700, %v2148
        %v2150 = vpop.f32.mrb[0].mxu0
        %v2151 = vadd.f32 %v1702, %v2150
        %2152 = vmatprep.mubr.f32.mxu0 %v1006
        %2153 = vmatmul.mubr.f32.gmra.mrb[0].mxu0 %v1005
        %v2154 = vpop.f32.mrb[0].mxu0
        %v2155 = vadd.f32 %v1706, %v2154
        %v2156 = vpop.f32.mrb[0].mxu0
        %v2157 = vadd.f32 %v1708, %v2156
        %2158 = vmatprep.mubr.f32.mxu0 %v1010
        %2159 = vmatmul.mubr.f32.gmra.mrb[0].mxu0 %v1009
        %v2160 = vpop.f32.mrb[0].mxu0
        %v2161 = vadd.f32 %v1712, %v2160
        %v2162 = vpop.f32.mrb[0].mxu0
        %v2163 = vadd.f32 %v1714, %v2162
        %2164 = vdwg.mxu0
        %2165 = vmatprep.subr.mxu0 %v1014
        %2166 = vmatpush1.msra.mxu0 %v1013
        %2167 = vmatprep.subr.mxu0 %v1018
        %2168 = vmatpush1.msra.mxu0 %v1017
        %2169 = vmatprep.subr.mxu0 %v1022
        %2170 = vmatpush1.msra.mxu0 %v1021
        %2171 = vmatprep.subr.mxu0 %v1026
        %2172 = vmatpush1.msra.mxu0 %v1025
        %2173 = vmatprep.subr.mxu0 %v1030
        %2174 = vmatpush1.msra.mxu0 %v1029
        %2175 = vmatprep.subr.mxu0 %v1034
        %2176 = vmatpush1.msra.mxu0 %v1033
        %2177 = vmatprep.subr.mxu0 %v1038
        %2178 = vmatpush1.msra.mxu0 %v1037
        %2179 = vmatprep.subr.mxu0 %v1042
        %2180 = vmatpush1.msra.mxu0 %v1041
        %2181 = vmatprep.subr.mxu0 %v1046
        %2182 = vmatpush1.msra.mxu0 %v1045
        %2183 = vmatprep.subr.mxu0 %v1050
        %2184 = vmatpush1.msra.mxu0 %v1049
        %2185 = vmatprep.subr.mxu0 %v1054
        %2186 = vmatpush1.msra.mxu0 %v1053
        %2187 = vmatprep.subr.mxu0 %v1058
        %2188 = vmatpush1.msra.mxu0 %v1057
        %2189 = vmatprep.subr.mxu0 %v1062
        %2190 = vmatpush1.msra.mxu0 %v1061
        %2191 = vmatprep.subr.mxu0 %v1066
        %2192 = vmatpush1.msra.mxu0 %v1065
        %2193 = vmatprep.subr.mxu0 %v1070
        %2194 = vmatpush1.msra.mxu0 %v1069
        %2195 = vmatprep.subr.mxu0 %v1074
        %2196 = vmatpush1.msra.mxu0 %v1073
        %2197 = vmatprep.subr.mxu0 %v1078
        %2198 = vmatpush1.msra.mxu0 %v1077
        %2199 = vmatprep.subr.mxu0 %v1082
        %2200 = vmatpush1.msra.mxu0 %v1081
        %2201 = vmatprep.subr.mxu0 %v1086
        %2202 = vmatpush1.msra.mxu0 %v1085
        %2203 = vmatprep.subr.mxu0 %v1090
        %2204 = vmatpush1.msra.mxu0 %v1089
        %2205 = vmatprep.subr.mxu0 %v1094
        %2206 = vmatpush1.msra.mxu0 %v1093
        %2207 = vmatprep.subr.mxu0 %v1098
        %2208 = vmatpush1.msra.mxu0 %v1097
        %2209 = vmatprep.subr.mxu0 %v1102
        %2210 = vmatpush1.msra.mxu0 %v1101
        %2211 = vmatprep.subr.mxu0 %v1106
        %2212 = vmatpush1.msra.mxu0 %v1105
        %2213 = vmatprep.subr.mxu0 %v1110
        %2214 = vmatpush1.msra.mxu0 %v1109
        %2215 = vmatprep.subr.mxu0 %v1114
        %2216 = vmatpush1.msra.mxu0 %v1113
        %2217 = vmatprep.subr.mxu0 %v1118
        %2218 = vmatpush1.msra.mxu0 %v1117
        %2219 = vmatprep.subr.mxu0 %v1122
        %2220 = vmatpush1.msra.mxu0 %v1121
        %2221 = vmatprep.subr.mxu0 %v1126
        %2222 = vmatpush1.msra.mxu0 %v1125
        %2223 = vmatprep.subr.mxu0 %v1130
        %2224 = vmatpush1.msra.mxu0 %v1129
        %2225 = vmatprep.subr.mxu0 %v1134
        %2226 = vmatpush1.msra.mxu0 %v1133
        %2227 = vmatprep.subr.mxu0 %v1138
        %2228 = vmatpush1.msra.mxu0 %v1137
        %2229 = vmatprep.mubr.f32.mxu0 %v756
        %2230 = vmatmul.mubr.f32.gmra.mrb[0].mxu0 %v755
        %v2231 = vpop.f32.mrb[0].mxu0
        %v2232 = vadd.f32 0.0, %v2231
        %v2233 = vpop.f32.mrb[0].mxu0
        %v2234 = vadd.f32 0.0, %v2233
        %2235 = vmatprep.mubr.f32.mxu0 %v760
        %2236 = vmatmul.mubr.f32.gmra.mrb[0].mxu0 %v759
        %v2237 = vpop.f32.mrb[0].mxu0
        %v2238 = vadd.f32 0.0, %v2237
        %v2239 = vpop.f32.mrb[0].mxu0
        %v2240 = vadd.f32 0.0, %v2239
        %2241 = vmatprep.mubr.f32.mxu0 %v764
        %2242 = vmatmul.mubr.f32.gmra.mrb[0].mxu0 %v763
        %v2243 = vpop.f32.mrb[0].mxu0
        %v2244 = vadd.f32 0.0, %v2243
        %v2245 = vpop.f32.mrb[0].mxu0
        %v2246 = vadd.f32 0.0, %v2245
        %2247 = vmatprep.mubr.f32.mxu0 %v768
        %2248 = vmatmul.mubr.f32.gmra.mrb[0].mxu0 %v767
        %v2249 = vpop.f32.mrb[0].mxu0
        %v2250 = vadd.f32 0.0, %v2249
        %v2251 = vpop.f32.mrb[0].mxu0
        %v2252 = vadd.f32 0.0, %v2251
        %2253 = vmatprep.mubr.f32.mxu0 %v772
        %2254 = vmatmul.mubr.f32.gmra.mrb[0].mxu0 %v771
        %v2255 = vpop.f32.mrb[0].mxu0
        %v2256 = vadd.f32 0.0, %v2255
        %v2257 = vpop.f32.mrb[0].mxu0
        %v2258 = vadd.f32 0.0, %v2257
        %2259 = vmatprep.mubr.f32.mxu0 %v776
        %2260 = vmatmul.mubr.f32.gmra.mrb[0].mxu0 %v775
        %v2261 = vpop.f32.mrb[0].mxu0
        %v2262 = vadd.f32 0.0, %v2261
        %v2263 = vpop.f32.mrb[0].mxu0
        %v2264 = vadd.f32 0.0, %v2263
        %2265 = vmatprep.mubr.f32.mxu0 %v780
        %2266 = vmatmul.mubr.f32.gmra.mrb[0].mxu0 %v779
        %v2267 = vpop.f32.mrb[0].mxu0
        %v2268 = vadd.f32 0.0, %v2267
        %v2269 = vpop.f32.mrb[0].mxu0
        %v2270 = vadd.f32 0.0, %v2269
        %2271 = vmatprep.mubr.f32.mxu0 %v784
        %2272 = vmatmul.mubr.f32.gmra.mrb[0].mxu0 %v783
        %v2273 = vpop.f32.mrb[0].mxu0
        %v2274 = vadd.f32 0.0, %v2273
        %v2275 = vpop.f32.mrb[0].mxu0
        %v2276 = vadd.f32 0.0, %v2275
        %2277 = vmatprep.mubr.f32.mxu0 %v788
        %2278 = vmatmul.mubr.f32.gmra.mrb[0].mxu0 %v787
        %v2279 = vpop.f32.mrb[0].mxu0
        %v2280 = vadd.f32 0.0, %v2279
        %v2281 = vpop.f32.mrb[0].mxu0
        %v2282 = vadd.f32 0.0, %v2281
        %2283 = vmatprep.mubr.f32.mxu0 %v792
        %2284 = vmatmul.mubr.f32.gmra.mrb[0].mxu0 %v791
        %v2285 = vpop.f32.mrb[0].mxu0
        %v2286 = vadd.f32 0.0, %v2285
        %v2287 = vpop.f32.mrb[0].mxu0
        %v2288 = vadd.f32 0.0, %v2287
        %2289 = vmatprep.mubr.f32.mxu0 %v796
        %2290 = vmatmul.mubr.f32.gmra.mrb[0].mxu0 %v795
        %v2291 = vpop.f32.mrb[0].mxu0
        %v2292 = vadd.f32 0.0, %v2291
        %v2293 = vpop.f32.mrb[0].mxu0
        %v2294 = vadd.f32 0.0, %v2293
        %2295 = vmatprep.mubr.f32.mxu0 %v800
        %2296 = vmatmul.mubr.f32.gmra.mrb[0].mxu0 %v799
        %v2297 = vpop.f32.mrb[0].mxu0
        %v2298 = vadd.f32 0.0, %v2297
        %v2299 = vpop.f32.mrb[0].mxu0
        %v2300 = vadd.f32 0.0, %v2299
        %2301 = vmatprep.mubr.f32.mxu0 %v804
        %2302 = vmatmul.mubr.f32.gmra.mrb[0].mxu0 %v803
        %v2303 = vpop.f32.mrb[0].mxu0
        %v2304 = vadd.f32 0.0, %v2303
        %v2305 = vpop.f32.mrb[0].mxu0
        %v2306 = vadd.f32 0.0, %v2305
        %2307 = vmatprep.mubr.f32.mxu0 %v808
        %2308 = vmatmul.mubr.f32.gmra.mrb[0].mxu0 %v807
        %v2309 = vpop.f32.mrb[0].mxu0
        %v2310 = vadd.f32 0.0, %v2309
        %v2311 = vpop.f32.mrb[0].mxu0
        %v2312 = vadd.f32 0.0, %v2311
        %2313 = vmatprep.mubr.f32.mxu0 %v812
        %2314 = vmatmul.mubr.f32.gmra.mrb[0].mxu0 %v811
        %v2315 = vpop.f32.mrb[0].mxu0
        %v2316 = vadd.f32 0.0, %v2315
        %v2317 = vpop.f32.mrb[0].mxu0
        %v2318 = vadd.f32 0.0, %v2317
        %2319 = vmatprep.mubr.f32.mxu0 %v816
        %2320 = vmatmul.mubr.f32.gmra.mrb[0].mxu0 %v815
        %v2321 = vpop.f32.mrb[0].mxu0
        %v2322 = vadd.f32 0.0, %v2321
        %v2323 = vpop.f32.mrb[0].mxu0
        %v2324 = vadd.f32 0.0, %v2323
        %2325 = vmatprep.mubr.f32.mxu0 %v820
        %2326 = vmatmul.mubr.f32.gmra.mrb[0].mxu0 %v819
        %v2327 = vpop.f32.mrb[0].mxu0
        %v2328 = vadd.f32 0.0, %v2327
        %v2329 = vpop.f32.mrb[0].mxu0
        %v2330 = vadd.f32 0.0, %v2329
        %2331 = vmatprep.mubr.f32.mxu0 %v824
        %2332 = vmatmul.mubr.f32.gmra.mrb[0].mxu0 %v823
        %v2333 = vpop.f32.mrb[0].mxu0
        %v2334 = vadd.f32 0.0, %v2333
        %v2335 = vpop.f32.mrb[0].mxu0
        %v2336 = vadd.f32 0.0, %v2335
        %2337 = vmatprep.mubr.f32.mxu0 %v828
        %2338 = vmatmul.mubr.f32.gmra.mrb[0].mxu0 %v827
        %v2339 = vpop.f32.mrb[0].mxu0
        %v2340 = vadd.f32 0.0, %v2339
        %v2341 = vpop.f32.mrb[0].mxu0
        %v2342 = vadd.f32 0.0, %v2341
        %2343 = vmatprep.mubr.f32.mxu0 %v832
        %2344 = vmatmul.mubr.f32.gmra.mrb[0].mxu0 %v831
        %v2345 = vpop.f32.mrb[0].mxu0
        %v2346 = vadd.f32 0.0, %v2345
        %v2347 = vpop.f32.mrb[0].mxu0
        %v2348 = vadd.f32 0.0, %v2347
        %2349 = vmatprep.mubr.f32.mxu0 %v836
        %2350 = vmatmul.mubr.f32.gmra.mrb[0].mxu0 %v835
        %v2351 = vpop.f32.mrb[0].mxu0
        %v2352 = vadd.f32 0.0, %v2351
        %v2353 = vpop.f32.mrb[0].mxu0
        %v2354 = vadd.f32 0.0, %v2353
        %2355 = vmatprep.mubr.f32.mxu0 %v840
        %2356 = vmatmul.mubr.f32.gmra.mrb[0].mxu0 %v839
        %v2357 = vpop.f32.mrb[0].mxu0
        %v2358 = vadd.f32 0.0, %v2357
        %v2359 = vpop.f32.mrb[0].mxu0
        %v2360 = vadd.f32 0.0, %v2359
        %2361 = vmatprep.mubr.f32.mxu0 %v844
        %2362 = vmatmul.mubr.f32.gmra.mrb[0].mxu0 %v843
        %v2363 = vpop.f32.mrb[0].mxu0
        %v2364 = vadd.f32 0.0, %v2363
        %v2365 = vpop.f32.mrb[0].mxu0
        %v2366 = vadd.f32 0.0, %v2365
        %2367 = vmatprep.mubr.f32.mxu0 %v848
        %2368 = vmatmul.mubr.f32.gmra.mrb[0].mxu0 %v847
        %v2369 = vpop.f32.mrb[0].mxu0
        %v2370 = vadd.f32 0.0, %v2369
        %v2371 = vpop.f32.mrb[0].mxu0
        %v2372 = vadd.f32 0.0, %v2371
        %2373 = vmatprep.mubr.f32.mxu0 %v852
        %2374 = vmatmul.mubr.f32.gmra.mrb[0].mxu0 %v851
        %v2375 = vpop.f32.mrb[0].mxu0
        %v2376 = vadd.f32 0.0, %v2375
        %v2377 = vpop.f32.mrb[0].mxu0
        %v2378 = vadd.f32 0.0, %v2377
        %2379 = vmatprep.mubr.f32.mxu0 %v856
        %2380 = vmatmul.mubr.f32.gmra.mrb[0].mxu0 %v855
        %v2381 = vpop.f32.mrb[0].mxu0
        %v2382 = vadd.f32 0.0, %v2381
        %v2383 = vpop.f32.mrb[0].mxu0
        %v2384 = vadd.f32 0.0, %v2383
        %2385 = vmatprep.mubr.f32.mxu0 %v860
        %2386 = vmatmul.mubr.f32.gmra.mrb[0].mxu0 %v859
        %v2387 = vpop.f32.mrb[0].mxu0
        %v2388 = vadd.f32 0.0, %v2387
        %v2389 = vpop.f32.mrb[0].mxu0
        %v2390 = vadd.f32 0.0, %v2389
        %2391 = vmatprep.mubr.f32.mxu0 %v864
        %2392 = vmatmul.mubr.f32.gmra.mrb[0].mxu0 %v863
        %v2393 = vpop.f32.mrb[0].mxu0
        %v2394 = vadd.f32 0.0, %v2393
        %v2395 = vpop.f32.mrb[0].mxu0
        %v2396 = vadd.f32 0.0, %v2395
        %2397 = vmatprep.mubr.f32.mxu0 %v868
        %2398 = vmatmul.mubr.f32.gmra.mrb[0].mxu0 %v867
        %v2399 = vpop.f32.mrb[0].mxu0
        %v2400 = vadd.f32 0.0, %v2399
        %v2401 = vpop.f32.mrb[0].mxu0
        %v2402 = vadd.f32 0.0, %v2401
        %2403 = vmatprep.mubr.f32.mxu0 %v872
        %2404 = vmatmul.mubr.f32.gmra.mrb[0].mxu0 %v871
        %v2405 = vpop.f32.mrb[0].mxu0
        %v2406 = vadd.f32 0.0, %v2405
        %v2407 = vpop.f32.mrb[0].mxu0
        %v2408 = vadd.f32 0.0, %v2407
        %2409 = vmatprep.mubr.f32.mxu0 %v876
        %2410 = vmatmul.mubr.f32.gmra.mrb[0].mxu0 %v875
        %v2411 = vpop.f32.mrb[0].mxu0
        %v2412 = vadd.f32 0.0, %v2411
        %v2413 = vpop.f32.mrb[0].mxu0
        %v2414 = vadd.f32 0.0, %v2413
        %2415 = vmatprep.mubr.f32.mxu0 %v880
        %2416 = vmatmul.mubr.f32.gmra.mrb[0].mxu0 %v879
        %v2417 = vpop.f32.mrb[0].mxu0
        %v2418 = vadd.f32 0.0, %v2417
        %v2419 = vpop.f32.mrb[0].mxu0
        %v2420 = vadd.f32 0.0, %v2419
        %2421 = vmatprep.mubr.f32.mxu0 %v884
        %2422 = vmatmul.mubr.f32.gmra.mrb[0].mxu0 %v883
        %v2423 = vpop.f32.mrb[0].mxu0
        %v2424 = vadd.f32 0.0, %v2423
        %v2425 = vpop.f32.mrb[0].mxu0
        %v2426 = vadd.f32 0.0, %v2425
        %2427 = vmatprep.mubr.f32.mxu0 %v888
        %2428 = vmatmul.mubr.f32.gmra.mrb[0].mxu0 %v887
        %v2429 = vpop.f32.mrb[0].mxu0
        %v2430 = vadd.f32 0.0, %v2429
        %v2431 = vpop.f32.mrb[0].mxu0
        %v2432 = vadd.f32 0.0, %v2431
        %2433 = vmatprep.mubr.f32.mxu0 %v892
        %2434 = vmatmul.mubr.f32.gmra.mrb[0].mxu0 %v891
        %v2435 = vpop.f32.mrb[0].mxu0
        %v2436 = vadd.f32 0.0, %v2435
        %v2437 = vpop.f32.mrb[0].mxu0
        %v2438 = vadd.f32 0.0, %v2437
        %2439 = vmatprep.mubr.f32.mxu0 %v896
        %2440 = vmatmul.mubr.f32.gmra.mrb[0].mxu0 %v895
        %v2441 = vpop.f32.mrb[0].mxu0
        %v2442 = vadd.f32 0.0, %v2441
        %v2443 = vpop.f32.mrb[0].mxu0
        %v2444 = vadd.f32 0.0, %v2443
        %2445 = vmatprep.mubr.f32.mxu0 %v900
        %2446 = vmatmul.mubr.f32.gmra.mrb[0].mxu0 %v899
        %v2447 = vpop.f32.mrb[0].mxu0
        %v2448 = vadd.f32 0.0, %v2447
        %v2449 = vpop.f32.mrb[0].mxu0
        %v2450 = vadd.f32 0.0, %v2449
        %2451 = vmatprep.mubr.f32.mxu0 %v904
        %2452 = vmatmul.mubr.f32.gmra.mrb[0].mxu0 %v903
        %v2453 = vpop.f32.mrb[0].mxu0
        %v2454 = vadd.f32 0.0, %v2453
        %v2455 = vpop.f32.mrb[0].mxu0
        %v2456 = vadd.f32 0.0, %v2455
        %2457 = vmatprep.mubr.f32.mxu0 %v908
        %2458 = vmatmul.mubr.f32.gmra.mrb[0].mxu0 %v907
        %v2459 = vpop.f32.mrb[0].mxu0
        %v2460 = vadd.f32 0.0, %v2459
        %v2461 = vpop.f32.mrb[0].mxu0
        %v2462 = vadd.f32 0.0, %v2461
        %2463 = vmatprep.mubr.f32.mxu0 %v912
        %2464 = vmatmul.mubr.f32.gmra.mrb[0].mxu0 %v911
        %v2465 = vpop.f32.mrb[0].mxu0
        %v2466 = vadd.f32 0.0, %v2465
        %v2467 = vpop.f32.mrb[0].mxu0
        %v2468 = vadd.f32 0.0, %v2467
        %2469 = vmatprep.mubr.f32.mxu0 %v916
        %2470 = vmatmul.mubr.f32.gmra.mrb[0].mxu0 %v915
        %v2471 = vpop.f32.mrb[0].mxu0
        %v2472 = vadd.f32 0.0, %v2471
        %v2473 = vpop.f32.mrb[0].mxu0
        %v2474 = vadd.f32 0.0, %v2473
        %2475 = vmatprep.mubr.f32.mxu0 %v920
        %2476 = vmatmul.mubr.f32.gmra.mrb[0].mxu0 %v919
        %v2477 = vpop.f32.mrb[0].mxu0
        %v2478 = vadd.f32 0.0, %v2477
        %v2479 = vpop.f32.mrb[0].mxu0
        %v2480 = vadd.f32 0.0, %v2479
        %2481 = vmatprep.mubr.f32.mxu0 %v924
        %2482 = vmatmul.mubr.f32.gmra.mrb[0].mxu0 %v923
        %v2483 = vpop.f32.mrb[0].mxu0
        %v2484 = vadd.f32 0.0, %v2483
        %v2485 = vpop.f32.mrb[0].mxu0
        %v2486 = vadd.f32 0.0, %v2485
        %2487 = vmatprep.mubr.f32.mxu0 %v928
        %2488 = vmatmul.mubr.f32.gmra.mrb[0].mxu0 %v927
        %v2489 = vpop.f32.mrb[0].mxu0
        %v2490 = vadd.f32 0.0, %v2489
        %v2491 = vpop.f32.mrb[0].mxu0
        %v2492 = vadd.f32 0.0, %v2491
        %2493 = vmatprep.mubr.f32.mxu0 %v932
        %2494 = vmatmul.mubr.f32.gmra.mrb[0].mxu0 %v931
        %v2495 = vpop.f32.mrb[0].mxu0
        %v2496 = vadd.f32 0.0, %v2495
        %v2497 = vpop.f32.mrb[0].mxu0
        %v2498 = vadd.f32 0.0, %v2497
        %2499 = vmatprep.mubr.f32.mxu0 %v936
        %2500 = vmatmul.mubr.f32.gmra.mrb[0].mxu0 %v935
        %v2501 = vpop.f32.mrb[0].mxu0
        %v2502 = vadd.f32 0.0, %v2501
        %v2503 = vpop.f32.mrb[0].mxu0
        %v2504 = vadd.f32 0.0, %v2503
        %2505 = vmatprep.mubr.f32.mxu0 %v940
        %2506 = vmatmul.mubr.f32.gmra.mrb[0].mxu0 %v939
        %v2507 = vpop.f32.mrb[0].mxu0
        %v2508 = vadd.f32 0.0, %v2507
        %v2509 = vpop.f32.mrb[0].mxu0
        %v2510 = vadd.f32 0.0, %v2509
        %2511 = vmatprep.mubr.f32.mxu0 %v944
        %2512 = vmatmul.mubr.f32.gmra.mrb[0].mxu0 %v943
        %v2513 = vpop.f32.mrb[0].mxu0
        %v2514 = vadd.f32 0.0, %v2513
        %v2515 = vpop.f32.mrb[0].mxu0
        %v2516 = vadd.f32 0.0, %v2515
        %2517 = vmatprep.mubr.f32.mxu0 %v948
        %2518 = vmatmul.mubr.f32.gmra.mrb[0].mxu0 %v947
        %v2519 = vpop.f32.mrb[0].mxu0
        %v2520 = vadd.f32 0.0, %v2519
        %v2521 = vpop.f32.mrb[0].mxu0
        %v2522 = vadd.f32 0.0, %v2521
        %2523 = vmatprep.mubr.f32.mxu0 %v952
        %2524 = vmatmul.mubr.f32.gmra.mrb[0].mxu0 %v951
        %v2525 = vpop.f32.mrb[0].mxu0
        %v2526 = vadd.f32 0.0, %v2525
        %v2527 = vpop.f32.mrb[0].mxu0
        %v2528 = vadd.f32 0.0, %v2527
        %2529 = vmatprep.mubr.f32.mxu0 %v956
        %2530 = vmatmul.mubr.f32.gmra.mrb[0].mxu0 %v955
        %v2531 = vpop.f32.mrb[0].mxu0
        %v2532 = vadd.f32 0.0, %v2531
        %v2533 = vpop.f32.mrb[0].mxu0
        %v2534 = vadd.f32 0.0, %v2533
        %2535 = vmatprep.mubr.f32.mxu0 %v960
        %2536 = vmatmul.mubr.f32.gmra.mrb[0].mxu0 %v959
        %v2537 = vpop.f32.mrb[0].mxu0
        %v2538 = vadd.f32 0.0, %v2537
        %v2539 = vpop.f32.mrb[0].mxu0
        %v2540 = vadd.f32 0.0, %v2539
        %2541 = vmatprep.mubr.f32.mxu0 %v964
        %2542 = vmatmul.mubr.f32.gmra.mrb[0].mxu0 %v963
        %v2543 = vpop.f32.mrb[0].mxu0
        %v2544 = vadd.f32 0.0, %v2543
        %v2545 = vpop.f32.mrb[0].mxu0
        %v2546 = vadd.f32 0.0, %v2545
        %2547 = vmatprep.mubr.f32.mxu0 %v968
        %2548 = vmatmul.mubr.f32.gmra.mrb[0].mxu0 %v967
        %v2549 = vpop.f32.mrb[0].mxu0
        %v2550 = vadd.f32 0.0, %v2549
        %v2551 = vpop.f32.mrb[0].mxu0
        %v2552 = vadd.f32 0.0, %v2551
        %2553 = vmatprep.mubr.f32.mxu0 %v972
        %2554 = vmatmul.mubr.f32.gmra.mrb[0].mxu0 %v971
        %v2555 = vpop.f32.mrb[0].mxu0
        %v2556 = vadd.f32 0.0, %v2555
        %v2557 = vpop.f32.mrb[0].mxu0
        %v2558 = vadd.f32 0.0, %v2557
        %2559 = vmatprep.mubr.f32.mxu0 %v976
        %2560 = vmatmul.mubr.f32.gmra.mrb[0].mxu0 %v975
        %v2561 = vpop.f32.mrb[0].mxu0
        %v2562 = vadd.f32 0.0, %v2561
        %v2563 = vpop.f32.mrb[0].mxu0
        %v2564 = vadd.f32 0.0, %v2563
        %2565 = vmatprep.mubr.f32.mxu0 %v980
        %2566 = vmatmul.mubr.f32.gmra.mrb[0].mxu0 %v979
        %v2567 = vpop.f32.mrb[0].mxu0
        %v2568 = vadd.f32 0.0, %v2567
        %v2569 = vpop.f32.mrb[0].mxu0
        %v2570 = vadd.f32 0.0, %v2569
        %2571 = vmatprep.mubr.f32.mxu0 %v984
        %2572 = vmatmul.mubr.f32.gmra.mrb[0].mxu0 %v983
        %v2573 = vpop.f32.mrb[0].mxu0
        %v2574 = vadd.f32 0.0, %v2573
        %v2575 = vpop.f32.mrb[0].mxu0
        %v2576 = vadd.f32 0.0, %v2575
        %2577 = vmatprep.mubr.f32.mxu0 %v988
        %2578 = vmatmul.mubr.f32.gmra.mrb[0].mxu0 %v987
        %v2579 = vpop.f32.mrb[0].mxu0
        %v2580 = vadd.f32 0.0, %v2579
        %v2581 = vpop.f32.mrb[0].mxu0
        %v2582 = vadd.f32 0.0, %v2581
        %2583 = vmatprep.mubr.f32.mxu0 %v992
        %2584 = vmatmul.mubr.f32.gmra.mrb[0].mxu0 %v991
        %v2585 = vpop.f32.mrb[0].mxu0
        %v2586 = vadd.f32 0.0, %v2585
        %v2587 = vpop.f32.mrb[0].mxu0
        %v2588 = vadd.f32 0.0, %v2587
        %2589 = vmatprep.mubr.f32.mxu0 %v996
        %2590 = vmatmul.mubr.f32.gmra.mrb[0].mxu0 %v995
        %v2591 = vpop.f32.mrb[0].mxu0
        %v2592 = vadd.f32 0.0, %v2591
        %v2593 = vpop.f32.mrb[0].mxu0
        %v2594 = vadd.f32 0.0, %v2593
        %2595 = vmatprep.mubr.f32.mxu0 %v1000
        %2596 = vmatmul.mubr.f32.gmra.mrb[0].mxu0 %v999
        %v2597 = vpop.f32.mrb[0].mxu0
        %v2598 = vadd.f32 0.0, %v2597
        %v2599 = vpop.f32.mrb[0].mxu0
        %v2600 = vadd.f32 0.0, %v2599
        %2601 = vmatprep.mubr.f32.mxu0 %v1004
        %2602 = vmatmul.mubr.f32.gmra.mrb[0].mxu0 %v1003
        %v2603 = vpop.f32.mrb[0].mxu0
        %v2604 = vadd.f32 0.0, %v2603
        %v2605 = vpop.f32.mrb[0].mxu0
        %v2606 = vadd.f32 0.0, %v2605
        %2607 = vmatprep.mubr.f32.mxu0 %v1008
        %2608 = vmatmul.mubr.f32.gmra.mrb[0].mxu0 %v1007
        %v2609 = vpop.f32.mrb[0].mxu0
        %v2610 = vadd.f32 0.0, %v2609
        %v2611 = vpop.f32.mrb[0].mxu0
        %v2612 = vadd.f32 0.0, %v2611
        %2613 = vdwg.mxu0
        %2614 = vmatprep.subr.mxu0 %v1142
        %2615 = vmatpush1.msra.mxu0 %v1141
        %2616 = vmatprep.subr.mxu0 %v1146
        %2617 = vmatpush1.msra.mxu0 %v1145
        %2618 = vmatprep.subr.mxu0 %v1150
        %2619 = vmatpush1.msra.mxu0 %v1149
        %2620 = vmatprep.subr.mxu0 %v1154
        %2621 = vmatpush1.msra.mxu0 %v1153
        %2622 = vmatprep.subr.mxu0 %v1158
        %2623 = vmatpush1.msra.mxu0 %v1157
        %2624 = vmatprep.subr.mxu0 %v1162
        %2625 = vmatpush1.msra.mxu0 %v1161
        %2626 = vmatprep.subr.mxu0 %v1166
        %2627 = vmatpush1.msra.mxu0 %v1165
        %2628 = vmatprep.subr.mxu0 %v1170
        %2629 = vmatpush1.msra.mxu0 %v1169
        %2630 = vmatprep.subr.mxu0 %v1174
        %2631 = vmatpush1.msra.mxu0 %v1173
        %2632 = vmatprep.subr.mxu0 %v1178
        %2633 = vmatpush1.msra.mxu0 %v1177
        %2634 = vmatprep.subr.mxu0 %v1182
        %2635 = vmatpush1.msra.mxu0 %v1181
        %2636 = vmatprep.subr.mxu0 %v1186
        %2637 = vmatpush1.msra.mxu0 %v1185
        %2638 = vmatprep.subr.mxu0 %v1190
        %2639 = vmatpush1.msra.mxu0 %v1189
        %2640 = vmatprep.subr.mxu0 %v1194
        %2641 = vmatpush1.msra.mxu0 %v1193
        %2642 = vmatprep.subr.mxu0 %v1198
        %2643 = vmatpush1.msra.mxu0 %v1197
        %2644 = vmatprep.subr.mxu0 %v1202
        %2645 = vmatpush1.msra.mxu0 %v1201
        %2646 = vmatprep.subr.mxu0 %v1206
        %2647 = vmatpush1.msra.mxu0 %v1205
        %2648 = vmatprep.subr.mxu0 %v1210
        %2649 = vmatpush1.msra.mxu0 %v1209
        %2650 = vmatprep.subr.mxu0 %v1214
        %2651 = vmatpush1.msra.mxu0 %v1213
        %2652 = vmatprep.subr.mxu0 %v1218
        %2653 = vmatpush1.msra.mxu0 %v1217
        %2654 = vmatprep.subr.mxu0 %v1222
        %2655 = vmatpush1.msra.mxu0 %v1221
        %2656 = vmatprep.subr.mxu0 %v1226
        %2657 = vmatpush1.msra.mxu0 %v1225
        %2658 = vmatprep.subr.mxu0 %v1230
        %2659 = vmatpush1.msra.mxu0 %v1229
        %2660 = vmatprep.subr.mxu0 %v1234
        %2661 = vmatpush1.msra.mxu0 %v1233
        %2662 = vmatprep.subr.mxu0 %v1238
        %2663 = vmatpush1.msra.mxu0 %v1237
        %2664 = vmatprep.subr.mxu0 %v1242
        %2665 = vmatpush1.msra.mxu0 %v1241
        %2666 = vmatprep.subr.mxu0 %v1246
        %2667 = vmatpush1.msra.mxu0 %v1245
        %2668 = vmatprep.subr.mxu0 %v1250
        %2669 = vmatpush1.msra.mxu0 %v1249
        %2670 = vmatprep.subr.mxu0 %v1254
        %2671 = vmatpush1.msra.mxu0 %v1253
        %2672 = vmatprep.subr.mxu0 %v1258
        %2673 = vmatpush1.msra.mxu0 %v1257
        %2674 = vmatprep.subr.mxu0 %v1262
        %2675 = vmatpush1.msra.mxu0 %v1261
        %2676 = vmatprep.subr.mxu0 %v1266
        %2677 = vmatpush1.msra.mxu0 %v1265
        %2678 = vmatprep.mubr.f32.mxu0 %v758
        %2679 = vmatmul.mubr.f32.gmra.mrb[0].mxu0 %v757
        %v2680 = vpop.f32.mrb[0].mxu0
        %v2681 = vadd.f32 %v2232, %v2680
        %v2682 = vpop.f32.mrb[0].mxu0
        %v2683 = vadd.f32 %v2234, %v2682
        %2684 = vmatprep.mubr.f32.mxu0 %v762
        %2685 = vmatmul.mubr.f32.gmra.mrb[0].mxu0 %v761
        %v2686 = vpop.f32.mrb[0].mxu0
        %v2687 = vadd.f32 %v2238, %v2686
        %v2688 = vpop.f32.mrb[0].mxu0
        %v2689 = vadd.f32 %v2240, %v2688
        %2690 = vmatprep.mubr.f32.mxu0 %v766
        %2691 = vmatmul.mubr.f32.gmra.mrb[0].mxu0 %v765
        %v2692 = vpop.f32.mrb[0].mxu0
        %v2693 = vadd.f32 %v2244, %v2692
        %v2694 = vpop.f32.mrb[0].mxu0
        %v2695 = vadd.f32 %v2246, %v2694
        %2696 = vmatprep.mubr.f32.mxu0 %v770
        %2697 = vmatmul.mubr.f32.gmra.mrb[0].mxu0 %v769
        %v2698 = vpop.f32.mrb[0].mxu0
        %v2699 = vadd.f32 %v2250, %v2698
        %v2700 = vpop.f32.mrb[0].mxu0
        %v2701 = vadd.f32 %v2252, %v2700
        %2702 = vmatprep.mubr.f32.mxu0 %v774
        %2703 = vmatmul.mubr.f32.gmra.mrb[0].mxu0 %v773
        %v2704 = vpop.f32.mrb[0].mxu0
        %v2705 = vadd.f32 %v2256, %v2704
        %v2706 = vpop.f32.mrb[0].mxu0
        %v2707 = vadd.f32 %v2258, %v2706
        %2708 = vmatprep.mubr.f32.mxu0 %v778
        %2709 = vmatmul.mubr.f32.gmra.mrb[0].mxu0 %v777
        %v2710 = vpop.f32.mrb[0].mxu0
        %v2711 = vadd.f32 %v2262, %v2710
        %v2712 = vpop.f32.mrb[0].mxu0
        %v2713 = vadd.f32 %v2264, %v2712
        %2714 = vmatprep.mubr.f32.mxu0 %v782
        %2715 = vmatmul.mubr.f32.gmra.mrb[0].mxu0 %v781
        %v2716 = vpop.f32.mrb[0].mxu0
        %v2717 = vadd.f32 %v2268, %v2716
        %v2718 = vpop.f32.mrb[0].mxu0
        %v2719 = vadd.f32 %v2270, %v2718
        %2720 = vmatprep.mubr.f32.mxu0 %v786
        %2721 = vmatmul.mubr.f32.gmra.mrb[0].mxu0 %v785
        %v2722 = vpop.f32.mrb[0].mxu0
        %v2723 = vadd.f32 %v2274, %v2722
        %v2724 = vpop.f32.mrb[0].mxu0
        %v2725 = vadd.f32 %v2276, %v2724
        %2726 = vmatprep.mubr.f32.mxu0 %v790
        %2727 = vmatmul.mubr.f32.gmra.mrb[0].mxu0 %v789
        %v2728 = vpop.f32.mrb[0].mxu0
        %v2729 = vadd.f32 %v2280, %v2728
        %v2730 = vpop.f32.mrb[0].mxu0
        %v2731 = vadd.f32 %v2282, %v2730
        %2732 = vmatprep.mubr.f32.mxu0 %v794
        %2733 = vmatmul.mubr.f32.gmra.mrb[0].mxu0 %v793
        %v2734 = vpop.f32.mrb[0].mxu0
        %v2735 = vadd.f32 %v2286, %v2734
        %v2736 = vpop.f32.mrb[0].mxu0
        %v2737 = vadd.f32 %v2288, %v2736
        %2738 = vmatprep.mubr.f32.mxu0 %v798
        %2739 = vmatmul.mubr.f32.gmra.mrb[0].mxu0 %v797
        %v2740 = vpop.f32.mrb[0].mxu0
        %v2741 = vadd.f32 %v2292, %v2740
        %v2742 = vpop.f32.mrb[0].mxu0
        %v2743 = vadd.f32 %v2294, %v2742
        %2744 = vmatprep.mubr.f32.mxu0 %v802
        %2745 = vmatmul.mubr.f32.gmra.mrb[0].mxu0 %v801
        %v2746 = vpop.f32.mrb[0].mxu0
        %v2747 = vadd.f32 %v2298, %v2746
        %v2748 = vpop.f32.mrb[0].mxu0
        %v2749 = vadd.f32 %v2300, %v2748
        %2750 = vmatprep.mubr.f32.mxu0 %v806
        %2751 = vmatmul.mubr.f32.gmra.mrb[0].mxu0 %v805
        %v2752 = vpop.f32.mrb[0].mxu0
        %v2753 = vadd.f32 %v2304, %v2752
        %v2754 = vpop.f32.mrb[0].mxu0
        %v2755 = vadd.f32 %v2306, %v2754
        %2756 = vmatprep.mubr.f32.mxu0 %v810
        %2757 = vmatmul.mubr.f32.gmra.mrb[0].mxu0 %v809
        %v2758 = vpop.f32.mrb[0].mxu0
        %v2759 = vadd.f32 %v2310, %v2758
        %v2760 = vpop.f32.mrb[0].mxu0
        %v2761 = vadd.f32 %v2312, %v2760
        %2762 = vmatprep.mubr.f32.mxu0 %v814
        %2763 = vmatmul.mubr.f32.gmra.mrb[0].mxu0 %v813
        %v2764 = vpop.f32.mrb[0].mxu0
        %v2765 = vadd.f32 %v2316, %v2764
        %v2766 = vpop.f32.mrb[0].mxu0
        %v2767 = vadd.f32 %v2318, %v2766
        %2768 = vmatprep.mubr.f32.mxu0 %v818
        %2769 = vmatmul.mubr.f32.gmra.mrb[0].mxu0 %v817
        %v2770 = vpop.f32.mrb[0].mxu0
        %v2771 = vadd.f32 %v2322, %v2770
        %v2772 = vpop.f32.mrb[0].mxu0
        %v2773 = vadd.f32 %v2324, %v2772
        %2774 = vmatprep.mubr.f32.mxu0 %v822
        %2775 = vmatmul.mubr.f32.gmra.mrb[0].mxu0 %v821
        %v2776 = vpop.f32.mrb[0].mxu0
        %v2777 = vadd.f32 %v2328, %v2776
        %v2778 = vpop.f32.mrb[0].mxu0
        %v2779 = vadd.f32 %v2330, %v2778
        %2780 = vmatprep.mubr.f32.mxu0 %v826
        %2781 = vmatmul.mubr.f32.gmra.mrb[0].mxu0 %v825
        %v2782 = vpop.f32.mrb[0].mxu0
        %v2783 = vadd.f32 %v2334, %v2782
        %v2784 = vpop.f32.mrb[0].mxu0
        %v2785 = vadd.f32 %v2336, %v2784
        %2786 = vmatprep.mubr.f32.mxu0 %v830
        %2787 = vmatmul.mubr.f32.gmra.mrb[0].mxu0 %v829
        %v2788 = vpop.f32.mrb[0].mxu0
        %v2789 = vadd.f32 %v2340, %v2788
        %v2790 = vpop.f32.mrb[0].mxu0
        %v2791 = vadd.f32 %v2342, %v2790
        %2792 = vmatprep.mubr.f32.mxu0 %v834
        %2793 = vmatmul.mubr.f32.gmra.mrb[0].mxu0 %v833
        %v2794 = vpop.f32.mrb[0].mxu0
        %v2795 = vadd.f32 %v2346, %v2794
        %v2796 = vpop.f32.mrb[0].mxu0
        %v2797 = vadd.f32 %v2348, %v2796
        %2798 = vmatprep.mubr.f32.mxu0 %v838
        %2799 = vmatmul.mubr.f32.gmra.mrb[0].mxu0 %v837
        %v2800 = vpop.f32.mrb[0].mxu0
        %v2801 = vadd.f32 %v2352, %v2800
        %v2802 = vpop.f32.mrb[0].mxu0
        %v2803 = vadd.f32 %v2354, %v2802
        %2804 = vmatprep.mubr.f32.mxu0 %v842
        %2805 = vmatmul.mubr.f32.gmra.mrb[0].mxu0 %v841
        %v2806 = vpop.f32.mrb[0].mxu0
        %v2807 = vadd.f32 %v2358, %v2806
        %v2808 = vpop.f32.mrb[0].mxu0
        %v2809 = vadd.f32 %v2360, %v2808
        %2810 = vmatprep.mubr.f32.mxu0 %v846
        %2811 = vmatmul.mubr.f32.gmra.mrb[0].mxu0 %v845
        %v2812 = vpop.f32.mrb[0].mxu0
        %v2813 = vadd.f32 %v2364, %v2812
        %v2814 = vpop.f32.mrb[0].mxu0
        %v2815 = vadd.f32 %v2366, %v2814
        %2816 = vmatprep.mubr.f32.mxu0 %v850
        %2817 = vmatmul.mubr.f32.gmra.mrb[0].mxu0 %v849
        %v2818 = vpop.f32.mrb[0].mxu0
        %v2819 = vadd.f32 %v2370, %v2818
        %v2820 = vpop.f32.mrb[0].mxu0
        %v2821 = vadd.f32 %v2372, %v2820
        %2822 = vmatprep.mubr.f32.mxu0 %v854
        %2823 = vmatmul.mubr.f32.gmra.mrb[0].mxu0 %v853
        %v2824 = vpop.f32.mrb[0].mxu0
        %v2825 = vadd.f32 %v2376, %v2824
        %v2826 = vpop.f32.mrb[0].mxu0
        %v2827 = vadd.f32 %v2378, %v2826
        %2828 = vmatprep.mubr.f32.mxu0 %v858
        %2829 = vmatmul.mubr.f32.gmra.mrb[0].mxu0 %v857
        %v2830 = vpop.f32.mrb[0].mxu0
        %v2831 = vadd.f32 %v2382, %v2830
        %v2832 = vpop.f32.mrb[0].mxu0
        %v2833 = vadd.f32 %v2384, %v2832
        %2834 = vmatprep.mubr.f32.mxu0 %v862
        %2835 = vmatmul.mubr.f32.gmra.mrb[0].mxu0 %v861
        %v2836 = vpop.f32.mrb[0].mxu0
        %v2837 = vadd.f32 %v2388, %v2836
        %v2838 = vpop.f32.mrb[0].mxu0
        %v2839 = vadd.f32 %v2390, %v2838
        %2840 = vmatprep.mubr.f32.mxu0 %v866
        %2841 = vmatmul.mubr.f32.gmra.mrb[0].mxu0 %v865
        %v2842 = vpop.f32.mrb[0].mxu0
        %v2843 = vadd.f32 %v2394, %v2842
        %v2844 = vpop.f32.mrb[0].mxu0
        %v2845 = vadd.f32 %v2396, %v2844
        %2846 = vmatprep.mubr.f32.mxu0 %v870
        %2847 = vmatmul.mubr.f32.gmra.mrb[0].mxu0 %v869
        %v2848 = vpop.f32.mrb[0].mxu0
        %v2849 = vadd.f32 %v2400, %v2848
        %v2850 = vpop.f32.mrb[0].mxu0
        %v2851 = vadd.f32 %v2402, %v2850
        %2852 = vmatprep.mubr.f32.mxu0 %v874
        %2853 = vmatmul.mubr.f32.gmra.mrb[0].mxu0 %v873
        %v2854 = vpop.f32.mrb[0].mxu0
        %v2855 = vadd.f32 %v2406, %v2854
        %v2856 = vpop.f32.mrb[0].mxu0
        %v2857 = vadd.f32 %v2408, %v2856
        %2858 = vmatprep.mubr.f32.mxu0 %v878
        %2859 = vmatmul.mubr.f32.gmra.mrb[0].mxu0 %v877
        %v2860 = vpop.f32.mrb[0].mxu0
        %v2861 = vadd.f32 %v2412, %v2860
        %v2862 = vpop.f32.mrb[0].mxu0
        %v2863 = vadd.f32 %v2414, %v2862
        %2864 = vmatprep.mubr.f32.mxu0 %v882
        %2865 = vmatmul.mubr.f32.gmra.mrb[0].mxu0 %v881
        %v2866 = vpop.f32.mrb[0].mxu0
        %v2867 = vadd.f32 %v2418, %v2866
        %v2868 = vpop.f32.mrb[0].mxu0
        %v2869 = vadd.f32 %v2420, %v2868
        %2870 = vmatprep.mubr.f32.mxu0 %v886
        %2871 = vmatmul.mubr.f32.gmra.mrb[0].mxu0 %v885
        %v2872 = vpop.f32.mrb[0].mxu0
        %v2873 = vadd.f32 %v2424, %v2872
        %v2874 = vpop.f32.mrb[0].mxu0
        %v2875 = vadd.f32 %v2426, %v2874
        %2876 = vmatprep.mubr.f32.mxu0 %v890
        %2877 = vmatmul.mubr.f32.gmra.mrb[0].mxu0 %v889
        %v2878 = vpop.f32.mrb[0].mxu0
        %v2879 = vadd.f32 %v2430, %v2878
        %v2880 = vpop.f32.mrb[0].mxu0
        %v2881 = vadd.f32 %v2432, %v2880
        %2882 = vmatprep.mubr.f32.mxu0 %v894
        %2883 = vmatmul.mubr.f32.gmra.mrb[0].mxu0 %v893
        %v2884 = vpop.f32.mrb[0].mxu0
        %v2885 = vadd.f32 %v2436, %v2884
        %v2886 = vpop.f32.mrb[0].mxu0
        %v2887 = vadd.f32 %v2438, %v2886
        %2888 = vmatprep.mubr.f32.mxu0 %v898
        %2889 = vmatmul.mubr.f32.gmra.mrb[0].mxu0 %v897
        %v2890 = vpop.f32.mrb[0].mxu0
        %v2891 = vadd.f32 %v2442, %v2890
        %v2892 = vpop.f32.mrb[0].mxu0
        %v2893 = vadd.f32 %v2444, %v2892
        %2894 = vmatprep.mubr.f32.mxu0 %v902
        %2895 = vmatmul.mubr.f32.gmra.mrb[0].mxu0 %v901
        %v2896 = vpop.f32.mrb[0].mxu0
        %v2897 = vadd.f32 %v2448, %v2896
        %v2898 = vpop.f32.mrb[0].mxu0
        %v2899 = vadd.f32 %v2450, %v2898
        %2900 = vmatprep.mubr.f32.mxu0 %v906
        %2901 = vmatmul.mubr.f32.gmra.mrb[0].mxu0 %v905
        %v2902 = vpop.f32.mrb[0].mxu0
        %v2903 = vadd.f32 %v2454, %v2902
        %v2904 = vpop.f32.mrb[0].mxu0
        %v2905 = vadd.f32 %v2456, %v2904
        %2906 = vmatprep.mubr.f32.mxu0 %v910
        %2907 = vmatmul.mubr.f32.gmra.mrb[0].mxu0 %v909
        %v2908 = vpop.f32.mrb[0].mxu0
        %v2909 = vadd.f32 %v2460, %v2908
        %v2910 = vpop.f32.mrb[0].mxu0
        %v2911 = vadd.f32 %v2462, %v2910
        %2912 = vmatprep.mubr.f32.mxu0 %v914
        %2913 = vmatmul.mubr.f32.gmra.mrb[0].mxu0 %v913
        %v2914 = vpop.f32.mrb[0].mxu0
        %v2915 = vadd.f32 %v2466, %v2914
        %v2916 = vpop.f32.mrb[0].mxu0
        %v2917 = vadd.f32 %v2468, %v2916
        %2918 = vmatprep.mubr.f32.mxu0 %v918
        %2919 = vmatmul.mubr.f32.gmra.mrb[0].mxu0 %v917
        %v2920 = vpop.f32.mrb[0].mxu0
        %v2921 = vadd.f32 %v2472, %v2920
        %v2922 = vpop.f32.mrb[0].mxu0
        %v2923 = vadd.f32 %v2474, %v2922
        %2924 = vmatprep.mubr.f32.mxu0 %v922
        %2925 = vmatmul.mubr.f32.gmra.mrb[0].mxu0 %v921
        %v2926 = vpop.f32.mrb[0].mxu0
        %v2927 = vadd.f32 %v2478, %v2926
        %v2928 = vpop.f32.mrb[0].mxu0
        %v2929 = vadd.f32 %v2480, %v2928
        %2930 = vmatprep.mubr.f32.mxu0 %v926
        %2931 = vmatmul.mubr.f32.gmra.mrb[0].mxu0 %v925
        %v2932 = vpop.f32.mrb[0].mxu0
        %v2933 = vadd.f32 %v2484, %v2932
        %v2934 = vpop.f32.mrb[0].mxu0
        %v2935 = vadd.f32 %v2486, %v2934
        %2936 = vmatprep.mubr.f32.mxu0 %v930
        %2937 = vmatmul.mubr.f32.gmra.mrb[0].mxu0 %v929
        %v2938 = vpop.f32.mrb[0].mxu0
        %v2939 = vadd.f32 %v2490, %v2938
        %v2940 = vpop.f32.mrb[0].mxu0
        %v2941 = vadd.f32 %v2492, %v2940
        %2942 = vmatprep.mubr.f32.mxu0 %v934
        %2943 = vmatmul.mubr.f32.gmra.mrb[0].mxu0 %v933
        %v2944 = vpop.f32.mrb[0].mxu0
        %v2945 = vadd.f32 %v2496, %v2944
        %v2946 = vpop.f32.mrb[0].mxu0
        %v2947 = vadd.f32 %v2498, %v2946
        %2948 = vmatprep.mubr.f32.mxu0 %v938
        %2949 = vmatmul.mubr.f32.gmra.mrb[0].mxu0 %v937
        %v2950 = vpop.f32.mrb[0].mxu0
        %v2951 = vadd.f32 %v2502, %v2950
        %v2952 = vpop.f32.mrb[0].mxu0
        %v2953 = vadd.f32 %v2504, %v2952
        %2954 = vmatprep.mubr.f32.mxu0 %v942
        %2955 = vmatmul.mubr.f32.gmra.mrb[0].mxu0 %v941
        %v2956 = vpop.f32.mrb[0].mxu0
        %v2957 = vadd.f32 %v2508, %v2956
        %v2958 = vpop.f32.mrb[0].mxu0
        %v2959 = vadd.f32 %v2510, %v2958
        %2960 = vmatprep.mubr.f32.mxu0 %v946
        %2961 = vmatmul.mubr.f32.gmra.mrb[0].mxu0 %v945
        %v2962 = vpop.f32.mrb[0].mxu0
        %v2963 = vadd.f32 %v2514, %v2962
        %v2964 = vpop.f32.mrb[0].mxu0
        %v2965 = vadd.f32 %v2516, %v2964
        %2966 = vmatprep.mubr.f32.mxu0 %v950
        %2967 = vmatmul.mubr.f32.gmra.mrb[0].mxu0 %v949
        %v2968 = vpop.f32.mrb[0].mxu0
        %v2969 = vadd.f32 %v2520, %v2968
        %v2970 = vpop.f32.mrb[0].mxu0
        %v2971 = vadd.f32 %v2522, %v2970
        %2972 = vmatprep.mubr.f32.mxu0 %v954
        %2973 = vmatmul.mubr.f32.gmra.mrb[0].mxu0 %v953
        %v2974 = vpop.f32.mrb[0].mxu0
        %v2975 = vadd.f32 %v2526, %v2974
        %v2976 = vpop.f32.mrb[0].mxu0
        %v2977 = vadd.f32 %v2528, %v2976
        %2978 = vmatprep.mubr.f32.mxu0 %v958
        %2979 = vmatmul.mubr.f32.gmra.mrb[0].mxu0 %v957
        %v2980 = vpop.f32.mrb[0].mxu0
        %v2981 = vadd.f32 %v2532, %v2980
        %v2982 = vpop.f32.mrb[0].mxu0
        %v2983 = vadd.f32 %v2534, %v2982
        %2984 = vmatprep.mubr.f32.mxu0 %v962
        %2985 = vmatmul.mubr.f32.gmra.mrb[0].mxu0 %v961
        %v2986 = vpop.f32.mrb[0].mxu0
        %v2987 = vadd.f32 %v2538, %v2986
        %v2988 = vpop.f32.mrb[0].mxu0
        %v2989 = vadd.f32 %v2540, %v2988
        %2990 = vmatprep.mubr.f32.mxu0 %v966
        %2991 = vmatmul.mubr.f32.gmra.mrb[0].mxu0 %v965
        %v2992 = vpop.f32.mrb[0].mxu0
        %v2993 = vadd.f32 %v2544, %v2992
        %v2994 = vpop.f32.mrb[0].mxu0
        %v2995 = vadd.f32 %v2546, %v2994
        %2996 = vmatprep.mubr.f32.mxu0 %v970
        %2997 = vmatmul.mubr.f32.gmra.mrb[0].mxu0 %v969
        %v2998 = vpop.f32.mrb[0].mxu0
        %v2999 = vadd.f32 %v2550, %v2998
        %v3000 = vpop.f32.mrb[0].mxu0
        %v3001 = vadd.f32 %v2552, %v3000
        %3002 = vmatprep.mubr.f32.mxu0 %v974
        %3003 = vmatmul.mubr.f32.gmra.mrb[0].mxu0 %v973
        %v3004 = vpop.f32.mrb[0].mxu0
        %v3005 = vadd.f32 %v2556, %v3004
        %v3006 = vpop.f32.mrb[0].mxu0
        %v3007 = vadd.f32 %v2558, %v3006
        %3008 = vmatprep.mubr.f32.mxu0 %v978
        %3009 = vmatmul.mubr.f32.gmra.mrb[0].mxu0 %v977
        %v3010 = vpop.f32.mrb[0].mxu0
        %v3011 = vadd.f32 %v2562, %v3010
        %v3012 = vpop.f32.mrb[0].mxu0
        %v3013 = vadd.f32 %v2564, %v3012
        %3014 = vmatprep.mubr.f32.mxu0 %v982
        %3015 = vmatmul.mubr.f32.gmra.mrb[0].mxu0 %v981
        %v3016 = vpop.f32.mrb[0].mxu0
        %v3017 = vadd.f32 %v2568, %v3016
        %v3018 = vpop.f32.mrb[0].mxu0
        %v3019 = vadd.f32 %v2570, %v3018
        %3020 = vmatprep.mubr.f32.mxu0 %v986
        %3021 = vmatmul.mubr.f32.gmra.mrb[0].mxu0 %v985
        %v3022 = vpop.f32.mrb[0].mxu0
        %v3023 = vadd.f32 %v2574, %v3022
        %v3024 = vpop.f32.mrb[0].mxu0
        %v3025 = vadd.f32 %v2576, %v3024
        %3026 = vmatprep.mubr.f32.mxu0 %v990
        %3027 = vmatmul.mubr.f32.gmra.mrb[0].mxu0 %v989
        %v3028 = vpop.f32.mrb[0].mxu0
        %v3029 = vadd.f32 %v2580, %v3028
        %v3030 = vpop.f32.mrb[0].mxu0
        %v3031 = vadd.f32 %v2582, %v3030
        %3032 = vmatprep.mubr.f32.mxu0 %v994
        %3033 = vmatmul.mubr.f32.gmra.mrb[0].mxu0 %v993
        %v3034 = vpop.f32.mrb[0].mxu0
        %v3035 = vadd.f32 %v2586, %v3034
        %v3036 = vpop.f32.mrb[0].mxu0
        %v3037 = vadd.f32 %v2588, %v3036
        %3038 = vmatprep.mubr.f32.mxu0 %v998
        %3039 = vmatmul.mubr.f32.gmra.mrb[0].mxu0 %v997
        %v3040 = vpop.f32.mrb[0].mxu0
        %v3041 = vadd.f32 %v2592, %v3040
        %v3042 = vpop.f32.mrb[0].mxu0
        %v3043 = vadd.f32 %v2594, %v3042
        %3044 = vmatprep.mubr.f32.mxu0 %v1002
        %3045 = vmatmul.mubr.f32.gmra.mrb[0].mxu0 %v1001
        %v3046 = vpop.f32.mrb[0].mxu0
        %v3047 = vadd.f32 %v2598, %v3046
        %v3048 = vpop.f32.mrb[0].mxu0
        %v3049 = vadd.f32 %v2600, %v3048
        %3050 = vmatprep.mubr.f32.mxu0 %v1006
        %3051 = vmatmul.mubr.f32.gmra.mrb[0].mxu0 %v1005
        %v3052 = vpop.f32.mrb[0].mxu0
        %v3053 = vadd.f32 %v2604, %v3052
        %v3054 = vpop.f32.mrb[0].mxu0
        %v3055 = vadd.f32 %v2606, %v3054
        %3056 = vmatprep.mubr.f32.mxu0 %v1010
        %3057 = vmatmul.mubr.f32.gmra.mrb[0].mxu0 %v1009
        %v3058 = vpop.f32.mrb[0].mxu0
        %v3059 = vadd.f32 %v2610, %v3058
        %v3060 = vpop.f32.mrb[0].mxu0
        %v3061 = vadd.f32 %v2612, %v3060
        %3062 = vdwg.mxu0
        %v3063 = vadd.f32 %v499, %v1783
        %v3064 = vadd.f32 %v500, %v1785
        %v3065 = vadd.f32 %v501, %v2681
        %v3066 = vadd.f32 %v502, %v2683
        %v3067 = vadd.f32 %v503, %v1789
        %v3068 = vadd.f32 %v504, %v1791
        %v3069 = vadd.f32 %v505, %v2687
        %v3070 = vadd.f32 %v506, %v2689
        %v3071 = vadd.f32 %v507, %v1795
        %v3072 = vadd.f32 %v508, %v1797
        %v3073 = vadd.f32 %v509, %v2693
        %v3074 = vadd.f32 %v510, %v2695
        %v3075 = vadd.f32 %v511, %v1801
        %v3076 = vadd.f32 %v512, %v1803
        %v3077 = vadd.f32 %v513, %v2699
        %v3078 = vadd.f32 %v514, %v2701
        %v3079 = vadd.f32 %v515, %v1807
        %v3080 = vadd.f32 %v516, %v1809
        %v3081 = vadd.f32 %v517, %v2705
        %v3082 = vadd.f32 %v518, %v2707
        %v3083 = vadd.f32 %v519, %v1813
        %v3084 = vadd.f32 %v520, %v1815
        %v3085 = vadd.f32 %v521, %v2711
        %v3086 = vadd.f32 %v522, %v2713
        %v3087 = vadd.f32 %v523, %v1819
        %v3088 = vadd.f32 %v524, %v1821
        %v3089 = vadd.f32 %v525, %v2717
        %v3090 = vadd.f32 %v526, %v2719
        %v3091 = vadd.f32 %v527, %v1825
        %v3092 = vadd.f32 %v528, %v1827
        %v3093 = vadd.f32 %v529, %v2723
        %v3094 = vadd.f32 %v530, %v2725
        %v3095 = vadd.f32 %v531, %v1831
        %v3096 = vadd.f32 %v532, %v1833
        %v3097 = vadd.f32 %v533, %v2729
        %v3098 = vadd.f32 %v534, %v2731
        %v3099 = vadd.f32 %v535, %v1837
        %v3100 = vadd.f32 %v536, %v1839
        %v3101 = vadd.f32 %v537, %v2735
        %v3102 = vadd.f32 %v538, %v2737
        %v3103 = vadd.f32 %v539, %v1843
        %v3104 = vadd.f32 %v540, %v1845
        %v3105 = vadd.f32 %v541, %v2741
        %v3106 = vadd.f32 %v542, %v2743
        %v3107 = vadd.f32 %v543, %v1849
        %v3108 = vadd.f32 %v544, %v1851
        %v3109 = vadd.f32 %v545, %v2747
        %v3110 = vadd.f32 %v546, %v2749
        %v3111 = vadd.f32 %v547, %v1855
        %v3112 = vadd.f32 %v548, %v1857
        %v3113 = vadd.f32 %v549, %v2753
        %v3114 = vadd.f32 %v550, %v2755
        %v3115 = vadd.f32 %v551, %v1861
        %v3116 = vadd.f32 %v552, %v1863
        %v3117 = vadd.f32 %v553, %v2759
        %v3118 = vadd.f32 %v554, %v2761
        %v3119 = vadd.f32 %v555, %v1867
        %v3120 = vadd.f32 %v556, %v1869
        %v3121 = vadd.f32 %v557, %v2765
        %v3122 = vadd.f32 %v558, %v2767
        %v3123 = vadd.f32 %v559, %v1873
        %v3124 = vadd.f32 %v560, %v1875
        %v3125 = vadd.f32 %v561, %v2771
        %v3126 = vadd.f32 %v562, %v2773
        %v3127 = vadd.f32 %v563, %v1879
        %v3128 = vadd.f32 %v564, %v1881
        %v3129 = vadd.f32 %v565, %v2777
        %v3130 = vadd.f32 %v566, %v2779
        %v3131 = vadd.f32 %v567, %v1885
        %v3132 = vadd.f32 %v568, %v1887
        %v3133 = vadd.f32 %v569, %v2783
        %v3134 = vadd.f32 %v570, %v2785
        %v3135 = vadd.f32 %v571, %v1891
        %v3136 = vadd.f32 %v572, %v1893
        %v3137 = vadd.f32 %v573, %v2789
        %v3138 = vadd.f32 %v574, %v2791
        %v3139 = vadd.f32 %v575, %v1897
        %v3140 = vadd.f32 %v576, %v1899
        %v3141 = vadd.f32 %v577, %v2795
        %v3142 = vadd.f32 %v578, %v2797
        %v3143 = vadd.f32 %v579, %v1903
        %v3144 = vadd.f32 %v580, %v1905
        %v3145 = vadd.f32 %v581, %v2801
        %v3146 = vadd.f32 %v582, %v2803
        %v3147 = vadd.f32 %v583, %v1909
        %v3148 = vadd.f32 %v584, %v1911
        %v3149 = vadd.f32 %v585, %v2807
        %v3150 = vadd.f32 %v586, %v2809
        %v3151 = vadd.f32 %v587, %v1915
        %v3152 = vadd.f32 %v588, %v1917
        %v3153 = vadd.f32 %v589, %v2813
        %v3154 = vadd.f32 %v590, %v2815
        %v3155 = vadd.f32 %v591, %v1921
        %v3156 = vadd.f32 %v592, %v1923
        %v3157 = vadd.f32 %v593, %v2819
        %v3158 = vadd.f32 %v594, %v2821
        %v3159 = vadd.f32 %v595, %v1927
        %v3160 = vadd.f32 %v596, %v1929
        %v3161 = vadd.f32 %v597, %v2825
        %v3162 = vadd.f32 %v598, %v2827
        %v3163 = vadd.f32 %v599, %v1933
        %v3164 = vadd.f32 %v600, %v1935
        %v3165 = vadd.f32 %v601, %v2831
        %v3166 = vadd.f32 %v602, %v2833
        %v3167 = vadd.f32 %v603, %v1939
        %v3168 = vadd.f32 %v604, %v1941
        %v3169 = vadd.f32 %v605, %v2837
        %v3170 = vadd.f32 %v606, %v2839
        %v3171 = vadd.f32 %v607, %v1945
        %v3172 = vadd.f32 %v608, %v1947
        %v3173 = vadd.f32 %v609, %v2843
        %v3174 = vadd.f32 %v610, %v2845
        %v3175 = vadd.f32 %v611, %v1951
        %v3176 = vadd.f32 %v612, %v1953
        %v3177 = vadd.f32 %v613, %v2849
        %v3178 = vadd.f32 %v614, %v2851
        %v3179 = vadd.f32 %v615, %v1957
        %v3180 = vadd.f32 %v616, %v1959
        %v3181 = vadd.f32 %v617, %v2855
        %v3182 = vadd.f32 %v618, %v2857
        %v3183 = vadd.f32 %v619, %v1963
        %v3184 = vadd.f32 %v620, %v1965
        %v3185 = vadd.f32 %v621, %v2861
        %v3186 = vadd.f32 %v622, %v2863
        %v3187 = vadd.f32 %v623, %v1969
        %v3188 = vadd.f32 %v624, %v1971
        %v3189 = vadd.f32 %v625, %v2867
        %v3190 = vadd.f32 %v626, %v2869
        %v3191 = vadd.f32 %v627, %v1975
        %v3192 = vadd.f32 %v628, %v1977
        %v3193 = vadd.f32 %v629, %v2873
        %v3194 = vadd.f32 %v630, %v2875
        %v3195 = vadd.f32 %v631, %v1981
        %v3196 = vadd.f32 %v632, %v1983
        %v3197 = vadd.f32 %v633, %v2879
        %v3198 = vadd.f32 %v634, %v2881
        %v3199 = vadd.f32 %v635, %v1987
        %v3200 = vadd.f32 %v636, %v1989
        %v3201 = vadd.f32 %v637, %v2885
        %v3202 = vadd.f32 %v638, %v2887
        %v3203 = vadd.f32 %v639, %v1993
        %v3204 = vadd.f32 %v640, %v1995
        %v3205 = vadd.f32 %v641, %v2891
        %v3206 = vadd.f32 %v642, %v2893
        %v3207 = vadd.f32 %v643, %v1999
        %v3208 = vadd.f32 %v644, %v2001
        %v3209 = vadd.f32 %v645, %v2897
        %v3210 = vadd.f32 %v646, %v2899
        %v3211 = vadd.f32 %v647, %v2005
        %v3212 = vadd.f32 %v648, %v2007
        %v3213 = vadd.f32 %v649, %v2903
        %v3214 = vadd.f32 %v650, %v2905
        %v3215 = vadd.f32 %v651, %v2011
        %v3216 = vadd.f32 %v652, %v2013
        %v3217 = vadd.f32 %v653, %v2909
        %v3218 = vadd.f32 %v654, %v2911
        %v3219 = vadd.f32 %v655, %v2017
        %v3220 = vadd.f32 %v656, %v2019
        %v3221 = vadd.f32 %v657, %v2915
        %v3222 = vadd.f32 %v658, %v2917
        %v3223 = vadd.f32 %v659, %v2023
        %v3224 = vadd.f32 %v660, %v2025
        %v3225 = vadd.f32 %v661, %v2921
        %v3226 = vadd.f32 %v662, %v2923
        %v3227 = vadd.f32 %v663, %v2029
        %v3228 = vadd.f32 %v664, %v2031
        %v3229 = vadd.f32 %v665, %v2927
        %v3230 = vadd.f32 %v666, %v2929
        %v3231 = vadd.f32 %v667, %v2035
        %v3232 = vadd.f32 %v668, %v2037
        %v3233 = vadd.f32 %v669, %v2933
        %v3234 = vadd.f32 %v670, %v2935
        %v3235 = vadd.f32 %v671, %v2041
        %v3236 = vadd.f32 %v672, %v2043
        %v3237 = vadd.f32 %v673, %v2939
        %v3238 = vadd.f32 %v674, %v2941
        %v3239 = vadd.f32 %v675, %v2047
        %v3240 = vadd.f32 %v676, %v2049
        %v3241 = vadd.f32 %v677, %v2945
        %v3242 = vadd.f32 %v678, %v2947
        %v3243 = vadd.f32 %v679, %v2053
        %v3244 = vadd.f32 %v680, %v2055
        %v3245 = vadd.f32 %v681, %v2951
        %v3246 = vadd.f32 %v682, %v2953
        %v3247 = vadd.f32 %v683, %v2059
        %v3248 = vadd.f32 %v684, %v2061
        %v3249 = vadd.f32 %v685, %v2957
        %v3250 = vadd.f32 %v686, %v2959
        %v3251 = vadd.f32 %v687, %v2065
        %v3252 = vadd.f32 %v688, %v2067
        %v3253 = vadd.f32 %v689, %v2963
        %v3254 = vadd.f32 %v690, %v2965
        %v3255 = vadd.f32 %v691, %v2071
        %v3256 = vadd.f32 %v692, %v2073
        %v3257 = vadd.f32 %v693, %v2969
        %v3258 = vadd.f32 %v694, %v2971
        %v3259 = vadd.f32 %v695, %v2077
        %v3260 = vadd.f32 %v696, %v2079
        %v3261 = vadd.f32 %v697, %v2975
        %v3262 = vadd.f32 %v698, %v2977
        %v3263 = vadd.f32 %v699, %v2083
        %v3264 = vadd.f32 %v700, %v2085
        %v3265 = vadd.f32 %v701, %v2981
        %v3266 = vadd.f32 %v702, %v2983
        %v3267 = vadd.f32 %v703, %v2089
        %v3268 = vadd.f32 %v704, %v2091
        %v3269 = vadd.f32 %v705, %v2987
        %v3270 = vadd.f32 %v706, %v2989
        %v3271 = vadd.f32 %v707, %v2095
        %v3272 = vadd.f32 %v708, %v2097
        %v3273 = vadd.f32 %v709, %v2993
        %v3274 = vadd.f32 %v710, %v2995
        %v3275 = vadd.f32 %v711, %v2101
        %v3276 = vadd.f32 %v712, %v2103
        %v3277 = vadd.f32 %v713, %v2999
        %v3278 = vadd.f32 %v714, %v3001
        %v3279 = vadd.f32 %v715, %v2107
        %v3280 = vadd.f32 %v716, %v2109
        %v3281 = vadd.f32 %v717, %v3005
        %v3282 = vadd.f32 %v718, %v3007
        %v3283 = vadd.f32 %v719, %v2113
        %v3284 = vadd.f32 %v720, %v2115
        %v3285 = vadd.f32 %v721, %v3011
        %v3286 = vadd.f32 %v722, %v3013
        %v3287 = vadd.f32 %v723, %v2119
        %v3288 = vadd.f32 %v724, %v2121
        %v3289 = vadd.f32 %v725, %v3017
        %v3290 = vadd.f32 %v726, %v3019
        %v3291 = vadd.f32 %v727, %v2125
        %v3292 = vadd.f32 %v728, %v2127
        %v3293 = vadd.f32 %v729, %v3023
        %v3294 = vadd.f32 %v730, %v3025
        %v3295 = vadd.f32 %v731, %v2131
        %v3296 = vadd.f32 %v732, %v2133
        %v3297 = vadd.f32 %v733, %v3029
        %v3298 = vadd.f32 %v734, %v3031
        %v3299 = vadd.f32 %v735, %v2137
        %v3300 = vadd.f32 %v736, %v2139
        %v3301 = vadd.f32 %v737, %v3035
        %v3302 = vadd.f32 %v738, %v3037
        %v3303 = vadd.f32 %v739, %v2143
        %v3304 = vadd.f32 %v740, %v2145
        %v3305 = vadd.f32 %v741, %v3041
        %v3306 = vadd.f32 %v742, %v3043
        %v3307 = vadd.f32 %v743, %v2149
        %v3308 = vadd.f32 %v744, %v2151
        %v3309 = vadd.f32 %v745, %v3047
        %v3310 = vadd.f32 %v746, %v3049
        %v3311 = vadd.f32 %v747, %v2155
        %v3312 = vadd.f32 %v748, %v2157
        %v3313 = vadd.f32 %v749, %v3053
        %v3314 = vadd.f32 %v750, %v3055
        %v3315 = vadd.f32 %v751, %v2161
        %v3316 = vadd.f32 %v752, %v2163
        %v3317 = vadd.f32 %v753, %v3059
        %v3318 = vadd.f32 %v754, %v3061
        %3319 = vst [vmem:[#allocation2] sm:$0xff] %v3063
        %3320 = vst [vmem:[#allocation2 + $0x8] sm:$0xff] %v3064
        %3321 = vst [vmem:[#allocation2 + $0x10] sm:$0xff] %v3065
        %3322 = vst [vmem:[#allocation2 + $0x18] sm:$0xff] %v3066
        %3323 = vst [vmem:[#allocation2 + $0x20] sm:$0xff] %v3067
        %3324 = vst [vmem:[#allocation2 + $0x28] sm:$0xff] %v3068
        %3325 = vst [vmem:[#allocation2 + $0x30] sm:$0xff] %v3069
        %3326 = vst [vmem:[#allocation2 + $0x38] sm:$0xff] %v3070
        %3327 = vst [vmem:[#allocation2 + $0x40] sm:$0xff] %v3071
        %3328 = vst [vmem:[#allocation2 + $0x48] sm:$0xff] %v3072
        %3329 = vst [vmem:[#allocation2 + $0x50] sm:$0xff] %v3073
        %3330 = vst [vmem:[#allocation2 + $0x58] sm:$0xff] %v3074
        %3331 = vst [vmem:[#allocation2 + $0x60] sm:$0xff] %v3075
        %3332 = vst [vmem:[#allocation2 + $0x68] sm:$0xff] %v3076
        %3333 = vst [vmem:[#allocation2 + $0x70] sm:$0xff] %v3077
        %3334 = vst [vmem:[#allocation2 + $0x78] sm:$0xff] %v3078
        %3335 = vst [vmem:[#allocation2 + $0x80] sm:$0xff] %v3079
        %3336 = vst [vmem:[#allocation2 + $0x88] sm:$0xff] %v3080
        %3337 = vst [vmem:[#allocation2 + $0x90] sm:$0xff] %v3081
        %3338 = vst [vmem:[#allocation2 + $0x98] sm:$0xff] %v3082
        %3339 = vst [vmem:[#allocation2 + $0xa0] sm:$0xff] %v3083
        %3340 = vst [vmem:[#allocation2 + $0xa8] sm:$0xff] %v3084
        %3341 = vst [vmem:[#allocation2 + $0xb0] sm:$0xff] %v3085
        %3342 = vst [vmem:[#allocation2 + $0xb8] sm:$0xff] %v3086
        %3343 = vst [vmem:[#allocation2 + $0xc0] sm:$0xff] %v3087
        %3344 = vst [vmem:[#allocation2 + $0xc8] sm:$0xff] %v3088
        %3345 = vst [vmem:[#allocation2 + $0xd0] sm:$0xff] %v3089
        %3346 = vst [vmem:[#allocation2 + $0xd8] sm:$0xff] %v3090
        %3347 = vst [vmem:[#allocation2 + $0xe0] sm:$0xff] %v3091
        %3348 = vst [vmem:[#allocation2 + $0xe8] sm:$0xff] %v3092
        %3349 = vst [vmem:[#allocation2 + $0xf0] sm:$0xff] %v3093
        %3350 = vst [vmem:[#allocation2 + $0xf8] sm:$0xff] %v3094
        %3351 = vst [vmem:[#allocation2 + $0x100] sm:$0xff] %v3095
        %3352 = vst [vmem:[#allocation2 + $0x108] sm:$0xff] %v3096
        %3353 = vst [vmem:[#allocation2 + $0x110] sm:$0xff] %v3097
        %3354 = vst [vmem:[#allocation2 + $0x118] sm:$0xff] %v3098
        %3355 = vst [vmem:[#allocation2 + $0x120] sm:$0xff] %v3099
        %3356 = vst [vmem:[#allocation2 + $0x128] sm:$0xff] %v3100
        %3357 = vst [vmem:[#allocation2 + $0x130] sm:$0xff] %v3101
        %3358 = vst [vmem:[#allocation2 + $0x138] sm:$0xff] %v3102
        %3359 = vst [vmem:[#allocation2 + $0x140] sm:$0xff] %v3103
        %3360 = vst [vmem:[#allocation2 + $0x148] sm:$0xff] %v3104
        %3361 = vst [vmem:[#allocation2 + $0x150] sm:$0xff] %v3105
        %3362 = vst [vmem:[#allocation2 + $0x158] sm:$0xff] %v3106
        %3363 = vst [vmem:[#allocation2 + $0x160] sm:$0xff] %v3107
        %3364 = vst [vmem:[#allocation2 + $0x168] sm:$0xff] %v3108
        %3365 = vst [vmem:[#allocation2 + $0x170] sm:$0xff] %v3109
        %3366 = vst [vmem:[#allocation2 + $0x178] sm:$0xff] %v3110
        %3367 = vst [vmem:[#allocation2 + $0x180] sm:$0xff] %v3111
        %3368 = vst [vmem:[#allocation2 + $0x188] sm:$0xff] %v3112
        %3369 = vst [vmem:[#allocation2 + $0x190] sm:$0xff] %v3113
        %3370 = vst [vmem:[#allocation2 + $0x198] sm:$0xff] %v3114
        %3371 = vst [vmem:[#allocation2 + $0x1a0] sm:$0xff] %v3115
        %3372 = vst [vmem:[#allocation2 + $0x1a8] sm:$0xff] %v3116
        %3373 = vst [vmem:[#allocation2 + $0x1b0] sm:$0xff] %v3117
        %3374 = vst [vmem:[#allocation2 + $0x1b8] sm:$0xff] %v3118
        %3375 = vst [vmem:[#allocation2 + $0x1c0] sm:$0xff] %v3119
        %3376 = vst [vmem:[#allocation2 + $0x1c8] sm:$0xff] %v3120
        %3377 = vst [vmem:[#allocation2 + $0x1d0] sm:$0xff] %v3121
        %3378 = vst [vmem:[#allocation2 + $0x1d8] sm:$0xff] %v3122
        %3379 = vst [vmem:[#allocation2 + $0x1e0] sm:$0xff] %v3123
        %3380 = vst [vmem:[#allocation2 + $0x1e8] sm:$0xff] %v3124
        %3381 = vst [vmem:[#allocation2 + $0x1f0] sm:$0xff] %v3125
        %3382 = vst [vmem:[#allocation2 + $0x1f8] sm:$0xff] %v3126
        %3383 = vst [vmem:[#allocation2 + $0x200] sm:$0xff] %v3127
        %3384 = vst [vmem:[#allocation2 + $0x208] sm:$0xff] %v3128
        %3385 = vst [vmem:[#allocation2 + $0x210] sm:$0xff] %v3129
        %3386 = vst [vmem:[#allocation2 + $0x218] sm:$0xff] %v3130
        %3387 = vst [vmem:[#allocation2 + $0x220] sm:$0xff] %v3131
        %3388 = vst [vmem:[#allocation2 + $0x228] sm:$0xff] %v3132
        %3389 = vst [vmem:[#allocation2 + $0x230] sm:$0xff] %v3133
        %3390 = vst [vmem:[#allocation2 + $0x238] sm:$0xff] %v3134
        %3391 = vst [vmem:[#allocation2 + $0x240] sm:$0xff] %v3135
        %3392 = vst [vmem:[#allocation2 + $0x248] sm:$0xff] %v3136
        %3393 = vst [vmem:[#allocation2 + $0x250] sm:$0xff] %v3137
        %3394 = vst [vmem:[#allocation2 + $0x258] sm:$0xff] %v3138
        %3395 = vst [vmem:[#allocation2 + $0x260] sm:$0xff] %v3139
        %3396 = vst [vmem:[#allocation2 + $0x268] sm:$0xff] %v3140
        %3397 = vst [vmem:[#allocation2 + $0x270] sm:$0xff] %v3141
        %3398 = vst [vmem:[#allocation2 + $0x278] sm:$0xff] %v3142
        %3399 = vst [vmem:[#allocation2 + $0x280] sm:$0xff] %v3143
        %3400 = vst [vmem:[#allocation2 + $0x288] sm:$0xff] %v3144
        %3401 = vst [vmem:[#allocation2 + $0x290] sm:$0xff] %v3145
        %3402 = vst [vmem:[#allocation2 + $0x298] sm:$0xff] %v3146
        %3403 = vst [vmem:[#allocation2 + $0x2a0] sm:$0xff] %v3147
        %3404 = vst [vmem:[#allocation2 + $0x2a8] sm:$0xff] %v3148
        %3405 = vst [vmem:[#allocation2 + $0x2b0] sm:$0xff] %v3149
        %3406 = vst [vmem:[#allocation2 + $0x2b8] sm:$0xff] %v3150
        %3407 = vst [vmem:[#allocation2 + $0x2c0] sm:$0xff] %v3151
        %3408 = vst [vmem:[#allocation2 + $0x2c8] sm:$0xff] %v3152
        %3409 = vst [vmem:[#allocation2 + $0x2d0] sm:$0xff] %v3153
        %3410 = vst [vmem:[#allocation2 + $0x2d8] sm:$0xff] %v3154
        %3411 = vst [vmem:[#allocation2 + $0x2e0] sm:$0xff] %v3155
        %3412 = vst [vmem:[#allocation2 + $0x2e8] sm:$0xff] %v3156
        %3413 = vst [vmem:[#allocation2 + $0x2f0] sm:$0xff] %v3157
        %3414 = vst [vmem:[#allocation2 + $0x2f8] sm:$0xff] %v3158
        %3415 = vst [vmem:[#allocation2 + $0x300] sm:$0xff] %v3159
        %3416 = vst [vmem:[#allocation2 + $0x308] sm:$0xff] %v3160
        %3417 = vst [vmem:[#allocation2 + $0x310] sm:$0xff] %v3161
        %3418 = vst [vmem:[#allocation2 + $0x318] sm:$0xff] %v3162
        %3419 = vst [vmem:[#allocation2 + $0x320] sm:$0xff] %v3163
        %3420 = vst [vmem:[#allocation2 + $0x328] sm:$0xff] %v3164
        %3421 = vst [vmem:[#allocation2 + $0x330] sm:$0xff] %v3165
        %3422 = vst [vmem:[#allocation2 + $0x338] sm:$0xff] %v3166
        %3423 = vst [vmem:[#allocation2 + $0x340] sm:$0xff] %v3167
        %3424 = vst [vmem:[#allocation2 + $0x348] sm:$0xff] %v3168
        %3425 = vst [vmem:[#allocation2 + $0x350] sm:$0xff] %v3169
        %3426 = vst [vmem:[#allocation2 + $0x358] sm:$0xff] %v3170
        %3427 = vst [vmem:[#allocation2 + $0x360] sm:$0xff] %v3171
        %3428 = vst [vmem:[#allocation2 + $0x368] sm:$0xff] %v3172
        %3429 = vst [vmem:[#allocation2 + $0x370] sm:$0xff] %v3173
        %3430 = vst [vmem:[#allocation2 + $0x378] sm:$0xff] %v3174
        %3431 = vst [vmem:[#allocation2 + $0x380] sm:$0xff] %v3175
        %3432 = vst [vmem:[#allocation2 + $0x388] sm:$0xff] %v3176
        %3433 = vst [vmem:[#allocation2 + $0x390] sm:$0xff] %v3177
        %3434 = vst [vmem:[#allocation2 + $0x398] sm:$0xff] %v3178
        %3435 = vst [vmem:[#allocation2 + $0x3a0] sm:$0xff] %v3179
        %3436 = vst [vmem:[#allocation2 + $0x3a8] sm:$0xff] %v3180
        %3437 = vst [vmem:[#allocation2 + $0x3b0] sm:$0xff] %v3181
        %3438 = vst [vmem:[#allocation2 + $0x3b8] sm:$0xff] %v3182
        %3439 = vst [vmem:[#allocation2 + $0x3c0] sm:$0xff] %v3183
        %3440 = vst [vmem:[#allocation2 + $0x3c8] sm:$0xff] %v3184
        %3441 = vst [vmem:[#allocation2 + $0x3d0] sm:$0xff] %v3185
        %3442 = vst [vmem:[#allocation2 + $0x3d8] sm:$0xff] %v3186
        %3443 = vst [vmem:[#allocation2 + $0x3e0] sm:$0xff] %v3187
        %3444 = vst [vmem:[#allocation2 + $0x3e8] sm:$0xff] %v3188
        %3445 = vst [vmem:[#allocation2 + $0x3f0] sm:$0xff] %v3189
        %3446 = vst [vmem:[#allocation2 + $0x3f8] sm:$0xff] %v3190
        %3447 = vst [vmem:[#allocation2 + $0x400] sm:$0xff] %v3191
        %3448 = vst [vmem:[#allocation2 + $0x408] sm:$0xff] %v3192
        %3449 = vst [vmem:[#allocation2 + $0x410] sm:$0xff] %v3193
        %3450 = vst [vmem:[#allocation2 + $0x418] sm:$0xff] %v3194
        %3451 = vst [vmem:[#allocation2 + $0x420] sm:$0xff] %v3195
        %3452 = vst [vmem:[#allocation2 + $0x428] sm:$0xff] %v3196
        %3453 = vst [vmem:[#allocation2 + $0x430] sm:$0xff] %v3197
        %3454 = vst [vmem:[#allocation2 + $0x438] sm:$0xff] %v3198
        %3455 = vst [vmem:[#allocation2 + $0x440] sm:$0xff] %v3199
        %3456 = vst [vmem:[#allocation2 + $0x448] sm:$0xff] %v3200
        %3457 = vst [vmem:[#allocation2 + $0x450] sm:$0xff] %v3201
        %3458 = vst [vmem:[#allocation2 + $0x458] sm:$0xff] %v3202
        %3459 = vst [vmem:[#allocation2 + $0x460] sm:$0xff] %v3203
        %3460 = vst [vmem:[#allocation2 + $0x468] sm:$0xff] %v3204
        %3461 = vst [vmem:[#allocation2 + $0x470] sm:$0xff] %v3205
        %3462 = vst [vmem:[#allocation2 + $0x478] sm:$0xff] %v3206
        %3463 = vst [vmem:[#allocation2 + $0x480] sm:$0xff] %v3207
        %3464 = vst [vmem:[#allocation2 + $0x488] sm:$0xff] %v3208
        %3465 = vst [vmem:[#allocation2 + $0x490] sm:$0xff] %v3209
        %3466 = vst [vmem:[#allocation2 + $0x498] sm:$0xff] %v3210
        %3467 = vst [vmem:[#allocation2 + $0x4a0] sm:$0xff] %v3211
        %3468 = vst [vmem:[#allocation2 + $0x4a8] sm:$0xff] %v3212
        %3469 = vst [vmem:[#allocation2 + $0x4b0] sm:$0xff] %v3213
        %3470 = vst [vmem:[#allocation2 + $0x4b8] sm:$0xff] %v3214
        %3471 = vst [vmem:[#allocation2 + $0x4c0] sm:$0xff] %v3215
        %3472 = vst [vmem:[#allocation2 + $0x4c8] sm:$0xff] %v3216
        %3473 = vst [vmem:[#allocation2 + $0x4d0] sm:$0xff] %v3217
        %3474 = vst [vmem:[#allocation2 + $0x4d8] sm:$0xff] %v3218
        %3475 = vst [vmem:[#allocation2 + $0x4e0] sm:$0xff] %v3219
        %3476 = vst [vmem:[#allocation2 + $0x4e8] sm:$0xff] %v3220
        %3477 = vst [vmem:[#allocation2 + $0x4f0] sm:$0xff] %v3221
        %3478 = vst [vmem:[#allocation2 + $0x4f8] sm:$0xff] %v3222
        %3479 = vst [vmem:[#allocation2 + $0x500] sm:$0xff] %v3223
        %3480 = vst [vmem:[#allocation2 + $0x508] sm:$0xff] %v3224
        %3481 = vst [vmem:[#allocation2 + $0x510] sm:$0xff] %v3225
        %3482 = vst [vmem:[#allocation2 + $0x518] sm:$0xff] %v3226
        %3483 = vst [vmem:[#allocation2 + $0x520] sm:$0xff] %v3227
        %3484 = vst [vmem:[#allocation2 + $0x528] sm:$0xff] %v3228
        %3485 = vst [vmem:[#allocation2 + $0x530] sm:$0xff] %v3229
        %3486 = vst [vmem:[#allocation2 + $0x538] sm:$0xff] %v3230
        %3487 = vst [vmem:[#allocation2 + $0x540] sm:$0xff] %v3231
        %3488 = vst [vmem:[#allocation2 + $0x548] sm:$0xff] %v3232
        %3489 = vst [vmem:[#allocation2 + $0x550] sm:$0xff] %v3233
        %3490 = vst [vmem:[#allocation2 + $0x558] sm:$0xff] %v3234
        %3491 = vst [vmem:[#allocation2 + $0x560] sm:$0xff] %v3235
        %3492 = vst [vmem:[#allocation2 + $0x568] sm:$0xff] %v3236
        %3493 = vst [vmem:[#allocation2 + $0x570] sm:$0xff] %v3237
        %3494 = vst [vmem:[#allocation2 + $0x578] sm:$0xff] %v3238
        %3495 = vst [vmem:[#allocation2 + $0x580] sm:$0xff] %v3239
        %3496 = vst [vmem:[#allocation2 + $0x588] sm:$0xff] %v3240
        %3497 = vst [vmem:[#allocation2 + $0x590] sm:$0xff] %v3241
        %3498 = vst [vmem:[#allocation2 + $0x598] sm:$0xff] %v3242
        %3499 = vst [vmem:[#allocation2 + $0x5a0] sm:$0xff] %v3243
        %3500 = vst [vmem:[#allocation2 + $0x5a8] sm:$0xff] %v3244
        %3501 = vst [vmem:[#allocation2 + $0x5b0] sm:$0xff] %v3245
        %3502 = vst [vmem:[#allocation2 + $0x5b8] sm:$0xff] %v3246
        %3503 = vst [vmem:[#allocation2 + $0x5c0] sm:$0xff] %v3247
        %3504 = vst [vmem:[#allocation2 + $0x5c8] sm:$0xff] %v3248
        %3505 = vst [vmem:[#allocation2 + $0x5d0] sm:$0xff] %v3249
        %3506 = vst [vmem:[#allocation2 + $0x5d8] sm:$0xff] %v3250
        %3507 = vst [vmem:[#allocation2 + $0x5e0] sm:$0xff] %v3251
        %3508 = vst [vmem:[#allocation2 + $0x5e8] sm:$0xff] %v3252
        %3509 = vst [vmem:[#allocation2 + $0x5f0] sm:$0xff] %v3253
        %3510 = vst [vmem:[#allocation2 + $0x5f8] sm:$0xff] %v3254
        %3511 = vst [vmem:[#allocation2 + $0x600] sm:$0xff] %v3255
        %3512 = vst [vmem:[#allocation2 + $0x608] sm:$0xff] %v3256
        %3513 = vst [vmem:[#allocation2 + $0x610] sm:$0xff] %v3257
        %3514 = vst [vmem:[#allocation2 + $0x618] sm:$0xff] %v3258
        %3515 = vst [vmem:[#allocation2 + $0x620] sm:$0xff] %v3259
        %3516 = vst [vmem:[#allocation2 + $0x628] sm:$0xff] %v3260
        %3517 = vst [vmem:[#allocation2 + $0x630] sm:$0xff] %v3261
        %3518 = vst [vmem:[#allocation2 + $0x638] sm:$0xff] %v3262
        %3519 = vst [vmem:[#allocation2 + $0x640] sm:$0xff] %v3263
        %3520 = vst [vmem:[#allocation2 + $0x648] sm:$0xff] %v3264
        %3521 = vst [vmem:[#allocation2 + $0x650] sm:$0xff] %v3265
        %3522 = vst [vmem:[#allocation2 + $0x658] sm:$0xff] %v3266
        %3523 = vst [vmem:[#allocation2 + $0x660] sm:$0xff] %v3267
        %3524 = vst [vmem:[#allocation2 + $0x668] sm:$0xff] %v3268
        %3525 = vst [vmem:[#allocation2 + $0x670] sm:$0xff] %v3269
        %3526 = vst [vmem:[#allocation2 + $0x678] sm:$0xff] %v3270
        %3527 = vst [vmem:[#allocation2 + $0x680] sm:$0xff] %v3271
        %3528 = vst [vmem:[#allocation2 + $0x688] sm:$0xff] %v3272
        %3529 = vst [vmem:[#allocation2 + $0x690] sm:$0xff] %v3273
        %3530 = vst [vmem:[#allocation2 + $0x698] sm:$0xff] %v3274
        %3531 = vst [vmem:[#allocation2 + $0x6a0] sm:$0xff] %v3275
        %3532 = vst [vmem:[#allocation2 + $0x6a8] sm:$0xff] %v3276
        %3533 = vst [vmem:[#allocation2 + $0x6b0] sm:$0xff] %v3277
        %3534 = vst [vmem:[#allocation2 + $0x6b8] sm:$0xff] %v3278
        %3535 = vst [vmem:[#allocation2 + $0x6c0] sm:$0xff] %v3279
        %3536 = vst [vmem:[#allocation2 + $0x6c8] sm:$0xff] %v3280
        %3537 = vst [vmem:[#allocation2 + $0x6d0] sm:$0xff] %v3281
        %3538 = vst [vmem:[#allocation2 + $0x6d8] sm:$0xff] %v3282
        %3539 = vst [vmem:[#allocation2 + $0x6e0] sm:$0xff] %v3283
        %3540 = vst [vmem:[#allocation2 + $0x6e8] sm:$0xff] %v3284
        %3541 = vst [vmem:[#allocation2 + $0x6f0] sm:$0xff] %v3285
        %3542 = vst [vmem:[#allocation2 + $0x6f8] sm:$0xff] %v3286
        %3543 = vst [vmem:[#allocation2 + $0x700] sm:$0xff] %v3287
        %3544 = vst [vmem:[#allocation2 + $0x708] sm:$0xff] %v3288
        %3545 = vst [vmem:[#allocation2 + $0x710] sm:$0xff] %v3289
        %3546 = vst [vmem:[#allocation2 + $0x718] sm:$0xff] %v3290
        %3547 = vst [vmem:[#allocation2 + $0x720] sm:$0xff] %v3291
        %3548 = vst [vmem:[#allocation2 + $0x728] sm:$0xff] %v3292
        %3549 = vst [vmem:[#allocation2 + $0x730] sm:$0xff] %v3293
        %3550 = vst [vmem:[#allocation2 + $0x738] sm:$0xff] %v3294
        %3551 = vst [vmem:[#allocation2 + $0x740] sm:$0xff] %v3295
        %3552 = vst [vmem:[#allocation2 + $0x748] sm:$0xff] %v3296
        %3553 = vst [vmem:[#allocation2 + $0x750] sm:$0xff] %v3297
        %3554 = vst [vmem:[#allocation2 + $0x758] sm:$0xff] %v3298
        %3555 = vst [vmem:[#allocation2 + $0x760] sm:$0xff] %v3299
        %3556 = vst [vmem:[#allocation2 + $0x768] sm:$0xff] %v3300
        %3557 = vst [vmem:[#allocation2 + $0x770] sm:$0xff] %v3301
        %3558 = vst [vmem:[#allocation2 + $0x778] sm:$0xff] %v3302
        %3559 = vst [vmem:[#allocation2 + $0x780] sm:$0xff] %v3303
        %3560 = vst [vmem:[#allocation2 + $0x788] sm:$0xff] %v3304
        %3561 = vst [vmem:[#allocation2 + $0x790] sm:$0xff] %v3305
        %3562 = vst [vmem:[#allocation2 + $0x798] sm:$0xff] %v3306
        %3563 = vst [vmem:[#allocation2 + $0x7a0] sm:$0xff] %v3307
        %3564 = vst [vmem:[#allocation2 + $0x7a8] sm:$0xff] %v3308
        %3565 = vst [vmem:[#allocation2 + $0x7b0] sm:$0xff] %v3309
        %3566 = vst [vmem:[#allocation2 + $0x7b8] sm:$0xff] %v3310
        %3567 = vst [vmem:[#allocation2 + $0x7c0] sm:$0xff] %v3311
        %3568 = vst [vmem:[#allocation2 + $0x7c8] sm:$0xff] %v3312
        %3569 = vst [vmem:[#allocation2 + $0x7d0] sm:$0xff] %v3313
        %3570 = vst [vmem:[#allocation2 + $0x7d8] sm:$0xff] %v3314
        %3571 = vst [vmem:[#allocation2 + $0x7e0] sm:$0xff] %v3315
        %3572 = vst [vmem:[#allocation2 + $0x7e8] sm:$0xff] %v3316
        %3573 = vst [vmem:[#allocation2 + $0x7f0] sm:$0xff] %v3317
        %3574 = vst [vmem:[#allocation2 + $0x7f8] sm:$0xff] %v3318
        // Predicated region
        $region41: #{tpu_custom_call.1} parent=27 // pred_check
          %p3575 = pneg %p239
        $region42: #{tpu_custom_call.1} parent=27 // pred_check_branch
          %3577 = sbr.rel (%p3575) target = $region44
        $region43: #{tpu_custom_call.1} parent=27 // pred_region
          %v3578 = vld [vmem:[#allocation2] sm:$0xff]
          %v3579 = vld [vmem:[#allocation2 + $0x8] sm:$0xff]
          %v3580 = vld [vmem:[#allocation2 + $0x10] sm:$0xff]
          %v3581 = vld [vmem:[#allocation2 + $0x18] sm:$0xff]
          %v3582 = vld [vmem:[#allocation2 + $0x20] sm:$0xff]
          %v3583 = vld [vmem:[#allocation2 + $0x28] sm:$0xff]
          %v3584 = vld [vmem:[#allocation2 + $0x30] sm:$0xff]
          %v3585 = vld [vmem:[#allocation2 + $0x38] sm:$0xff]
          %v3586 = vld [vmem:[#allocation2 + $0x40] sm:$0xff]
          %v3587 = vld [vmem:[#allocation2 + $0x48] sm:$0xff]
          %v3588 = vld [vmem:[#allocation2 + $0x50] sm:$0xff]
          %v3589 = vld [vmem:[#allocation2 + $0x58] sm:$0xff]
          %v3590 = vld [vmem:[#allocation2 + $0x60] sm:$0xff]
          %v3591 = vld [vmem:[#allocation2 + $0x68] sm:$0xff]
          %v3592 = vld [vmem:[#allocation2 + $0x70] sm:$0xff]
          %v3593 = vld [vmem:[#allocation2 + $0x78] sm:$0xff]
          %v3594 = vld [vmem:[#allocation2 + $0x80] sm:$0xff]
          %v3595 = vld [vmem:[#allocation2 + $0x88] sm:$0xff]
          %v3596 = vld [vmem:[#allocation2 + $0x90] sm:$0xff]
          %v3597 = vld [vmem:[#allocation2 + $0x98] sm:$0xff]
          %v3598 = vld [vmem:[#allocation2 + $0xa0] sm:$0xff]
          %v3599 = vld [vmem:[#allocation2 + $0xa8] sm:$0xff]
          %v3600 = vld [vmem:[#allocation2 + $0xb0] sm:$0xff]
          %v3601 = vld [vmem:[#allocation2 + $0xb8] sm:$0xff]
          %v3602 = vld [vmem:[#allocation2 + $0xc0] sm:$0xff]
          %v3603 = vld [vmem:[#allocation2 + $0xc8] sm:$0xff]
          %v3604 = vld [vmem:[#allocation2 + $0xd0] sm:$0xff]
          %v3605 = vld [vmem:[#allocation2 + $0xd8] sm:$0xff]
          %v3606 = vld [vmem:[#allocation2 + $0xe0] sm:$0xff]
          %v3607 = vld [vmem:[#allocation2 + $0xe8] sm:$0xff]
          %v3608 = vld [vmem:[#allocation2 + $0xf0] sm:$0xff]
          %v3609 = vld [vmem:[#allocation2 + $0xf8] sm:$0xff]
          %v3610 = vld [vmem:[#allocation2 + $0x100] sm:$0xff]
          %v3611 = vld [vmem:[#allocation2 + $0x108] sm:$0xff]
          %v3612 = vld [vmem:[#allocation2 + $0x110] sm:$0xff]
          %v3613 = vld [vmem:[#allocation2 + $0x118] sm:$0xff]
          %v3614 = vld [vmem:[#allocation2 + $0x120] sm:$0xff]
          %v3615 = vld [vmem:[#allocation2 + $0x128] sm:$0xff]
          %v3616 = vld [vmem:[#allocation2 + $0x130] sm:$0xff]
          %v3617 = vld [vmem:[#allocation2 + $0x138] sm:$0xff]
          %v3618 = vld [vmem:[#allocation2 + $0x140] sm:$0xff]
          %v3619 = vld [vmem:[#allocation2 + $0x148] sm:$0xff]
          %v3620 = vld [vmem:[#allocation2 + $0x150] sm:$0xff]
          %v3621 = vld [vmem:[#allocation2 + $0x158] sm:$0xff]
          %v3622 = vld [vmem:[#allocation2 + $0x160] sm:$0xff]
          %v3623 = vld [vmem:[#allocation2 + $0x168] sm:$0xff]
          %v3624 = vld [vmem:[#allocation2 + $0x170] sm:$0xff]
          %v3625 = vld [vmem:[#allocation2 + $0x178] sm:$0xff]
          %v3626 = vld [vmem:[#allocation2 + $0x180] sm:$0xff]
          %v3627 = vld [vmem:[#allocation2 + $0x188] sm:$0xff]
          %v3628 = vld [vmem:[#allocation2 + $0x190] sm:$0xff]
          %v3629 = vld [vmem:[#allocation2 + $0x198] sm:$0xff]
          %v3630 = vld [vmem:[#allocation2 + $0x1a0] sm:$0xff]
          %v3631 = vld [vmem:[#allocation2 + $0x1a8] sm:$0xff]
          %v3632 = vld [vmem:[#allocation2 + $0x1b0] sm:$0xff]
          %v3633 = vld [vmem:[#allocation2 + $0x1b8] sm:$0xff]
          %v3634 = vld [vmem:[#allocation2 + $0x1c0] sm:$0xff]
          %v3635 = vld [vmem:[#allocation2 + $0x1c8] sm:$0xff]
          %v3636 = vld [vmem:[#allocation2 + $0x1d0] sm:$0xff]
          %v3637 = vld [vmem:[#allocation2 + $0x1d8] sm:$0xff]
          %v3638 = vld [vmem:[#allocation2 + $0x1e0] sm:$0xff]
          %v3639 = vld [vmem:[#allocation2 + $0x1e8] sm:$0xff]
          %v3640 = vld [vmem:[#allocation2 + $0x1f0] sm:$0xff]
          %v3641 = vld [vmem:[#allocation2 + $0x1f8] sm:$0xff]
          %v3642 = vld [vmem:[#allocation2 + $0x200] sm:$0xff]
          %v3643 = vld [vmem:[#allocation2 + $0x208] sm:$0xff]
          %v3644 = vld [vmem:[#allocation2 + $0x210] sm:$0xff]
          %v3645 = vld [vmem:[#allocation2 + $0x218] sm:$0xff]
          %v3646 = vld [vmem:[#allocation2 + $0x220] sm:$0xff]
          %v3647 = vld [vmem:[#allocation2 + $0x228] sm:$0xff]
          %v3648 = vld [vmem:[#allocation2 + $0x230] sm:$0xff]
          %v3649 = vld [vmem:[#allocation2 + $0x238] sm:$0xff]
          %v3650 = vld [vmem:[#allocation2 + $0x240] sm:$0xff]
          %v3651 = vld [vmem:[#allocation2 + $0x248] sm:$0xff]
          %v3652 = vld [vmem:[#allocation2 + $0x250] sm:$0xff]
          %v3653 = vld [vmem:[#allocation2 + $0x258] sm:$0xff]
          %v3654 = vld [vmem:[#allocation2 + $0x260] sm:$0xff]
          %v3655 = vld [vmem:[#allocation2 + $0x268] sm:$0xff]
          %v3656 = vld [vmem:[#allocation2 + $0x270] sm:$0xff]
          %v3657 = vld [vmem:[#allocation2 + $0x278] sm:$0xff]
          %v3658 = vld [vmem:[#allocation2 + $0x280] sm:$0xff]
          %v3659 = vld [vmem:[#allocation2 + $0x288] sm:$0xff]
          %v3660 = vld [vmem:[#allocation2 + $0x290] sm:$0xff]
          %v3661 = vld [vmem:[#allocation2 + $0x298] sm:$0xff]
          %v3662 = vld [vmem:[#allocation2 + $0x2a0] sm:$0xff]
          %v3663 = vld [vmem:[#allocation2 + $0x2a8] sm:$0xff]
          %v3664 = vld [vmem:[#allocation2 + $0x2b0] sm:$0xff]
          %v3665 = vld [vmem:[#allocation2 + $0x2b8] sm:$0xff]
          %v3666 = vld [vmem:[#allocation2 + $0x2c0] sm:$0xff]
          %v3667 = vld [vmem:[#allocation2 + $0x2c8] sm:$0xff]
          %v3668 = vld [vmem:[#allocation2 + $0x2d0] sm:$0xff]
          %v3669 = vld [vmem:[#allocation2 + $0x2d8] sm:$0xff]
          %v3670 = vld [vmem:[#allocation2 + $0x2e0] sm:$0xff]
          %v3671 = vld [vmem:[#allocation2 + $0x2e8] sm:$0xff]
          %v3672 = vld [vmem:[#allocation2 + $0x2f0] sm:$0xff]
          %v3673 = vld [vmem:[#allocation2 + $0x2f8] sm:$0xff]
          %v3674 = vld [vmem:[#allocation2 + $0x300] sm:$0xff]
          %v3675 = vld [vmem:[#allocation2 + $0x308] sm:$0xff]
          %v3676 = vld [vmem:[#allocation2 + $0x310] sm:$0xff]
          %v3677 = vld [vmem:[#allocation2 + $0x318] sm:$0xff]
          %v3678 = vld [vmem:[#allocation2 + $0x320] sm:$0xff]
          %v3679 = vld [vmem:[#allocation2 + $0x328] sm:$0xff]
          %v3680 = vld [vmem:[#allocation2 + $0x330] sm:$0xff]
          %v3681 = vld [vmem:[#allocation2 + $0x338] sm:$0xff]
          %v3682 = vld [vmem:[#allocation2 + $0x340] sm:$0xff]
          %v3683 = vld [vmem:[#allocation2 + $0x348] sm:$0xff]
          %v3684 = vld [vmem:[#allocation2 + $0x350] sm:$0xff]
          %v3685 = vld [vmem:[#allocation2 + $0x358] sm:$0xff]
          %v3686 = vld [vmem:[#allocation2 + $0x360] sm:$0xff]
          %v3687 = vld [vmem:[#allocation2 + $0x368] sm:$0xff]
          %v3688 = vld [vmem:[#allocation2 + $0x370] sm:$0xff]
          %v3689 = vld [vmem:[#allocation2 + $0x378] sm:$0xff]
          %v3690 = vld [vmem:[#allocation2 + $0x380] sm:$0xff]
          %v3691 = vld [vmem:[#allocation2 + $0x388] sm:$0xff]
          %v3692 = vld [vmem:[#allocation2 + $0x390] sm:$0xff]
          %v3693 = vld [vmem:[#allocation2 + $0x398] sm:$0xff]
          %v3694 = vld [vmem:[#allocation2 + $0x3a0] sm:$0xff]
          %v3695 = vld [vmem:[#allocation2 + $0x3a8] sm:$0xff]
          %v3696 = vld [vmem:[#allocation2 + $0x3b0] sm:$0xff]
          %v3697 = vld [vmem:[#allocation2 + $0x3b8] sm:$0xff]
          %v3698 = vld [vmem:[#allocation2 + $0x3c0] sm:$0xff]
          %v3699 = vld [vmem:[#allocation2 + $0x3c8] sm:$0xff]
          %v3700 = vld [vmem:[#allocation2 + $0x3d0] sm:$0xff]
          %v3701 = vld [vmem:[#allocation2 + $0x3d8] sm:$0xff]
          %v3702 = vld [vmem:[#allocation2 + $0x3e0] sm:$0xff]
          %v3703 = vld [vmem:[#allocation2 + $0x3e8] sm:$0xff]
          %v3704 = vld [vmem:[#allocation2 + $0x3f0] sm:$0xff]
          %v3705 = vld [vmem:[#allocation2 + $0x3f8] sm:$0xff]
          %v3706 = vld [vmem:[#allocation2 + $0x400] sm:$0xff]
          %v3707 = vld [vmem:[#allocation2 + $0x408] sm:$0xff]
          %v3708 = vld [vmem:[#allocation2 + $0x410] sm:$0xff]
          %v3709 = vld [vmem:[#allocation2 + $0x418] sm:$0xff]
          %v3710 = vld [vmem:[#allocation2 + $0x420] sm:$0xff]
          %v3711 = vld [vmem:[#allocation2 + $0x428] sm:$0xff]
          %v3712 = vld [vmem:[#allocation2 + $0x430] sm:$0xff]
          %v3713 = vld [vmem:[#allocation2 + $0x438] sm:$0xff]
          %v3714 = vld [vmem:[#allocation2 + $0x440] sm:$0xff]
          %v3715 = vld [vmem:[#allocation2 + $0x448] sm:$0xff]
          %v3716 = vld [vmem:[#allocation2 + $0x450] sm:$0xff]
          %v3717 = vld [vmem:[#allocation2 + $0x458] sm:$0xff]
          %v3718 = vld [vmem:[#allocation2 + $0x460] sm:$0xff]
          %v3719 = vld [vmem:[#allocation2 + $0x468] sm:$0xff]
          %v3720 = vld [vmem:[#allocation2 + $0x470] sm:$0xff]
          %v3721 = vld [vmem:[#allocation2 + $0x478] sm:$0xff]
          %v3722 = vld [vmem:[#allocation2 + $0x480] sm:$0xff]
          %v3723 = vld [vmem:[#allocation2 + $0x488] sm:$0xff]
          %v3724 = vld [vmem:[#allocation2 + $0x490] sm:$0xff]
          %v3725 = vld [vmem:[#allocation2 + $0x498] sm:$0xff]
          %v3726 = vld [vmem:[#allocation2 + $0x4a0] sm:$0xff]
          %v3727 = vld [vmem:[#allocation2 + $0x4a8] sm:$0xff]
          %v3728 = vld [vmem:[#allocation2 + $0x4b0] sm:$0xff]
          %v3729 = vld [vmem:[#allocation2 + $0x4b8] sm:$0xff]
          %v3730 = vld [vmem:[#allocation2 + $0x4c0] sm:$0xff]
          %v3731 = vld [vmem:[#allocation2 + $0x4c8] sm:$0xff]
          %v3732 = vld [vmem:[#allocation2 + $0x4d0] sm:$0xff]
          %v3733 = vld [vmem:[#allocation2 + $0x4d8] sm:$0xff]
          %v3734 = vld [vmem:[#allocation2 + $0x4e0] sm:$0xff]
          %v3735 = vld [vmem:[#allocation2 + $0x4e8] sm:$0xff]
          %v3736 = vld [vmem:[#allocation2 + $0x4f0] sm:$0xff]
          %v3737 = vld [vmem:[#allocation2 + $0x4f8] sm:$0xff]
          %v3738 = vld [vmem:[#allocation2 + $0x500] sm:$0xff]
          %v3739 = vld [vmem:[#allocation2 + $0x508] sm:$0xff]
          %v3740 = vld [vmem:[#allocation2 + $0x510] sm:$0xff]
          %v3741 = vld [vmem:[#allocation2 + $0x518] sm:$0xff]
          %v3742 = vld [vmem:[#allocation2 + $0x520] sm:$0xff]
          %v3743 = vld [vmem:[#allocation2 + $0x528] sm:$0xff]
          %v3744 = vld [vmem:[#allocation2 + $0x530] sm:$0xff]
          %v3745 = vld [vmem:[#allocation2 + $0x538] sm:$0xff]
          %v3746 = vld [vmem:[#allocation2 + $0x540] sm:$0xff]
          %v3747 = vld [vmem:[#allocation2 + $0x548] sm:$0xff]
          %v3748 = vld [vmem:[#allocation2 + $0x550] sm:$0xff]
          %v3749 = vld [vmem:[#allocation2 + $0x558] sm:$0xff]
          %v3750 = vld [vmem:[#allocation2 + $0x560] sm:$0xff]
          %v3751 = vld [vmem:[#allocation2 + $0x568] sm:$0xff]
          %v3752 = vld [vmem:[#allocation2 + $0x570] sm:$0xff]
          %v3753 = vld [vmem:[#allocation2 + $0x578] sm:$0xff]
          %v3754 = vld [vmem:[#allocation2 + $0x580] sm:$0xff]
          %v3755 = vld [vmem:[#allocation2 + $0x588] sm:$0xff]
          %v3756 = vld [vmem:[#allocation2 + $0x590] sm:$0xff]
          %v3757 = vld [vmem:[#allocation2 + $0x598] sm:$0xff]
          %v3758 = vld [vmem:[#allocation2 + $0x5a0] sm:$0xff]
          %v3759 = vld [vmem:[#allocation2 + $0x5a8] sm:$0xff]
          %v3760 = vld [vmem:[#allocation2 + $0x5b0] sm:$0xff]
          %v3761 = vld [vmem:[#allocation2 + $0x5b8] sm:$0xff]
          %v3762 = vld [vmem:[#allocation2 + $0x5c0] sm:$0xff]
          %v3763 = vld [vmem:[#allocation2 + $0x5c8] sm:$0xff]
          %v3764 = vld [vmem:[#allocation2 + $0x5d0] sm:$0xff]
          %v3765 = vld [vmem:[#allocation2 + $0x5d8] sm:$0xff]
          %v3766 = vld [vmem:[#allocation2 + $0x5e0] sm:$0xff]
          %v3767 = vld [vmem:[#allocation2 + $0x5e8] sm:$0xff]
          %v3768 = vld [vmem:[#allocation2 + $0x5f0] sm:$0xff]
          %v3769 = vld [vmem:[#allocation2 + $0x5f8] sm:$0xff]
          %v3770 = vld [vmem:[#allocation2 + $0x600] sm:$0xff]
          %v3771 = vld [vmem:[#allocation2 + $0x608] sm:$0xff]
          %v3772 = vld [vmem:[#allocation2 + $0x610] sm:$0xff]
          %v3773 = vld [vmem:[#allocation2 + $0x618] sm:$0xff]
          %v3774 = vld [vmem:[#allocation2 + $0x620] sm:$0xff]
          %v3775 = vld [vmem:[#allocation2 + $0x628] sm:$0xff]
          %v3776 = vld [vmem:[#allocation2 + $0x630] sm:$0xff]
          %v3777 = vld [vmem:[#allocation2 + $0x638] sm:$0xff]
          %v3778 = vld [vmem:[#allocation2 + $0x640] sm:$0xff]
          %v3779 = vld [vmem:[#allocation2 + $0x648] sm:$0xff]
          %v3780 = vld [vmem:[#allocation2 + $0x650] sm:$0xff]
          %v3781 = vld [vmem:[#allocation2 + $0x658] sm:$0xff]
          %v3782 = vld [vmem:[#allocation2 + $0x660] sm:$0xff]
          %v3783 = vld [vmem:[#allocation2 + $0x668] sm:$0xff]
          %v3784 = vld [vmem:[#allocation2 + $0x670] sm:$0xff]
          %v3785 = vld [vmem:[#allocation2 + $0x678] sm:$0xff]
          %v3786 = vld [vmem:[#allocation2 + $0x680] sm:$0xff]
          %v3787 = vld [vmem:[#allocation2 + $0x688] sm:$0xff]
          %v3788 = vld [vmem:[#allocation2 + $0x690] sm:$0xff]
          %v3789 = vld [vmem:[#allocation2 + $0x698] sm:$0xff]
          %v3790 = vld [vmem:[#allocation2 + $0x6a0] sm:$0xff]
          %v3791 = vld [vmem:[#allocation2 + $0x6a8] sm:$0xff]
          %v3792 = vld [vmem:[#allocation2 + $0x6b0] sm:$0xff]
          %v3793 = vld [vmem:[#allocation2 + $0x6b8] sm:$0xff]
          %v3794 = vld [vmem:[#allocation2 + $0x6c0] sm:$0xff]
          %v3795 = vld [vmem:[#allocation2 + $0x6c8] sm:$0xff]
          %v3796 = vld [vmem:[#allocation2 + $0x6d0] sm:$0xff]
          %v3797 = vld [vmem:[#allocation2 + $0x6d8] sm:$0xff]
          %v3798 = vld [vmem:[#allocation2 + $0x6e0] sm:$0xff]
          %v3799 = vld [vmem:[#allocation2 + $0x6e8] sm:$0xff]
          %v3800 = vld [vmem:[#allocation2 + $0x6f0] sm:$0xff]
          %v3801 = vld [vmem:[#allocation2 + $0x6f8] sm:$0xff]
          %v3802 = vld [vmem:[#allocation2 + $0x700] sm:$0xff]
          %v3803 = vld [vmem:[#allocation2 + $0x708] sm:$0xff]
          %v3804 = vld [vmem:[#allocation2 + $0x710] sm:$0xff]
          %v3805 = vld [vmem:[#allocation2 + $0x718] sm:$0xff]
          %v3806 = vld [vmem:[#allocation2 + $0x720] sm:$0xff]
          %v3807 = vld [vmem:[#allocation2 + $0x728] sm:$0xff]
          %v3808 = vld [vmem:[#allocation2 + $0x730] sm:$0xff]
          %v3809 = vld [vmem:[#allocation2 + $0x738] sm:$0xff]
          %v3810 = vld [vmem:[#allocation2 + $0x740] sm:$0xff]
          %v3811 = vld [vmem:[#allocation2 + $0x748] sm:$0xff]
          %v3812 = vld [vmem:[#allocation2 + $0x750] sm:$0xff]
          %v3813 = vld [vmem:[#allocation2 + $0x758] sm:$0xff]
          %v3814 = vld [vmem:[#allocation2 + $0x760] sm:$0xff]
          %v3815 = vld [vmem:[#allocation2 + $0x768] sm:$0xff]
          %v3816 = vld [vmem:[#allocation2 + $0x770] sm:$0xff]
          %v3817 = vld [vmem:[#allocation2 + $0x778] sm:$0xff]
          %v3818 = vld [vmem:[#allocation2 + $0x780] sm:$0xff]
          %v3819 = vld [vmem:[#allocation2 + $0x788] sm:$0xff]
          %v3820 = vld [vmem:[#allocation2 + $0x790] sm:$0xff]
          %v3821 = vld [vmem:[#allocation2 + $0x798] sm:$0xff]
          %v3822 = vld [vmem:[#allocation2 + $0x7a0] sm:$0xff]
          %v3823 = vld [vmem:[#allocation2 + $0x7a8] sm:$0xff]
          %v3824 = vld [vmem:[#allocation2 + $0x7b0] sm:$0xff]
          %v3825 = vld [vmem:[#allocation2 + $0x7b8] sm:$0xff]
          %v3826 = vld [vmem:[#allocation2 + $0x7c0] sm:$0xff]
          %v3827 = vld [vmem:[#allocation2 + $0x7c8] sm:$0xff]
          %v3828 = vld [vmem:[#allocation2 + $0x7d0] sm:$0xff]
          %v3829 = vld [vmem:[#allocation2 + $0x7d8] sm:$0xff]
          %v3830 = vld [vmem:[#allocation2 + $0x7e0] sm:$0xff]
          %v3831 = vld [vmem:[#allocation2 + $0x7e8] sm:$0xff]
          %v3832 = vld [vmem:[#allocation2 + $0x7f0] sm:$0xff]
          %v3833 = vld [vmem:[#allocation2 + $0x7f8] sm:$0xff]
          %3834 = vst [vmem:[%s232] sm:$0xff] %v3578
          %3835 = vst [vmem:[%s232 + $0x8] sm:$0xff] %v3579
          %3836 = vst [vmem:[%s232 + $0x10] sm:$0xff] %v3580
          %3837 = vst [vmem:[%s232 + $0x18] sm:$0xff] %v3581
          %3838 = vst [vmem:[%s232 + $0x20] sm:$0xff] %v3582
          %3839 = vst [vmem:[%s232 + $0x28] sm:$0xff] %v3583
          %3840 = vst [vmem:[%s232 + $0x30] sm:$0xff] %v3584
          %3841 = vst [vmem:[%s232 + $0x38] sm:$0xff] %v3585
          %3842 = vst [vmem:[%s232 + $0x40] sm:$0xff] %v3586
          %3843 = vst [vmem:[%s232 + $0x48] sm:$0xff] %v3587
          %3844 = vst [vmem:[%s232 + $0x50] sm:$0xff] %v3588
          %3845 = vst [vmem:[%s232 + $0x58] sm:$0xff] %v3589
          %3846 = vst [vmem:[%s232 + $0x60] sm:$0xff] %v3590
          %3847 = vst [vmem:[%s232 + $0x68] sm:$0xff] %v3591
          %3848 = vst [vmem:[%s232 + $0x70] sm:$0xff] %v3592
          %3849 = vst [vmem:[%s232 + $0x78] sm:$0xff] %v3593
          %3850 = vst [vmem:[%s232 + $0x80] sm:$0xff] %v3594
          %3851 = vst [vmem:[%s232 + $0x88] sm:$0xff] %v3595
          %3852 = vst [vmem:[%s232 + $0x90] sm:$0xff] %v3596
          %3853 = vst [vmem:[%s232 + $0x98] sm:$0xff] %v3597
          %3854 = vst [vmem:[%s232 + $0xa0] sm:$0xff] %v3598
          %3855 = vst [vmem:[%s232 + $0xa8] sm:$0xff] %v3599
          %3856 = vst [vmem:[%s232 + $0xb0] sm:$0xff] %v3600
          %3857 = vst [vmem:[%s232 + $0xb8] sm:$0xff] %v3601
          %3858 = vst [vmem:[%s232 + $0xc0] sm:$0xff] %v3602
          %3859 = vst [vmem:[%s232 + $0xc8] sm:$0xff] %v3603
          %3860 = vst [vmem:[%s232 + $0xd0] sm:$0xff] %v3604
          %3861 = vst [vmem:[%s232 + $0xd8] sm:$0xff] %v3605
          %3862 = vst [vmem:[%s232 + $0xe0] sm:$0xff] %v3606
          %3863 = vst [vmem:[%s232 + $0xe8] sm:$0xff] %v3607
          %3864 = vst [vmem:[%s232 + $0xf0] sm:$0xff] %v3608
          %3865 = vst [vmem:[%s232 + $0xf8] sm:$0xff] %v3609
          %3866 = vst [vmem:[%s232 + $0x100] sm:$0xff] %v3610
          %3867 = vst [vmem:[%s232 + $0x108] sm:$0xff] %v3611
          %3868 = vst [vmem:[%s232 + $0x110] sm:$0xff] %v3612
          %3869 = vst [vmem:[%s232 + $0x118] sm:$0xff] %v3613
          %3870 = vst [vmem:[%s232 + $0x120] sm:$0xff] %v3614
          %3871 = vst [vmem:[%s232 + $0x128] sm:$0xff] %v3615
          %3872 = vst [vmem:[%s232 + $0x130] sm:$0xff] %v3616
          %3873 = vst [vmem:[%s232 + $0x138] sm:$0xff] %v3617
          %3874 = vst [vmem:[%s232 + $0x140] sm:$0xff] %v3618
          %3875 = vst [vmem:[%s232 + $0x148] sm:$0xff] %v3619
          %3876 = vst [vmem:[%s232 + $0x150] sm:$0xff] %v3620
          %3877 = vst [vmem:[%s232 + $0x158] sm:$0xff] %v3621
          %3878 = vst [vmem:[%s232 + $0x160] sm:$0xff] %v3622
          %3879 = vst [vmem:[%s232 + $0x168] sm:$0xff] %v3623
          %3880 = vst [vmem:[%s232 + $0x170] sm:$0xff] %v3624
          %3881 = vst [vmem:[%s232 + $0x178] sm:$0xff] %v3625
          %3882 = vst [vmem:[%s232 + $0x180] sm:$0xff] %v3626
          %3883 = vst [vmem:[%s232 + $0x188] sm:$0xff] %v3627
          %3884 = vst [vmem:[%s232 + $0x190] sm:$0xff] %v3628
          %3885 = vst [vmem:[%s232 + $0x198] sm:$0xff] %v3629
          %3886 = vst [vmem:[%s232 + $0x1a0] sm:$0xff] %v3630
          %3887 = vst [vmem:[%s232 + $0x1a8] sm:$0xff] %v3631
          %3888 = vst [vmem:[%s232 + $0x1b0] sm:$0xff] %v3632
          %3889 = vst [vmem:[%s232 + $0x1b8] sm:$0xff] %v3633
          %3890 = vst [vmem:[%s232 + $0x1c0] sm:$0xff] %v3634
          %3891 = vst [vmem:[%s232 + $0x1c8] sm:$0xff] %v3635
          %3892 = vst [vmem:[%s232 + $0x1d0] sm:$0xff] %v3636
          %3893 = vst [vmem:[%s232 + $0x1d8] sm:$0xff] %v3637
          %3894 = vst [vmem:[%s232 + $0x1e0] sm:$0xff] %v3638
          %3895 = vst [vmem:[%s232 + $0x1e8] sm:$0xff] %v3639
          %3896 = vst [vmem:[%s232 + $0x1f0] sm:$0xff] %v3640
          %3897 = vst [vmem:[%s232 + $0x1f8] sm:$0xff] %v3641
          %3898 = vst [vmem:[%s232 + $0x200] sm:$0xff] %v3642
          %3899 = vst [vmem:[%s232 + $0x208] sm:$0xff] %v3643
          %3900 = vst [vmem:[%s232 + $0x210] sm:$0xff] %v3644
          %3901 = vst [vmem:[%s232 + $0x218] sm:$0xff] %v3645
          %3902 = vst [vmem:[%s232 + $0x220] sm:$0xff] %v3646
          %3903 = vst [vmem:[%s232 + $0x228] sm:$0xff] %v3647
          %3904 = vst [vmem:[%s232 + $0x230] sm:$0xff] %v3648
          %3905 = vst [vmem:[%s232 + $0x238] sm:$0xff] %v3649
          %3906 = vst [vmem:[%s232 + $0x240] sm:$0xff] %v3650
          %3907 = vst [vmem:[%s232 + $0x248] sm:$0xff] %v3651
          %3908 = vst [vmem:[%s232 + $0x250] sm:$0xff] %v3652
          %3909 = vst [vmem:[%s232 + $0x258] sm:$0xff] %v3653
          %3910 = vst [vmem:[%s232 + $0x260] sm:$0xff] %v3654
          %3911 = vst [vmem:[%s232 + $0x268] sm:$0xff] %v3655
          %3912 = vst [vmem:[%s232 + $0x270] sm:$0xff] %v3656
          %3913 = vst [vmem:[%s232 + $0x278] sm:$0xff] %v3657
          %3914 = vst [vmem:[%s232 + $0x280] sm:$0xff] %v3658
          %3915 = vst [vmem:[%s232 + $0x288] sm:$0xff] %v3659
          %3916 = vst [vmem:[%s232 + $0x290] sm:$0xff] %v3660
          %3917 = vst [vmem:[%s232 + $0x298] sm:$0xff] %v3661
          %3918 = vst [vmem:[%s232 + $0x2a0] sm:$0xff] %v3662
          %3919 = vst [vmem:[%s232 + $0x2a8] sm:$0xff] %v3663
          %3920 = vst [vmem:[%s232 + $0x2b0] sm:$0xff] %v3664
          %3921 = vst [vmem:[%s232 + $0x2b8] sm:$0xff] %v3665
          %3922 = vst [vmem:[%s232 + $0x2c0] sm:$0xff] %v3666
          %3923 = vst [vmem:[%s232 + $0x2c8] sm:$0xff] %v3667
          %3924 = vst [vmem:[%s232 + $0x2d0] sm:$0xff] %v3668
          %3925 = vst [vmem:[%s232 + $0x2d8] sm:$0xff] %v3669
          %3926 = vst [vmem:[%s232 + $0x2e0] sm:$0xff] %v3670
          %3927 = vst [vmem:[%s232 + $0x2e8] sm:$0xff] %v3671
          %3928 = vst [vmem:[%s232 + $0x2f0] sm:$0xff] %v3672
          %3929 = vst [vmem:[%s232 + $0x2f8] sm:$0xff] %v3673
          %3930 = vst [vmem:[%s232 + $0x300] sm:$0xff] %v3674
          %3931 = vst [vmem:[%s232 + $0x308] sm:$0xff] %v3675
          %3932 = vst [vmem:[%s232 + $0x310] sm:$0xff] %v3676
          %3933 = vst [vmem:[%s232 + $0x318] sm:$0xff] %v3677
          %3934 = vst [vmem:[%s232 + $0x320] sm:$0xff] %v3678
          %3935 = vst [vmem:[%s232 + $0x328] sm:$0xff] %v3679
          %3936 = vst [vmem:[%s232 + $0x330] sm:$0xff] %v3680
          %3937 = vst [vmem:[%s232 + $0x338] sm:$0xff] %v3681
          %3938 = vst [vmem:[%s232 + $0x340] sm:$0xff] %v3682
          %3939 = vst [vmem:[%s232 + $0x348] sm:$0xff] %v3683
          %3940 = vst [vmem:[%s232 + $0x350] sm:$0xff] %v3684
          %3941 = vst [vmem:[%s232 + $0x358] sm:$0xff] %v3685
          %3942 = vst [vmem:[%s232 + $0x360] sm:$0xff] %v3686
          %3943 = vst [vmem:[%s232 + $0x368] sm:$0xff] %v3687
          %3944 = vst [vmem:[%s232 + $0x370] sm:$0xff] %v3688
          %3945 = vst [vmem:[%s232 + $0x378] sm:$0xff] %v3689
          %3946 = vst [vmem:[%s232 + $0x380] sm:$0xff] %v3690
          %3947 = vst [vmem:[%s232 + $0x388] sm:$0xff] %v3691
          %3948 = vst [vmem:[%s232 + $0x390] sm:$0xff] %v3692
          %3949 = vst [vmem:[%s232 + $0x398] sm:$0xff] %v3693
          %3950 = vst [vmem:[%s232 + $0x3a0] sm:$0xff] %v3694
          %3951 = vst [vmem:[%s232 + $0x3a8] sm:$0xff] %v3695
          %3952 = vst [vmem:[%s232 + $0x3b0] sm:$0xff] %v3696
          %3953 = vst [vmem:[%s232 + $0x3b8] sm:$0xff] %v3697
          %3954 = vst [vmem:[%s232 + $0x3c0] sm:$0xff] %v3698
          %3955 = vst [vmem:[%s232 + $0x3c8] sm:$0xff] %v3699
          %3956 = vst [vmem:[%s232 + $0x3d0] sm:$0xff] %v3700
          %3957 = vst [vmem:[%s232 + $0x3d8] sm:$0xff] %v3701
          %3958 = vst [vmem:[%s232 + $0x3e0] sm:$0xff] %v3702
          %3959 = vst [vmem:[%s232 + $0x3e8] sm:$0xff] %v3703
          %3960 = vst [vmem:[%s232 + $0x3f0] sm:$0xff] %v3704
          %3961 = vst [vmem:[%s232 + $0x3f8] sm:$0xff] %v3705
          %3962 = vst [vmem:[%s232 + $0x400] sm:$0xff] %v3706
          %3963 = vst [vmem:[%s232 + $0x408] sm:$0xff] %v3707
          %3964 = vst [vmem:[%s232 + $0x410] sm:$0xff] %v3708
          %3965 = vst [vmem:[%s232 + $0x418] sm:$0xff] %v3709
          %3966 = vst [vmem:[%s232 + $0x420] sm:$0xff] %v3710
          %3967 = vst [vmem:[%s232 + $0x428] sm:$0xff] %v3711
          %3968 = vst [vmem:[%s232 + $0x430] sm:$0xff] %v3712
          %3969 = vst [vmem:[%s232 + $0x438] sm:$0xff] %v3713
          %3970 = vst [vmem:[%s232 + $0x440] sm:$0xff] %v3714
          %3971 = vst [vmem:[%s232 + $0x448] sm:$0xff] %v3715
          %3972 = vst [vmem:[%s232 + $0x450] sm:$0xff] %v3716
          %3973 = vst [vmem:[%s232 + $0x458] sm:$0xff] %v3717
          %3974 = vst [vmem:[%s232 + $0x460] sm:$0xff] %v3718
          %3975 = vst [vmem:[%s232 + $0x468] sm:$0xff] %v3719
          %3976 = vst [vmem:[%s232 + $0x470] sm:$0xff] %v3720
          %3977 = vst [vmem:[%s232 + $0x478] sm:$0xff] %v3721
          %3978 = vst [vmem:[%s232 + $0x480] sm:$0xff] %v3722
          %3979 = vst [vmem:[%s232 + $0x488] sm:$0xff] %v3723
          %3980 = vst [vmem:[%s232 + $0x490] sm:$0xff] %v3724
          %3981 = vst [vmem:[%s232 + $0x498] sm:$0xff] %v3725
          %3982 = vst [vmem:[%s232 + $0x4a0] sm:$0xff] %v3726
          %3983 = vst [vmem:[%s232 + $0x4a8] sm:$0xff] %v3727
          %3984 = vst [vmem:[%s232 + $0x4b0] sm:$0xff] %v3728
          %3985 = vst [vmem:[%s232 + $0x4b8] sm:$0xff] %v3729
          %3986 = vst [vmem:[%s232 + $0x4c0] sm:$0xff] %v3730
          %3987 = vst [vmem:[%s232 + $0x4c8] sm:$0xff] %v3731
          %3988 = vst [vmem:[%s232 + $0x4d0] sm:$0xff] %v3732
          %3989 = vst [vmem:[%s232 + $0x4d8] sm:$0xff] %v3733
          %3990 = vst [vmem:[%s232 + $0x4e0] sm:$0xff] %v3734
          %3991 = vst [vmem:[%s232 + $0x4e8] sm:$0xff] %v3735
          %3992 = vst [vmem:[%s232 + $0x4f0] sm:$0xff] %v3736
          %3993 = vst [vmem:[%s232 + $0x4f8] sm:$0xff] %v3737
          %3994 = vst [vmem:[%s232 + $0x500] sm:$0xff] %v3738
          %3995 = vst [vmem:[%s232 + $0x508] sm:$0xff] %v3739
          %3996 = vst [vmem:[%s232 + $0x510] sm:$0xff] %v3740
          %3997 = vst [vmem:[%s232 + $0x518] sm:$0xff] %v3741
          %3998 = vst [vmem:[%s232 + $0x520] sm:$0xff] %v3742
          %3999 = vst [vmem:[%s232 + $0x528] sm:$0xff] %v3743
          %4000 = vst [vmem:[%s232 + $0x530] sm:$0xff] %v3744
          %4001 = vst [vmem:[%s232 + $0x538] sm:$0xff] %v3745
          %4002 = vst [vmem:[%s232 + $0x540] sm:$0xff] %v3746
          %4003 = vst [vmem:[%s232 + $0x548] sm:$0xff] %v3747
          %4004 = vst [vmem:[%s232 + $0x550] sm:$0xff] %v3748
          %4005 = vst [vmem:[%s232 + $0x558] sm:$0xff] %v3749
          %4006 = vst [vmem:[%s232 + $0x560] sm:$0xff] %v3750
          %4007 = vst [vmem:[%s232 + $0x568] sm:$0xff] %v3751
          %4008 = vst [vmem:[%s232 + $0x570] sm:$0xff] %v3752
          %4009 = vst [vmem:[%s232 + $0x578] sm:$0xff] %v3753
          %4010 = vst [vmem:[%s232 + $0x580] sm:$0xff] %v3754
          %4011 = vst [vmem:[%s232 + $0x588] sm:$0xff] %v3755
          %4012 = vst [vmem:[%s232 + $0x590] sm:$0xff] %v3756
          %4013 = vst [vmem:[%s232 + $0x598] sm:$0xff] %v3757
          %4014 = vst [vmem:[%s232 + $0x5a0] sm:$0xff] %v3758
          %4015 = vst [vmem:[%s232 + $0x5a8] sm:$0xff] %v3759
          %4016 = vst [vmem:[%s232 + $0x5b0] sm:$0xff] %v3760
          %4017 = vst [vmem:[%s232 + $0x5b8] sm:$0xff] %v3761
          %4018 = vst [vmem:[%s232 + $0x5c0] sm:$0xff] %v3762
          %4019 = vst [vmem:[%s232 + $0x5c8] sm:$0xff] %v3763
          %4020 = vst [vmem:[%s232 + $0x5d0] sm:$0xff] %v3764
          %4021 = vst [vmem:[%s232 + $0x5d8] sm:$0xff] %v3765
          %4022 = vst [vmem:[%s232 + $0x5e0] sm:$0xff] %v3766
          %4023 = vst [vmem:[%s232 + $0x5e8] sm:$0xff] %v3767
          %4024 = vst [vmem:[%s232 + $0x5f0] sm:$0xff] %v3768
          %4025 = vst [vmem:[%s232 + $0x5f8] sm:$0xff] %v3769
          %4026 = vst [vmem:[%s232 + $0x600] sm:$0xff] %v3770
          %4027 = vst [vmem:[%s232 + $0x608] sm:$0xff] %v3771
          %4028 = vst [vmem:[%s232 + $0x610] sm:$0xff] %v3772
          %4029 = vst [vmem:[%s232 + $0x618] sm:$0xff] %v3773
          %4030 = vst [vmem:[%s232 + $0x620] sm:$0xff] %v3774
          %4031 = vst [vmem:[%s232 + $0x628] sm:$0xff] %v3775
          %4032 = vst [vmem:[%s232 + $0x630] sm:$0xff] %v3776
          %4033 = vst [vmem:[%s232 + $0x638] sm:$0xff] %v3777
          %4034 = vst [vmem:[%s232 + $0x640] sm:$0xff] %v3778
          %4035 = vst [vmem:[%s232 + $0x648] sm:$0xff] %v3779
          %4036 = vst [vmem:[%s232 + $0x650] sm:$0xff] %v3780
          %4037 = vst [vmem:[%s232 + $0x658] sm:$0xff] %v3781
          %4038 = vst [vmem:[%s232 + $0x660] sm:$0xff] %v3782
          %4039 = vst [vmem:[%s232 + $0x668] sm:$0xff] %v3783
          %4040 = vst [vmem:[%s232 + $0x670] sm:$0xff] %v3784
          %4041 = vst [vmem:[%s232 + $0x678] sm:$0xff] %v3785
          %4042 = vst [vmem:[%s232 + $0x680] sm:$0xff] %v3786
          %4043 = vst [vmem:[%s232 + $0x688] sm:$0xff] %v3787
          %4044 = vst [vmem:[%s232 + $0x690] sm:$0xff] %v3788
          %4045 = vst [vmem:[%s232 + $0x698] sm:$0xff] %v3789
          %4046 = vst [vmem:[%s232 + $0x6a0] sm:$0xff] %v3790
          %4047 = vst [vmem:[%s232 + $0x6a8] sm:$0xff] %v3791
          %4048 = vst [vmem:[%s232 + $0x6b0] sm:$0xff] %v3792
          %4049 = vst [vmem:[%s232 + $0x6b8] sm:$0xff] %v3793
          %4050 = vst [vmem:[%s232 + $0x6c0] sm:$0xff] %v3794
          %4051 = vst [vmem:[%s232 + $0x6c8] sm:$0xff] %v3795
          %4052 = vst [vmem:[%s232 + $0x6d0] sm:$0xff] %v3796
          %4053 = vst [vmem:[%s232 + $0x6d8] sm:$0xff] %v3797
          %4054 = vst [vmem:[%s232 + $0x6e0] sm:$0xff] %v3798
          %4055 = vst [vmem:[%s232 + $0x6e8] sm:$0xff] %v3799
          %4056 = vst [vmem:[%s232 + $0x6f0] sm:$0xff] %v3800
          %4057 = vst [vmem:[%s232 + $0x6f8] sm:$0xff] %v3801
          %4058 = vst [vmem:[%s232 + $0x700] sm:$0xff] %v3802
          %4059 = vst [vmem:[%s232 + $0x708] sm:$0xff] %v3803
          %4060 = vst [vmem:[%s232 + $0x710] sm:$0xff] %v3804
          %4061 = vst [vmem:[%s232 + $0x718] sm:$0xff] %v3805
          %4062 = vst [vmem:[%s232 + $0x720] sm:$0xff] %v3806
          %4063 = vst [vmem:[%s232 + $0x728] sm:$0xff] %v3807
          %4064 = vst [vmem:[%s232 + $0x730] sm:$0xff] %v3808
          %4065 = vst [vmem:[%s232 + $0x738] sm:$0xff] %v3809
          %4066 = vst [vmem:[%s232 + $0x740] sm:$0xff] %v3810
          %4067 = vst [vmem:[%s232 + $0x748] sm:$0xff] %v3811
          %4068 = vst [vmem:[%s232 + $0x750] sm:$0xff] %v3812
          %4069 = vst [vmem:[%s232 + $0x758] sm:$0xff] %v3813
          %4070 = vst [vmem:[%s232 + $0x760] sm:$0xff] %v3814
          %4071 = vst [vmem:[%s232 + $0x768] sm:$0xff] %v3815
          %4072 = vst [vmem:[%s232 + $0x770] sm:$0xff] %v3816
          %4073 = vst [vmem:[%s232 + $0x778] sm:$0xff] %v3817
          %4074 = vst [vmem:[%s232 + $0x780] sm:$0xff] %v3818
          %4075 = vst [vmem:[%s232 + $0x788] sm:$0xff] %v3819
          %4076 = vst [vmem:[%s232 + $0x790] sm:$0xff] %v3820
          %4077 = vst [vmem:[%s232 + $0x798] sm:$0xff] %v3821
          %4078 = vst [vmem:[%s232 + $0x7a0] sm:$0xff] %v3822
          %4079 = vst [vmem:[%s232 + $0x7a8] sm:$0xff] %v3823
          %4080 = vst [vmem:[%s232 + $0x7b0] sm:$0xff] %v3824
          %4081 = vst [vmem:[%s232 + $0x7b8] sm:$0xff] %v3825
          %4082 = vst [vmem:[%s232 + $0x7c0] sm:$0xff] %v3826
          %4083 = vst [vmem:[%s232 + $0x7c8] sm:$0xff] %v3827
          %4084 = vst [vmem:[%s232 + $0x7d0] sm:$0xff] %v3828
          %4085 = vst [vmem:[%s232 + $0x7d8] sm:$0xff] %v3829
          %4086 = vst [vmem:[%s232 + $0x7e0] sm:$0xff] %v3830
          %4087 = vst [vmem:[%s232 + $0x7e8] sm:$0xff] %v3831
          %4088 = vst [vmem:[%s232 + $0x7f0] sm:$0xff] %v3832
          %4089 = vst [vmem:[%s232 + $0x7f8] sm:$0xff] %v3833
        $region44: #{tpu_custom_call.1} parent=27 // pred_fallthru
          _
        %s4090 = sand.u32 %s107, 1
        %s4091 = scalar_lea.sflag [#allocation5], %s4090
        %s4092 = sand.u32 %s107, 1
        %s4093 = smul.addr %s4092, 2048
        %s4094 = scalar_lea.vmem [#allocation8], %s4093
        // Predicated region
        $region45: #{tpu_custom_call.1} parent=27 // pred_check
          %p4095 = pneg %p117
        $region46: #{tpu_custom_call.1} parent=27 // pred_check_branch
          %4097 = sbr.rel (%p4095) target = $region48
        $region47: #{tpu_custom_call.1} parent=27 // pred_region
          %s4098 = smul.u32 64, %s27
          %s4099 = smul.u32 4, %s28
          %s4101 = ssub.s32 32768, 32768
          %4102 = vsyncadd %s4091, %s4101
          %s4103 = smul.addr %s4098, 8
          %s4104 = sadd.s32 %s4099, %s4103
          %s4105 = smul.addr %s4104, 128
          %s4106 = scalar_lea.hbm %s2, %s4105
          %s4107 = sshll.u32 %s4094, 4
          %s4108 = int_to_ptr.vmem [resolvable:$true] %s4107
          %4113 = dma.vmem_to_hbm [thread:$0]  %s4108, 32768, %s4106, %s4091, 512, 1024, 32
        $region48: #{tpu_custom_call.1} parent=27 // pred_fallthru
          _
      $region28: #{tpu_custom_call.1} parent=5 // pred_fallthru
        _
      %p4114 = scmp.le.s32.totalorder 2, %s17
      // Predicated region
      $region49: #{tpu_custom_call.1} parent=5 // pred_check
        %p4115 = pneg %p4114
      $region50: #{tpu_custom_call.1} parent=5 // pred_check_branch
        %4117 = sbr.rel (%p4115) target = $region52
      $region51: #{tpu_custom_call.1} parent=5 // pred_region
        %s4118 = ssub.s32 %s17, 2
        // Predicated region
        $region53: #{tpu_custom_call.1} parent=51 // pred_check
          %p4119 = pneg %p123
        $region54: #{tpu_custom_call.1} parent=51 // pred_check_branch
          %4121 = sbr.rel (%p4119) target = $region56
        $region55: #{tpu_custom_call.1} parent=51 // pred_region
          %s4122 = sand.u32 %s108, 1
          %s4123 = scalar_lea.sflag [#allocation5], %s4122
          %s4124 = sand.u32 %s108, 1
          %s4125 = smul.addr %s4124, 2048
          %s4126 = scalar_lea.vmem [#allocation8], %s4125
          %4127 = dma.done %s4123, 32768
        $region56: #{tpu_custom_call.1} parent=51 // pred_fallthru
          _
      $region52: #{tpu_custom_call.1} parent=5 // pred_fallthru
        _
    $region6: #{tpu_custom_call.1} parent=1 // loop_footer
      %s21 = sadd.s32 1, %s17
    $region7: #{tpu_custom_call.1} parent=1 // loop_footer_branch
      %16 = sbr.rel target = $region3
    $region8: #{tpu_custom_call.1} parent=1 // loop_exit
      _
    %4128 = vsyncpa [#allocation4], 1
    %s4129 = scalar_lea.sflag [#allocation4], 1
    %4130 = vsyncpa %s4129, 1
    %4131 = vsyncpa [#allocation7], 1
    %s4132 = scalar_lea.sflag [#allocation7], 1
    %4133 = vsyncpa %s4132, 1
    %4134 = vsyncpa [#allocation5], 1
    %s4135 = scalar_lea.sflag [#allocation5], 1
    %4136 = vsyncpa %s4135, 1

</llo_original>
